<compile_context>
chip_gen: v5e
topology: v5e:2x2
jax: 0.10.0
libtpu: 0.0.40
codegen_flags: <defaults>
</compile_context>

<pallas_src>
import jax
import jax.numpy as jnp
from jax import lax
from jax.experimental import pallas as pl
from jax.experimental.pallas import tpu as pltpu


def _round_up(x, m):
    return (x + m - 1) // m * m


# ------------------------- math helpers (used in-kernel) ---------------------
def _erf(x):
    a = jnp.abs(x)
    t = 1.0 / (1.0 + 0.3275911 * a)
    poly = ((((1.061405429 * t - 1.453152027) * t + 1.421413741) * t
             - 0.284496736) * t + 0.254829592) * t
    y = 1.0 - poly * jnp.exp(-(a * a))
    return jnp.where(x < 0, -y, y)


def _gelu(x):
    # torch.nn.GELU default (exact, erf-based)
    return 0.5 * x * (1.0 + _erf(x * 0.7071067811865476))


def _layer_norm(x, g, b, eps=1e-5):
    mu = jnp.mean(x, axis=-1, keepdims=True)
    var = jnp.mean((x - mu) ** 2, axis=-1, keepdims=True)
    return (x - mu) * lax.rsqrt(var + eps) * g + b


# ------------------------------ Pallas kernel --------------------------------
def make_vit_kernel(num_layers, num_heads, hidden, n_tok, n_pad, b_tile):
    dh = hidden // num_heads
    rows = b_tile * n_pad
    bf16 = jnp.bfloat16

    def kernel(tok_ref, w_emb, add_full,
               ln1_g, ln1_b, wqkv, bqkv, wo, bo,
               ln2_g, ln2_b, w1, b1, w2, b2,
               lnf_g, lnf_b, wfc, bfc,
               out_ref, ctx_ref):
        f_pad = tok_ref.shape[-1]
        # patch embedding on the whole (b_tile * n_pad, f_pad) slab (bf16 MXU);
        # cls token + positional embedding + emb bias are prefolded in add_full.
        tok2 = tok_ref[...].reshape(rows, f_pad)
        x = jnp.dot(tok2, w_emb[...],
                    preferred_element_type=jnp.float32) + add_full[...]

        # key-padding mask: token indices >= n_tok are zero padding
        key_idx = lax.broadcasted_iota(jnp.int32, (n_pad, n_pad), 1)
        kmask = jnp.where(key_idx < n_tok, 0.0, -1e30).astype(jnp.float32)
        kmask = jnp.broadcast_to(kmask[None], (b_tile, n_pad, n_pad))

        def layer(l, x):
            # ---------------- multi-head self-attention (pre-LN) -------------
            h = _layer_norm(x, ln1_g[l], ln1_b[l])
            # Q third of wqkv/bqkv is pre-scaled by 1/sqrt(hidden) (wrapper).
            qkv = jnp.dot(h.astype(bf16), wqkv[l],
                          preferred_element_type=jnp.float32) + bqkv[l]
            for hd in range(num_heads):                    # static unroll
                q = qkv[:, hd * dh:(hd + 1) * dh].reshape(b_tile, n_pad, dh)
                k = qkv[:, hidden + hd * dh:hidden + (hd + 1) * dh].reshape(
                    b_tile, n_pad, dh)
                v = qkv[:, 2 * hidden + hd * dh:2 * hidden + (hd + 1) * dh].reshape(
                    b_tile, n_pad, dh)
                s = jnp.einsum('bqd,bkd->bqk', q.astype(bf16), k.astype(bf16),
                               preferred_element_type=jnp.float32) + kmask
                m = jnp.max(s, axis=-1, keepdims=True)
                e = jnp.exp(s - m)
                p = e * pl.reciprocal(jnp.sum(e, axis=-1, keepdims=True),
                                      approx=True)
                ctx_h = jnp.einsum('bqk,bkd->bqd', p.astype(bf16), v.astype(bf16),
                                   preferred_element_type=jnp.float32)
                ctx_ref[:, hd * dh:(hd + 1) * dh] = ctx_h.reshape(rows, dh)
            o = jnp.dot(ctx_ref[...].astype(bf16), wo[l],
                        preferred_element_type=jnp.float32) + bo[l]
            x = x + o
            # ------------- MLP (pre-LN), GELU after both linears -------------
            h2 = _layer_norm(x, ln2_g[l], ln2_b[l])
            m1 = _gelu(jnp.dot(h2.astype(bf16), w1[l],
                               preferred_element_type=jnp.float32) + b1[l])
            m2 = _gelu(jnp.dot(m1.astype(bf16), w2[l],
                               preferred_element_type=jnp.float32) + b2[l])
            return x + m2

        x = lax.fori_loop(0, num_layers, layer, x)

        # classification head on the cls token (token 0 of every image)
        cls = x.reshape(b_tile, n_pad, hidden)[:, 0:1, :]          # (b, 1, H)
        cls = _layer_norm(cls, lnf_g[...], lnf_b[...])
        wfc_b = jnp.broadcast_to(wfc[...][None], (b_tile,) + wfc.shape)
        logits = jnp.einsum('bih,bhc->bic', cls.astype(bf16), wfc_b,
                            preferred_element_type=jnp.float32) + bfc[...]
        out_ref[...] = logits                                      # (b, 1, Cpad)

    return kernel


# ------------------------------- wrapper --------------------------------------
def _to_words(x, patch):
    """(b, c, h, w) -> (b, patch^2, ps*ps*c), matching torch unfold/permute."""
    b, c, h, w = x.shape
    ps = h // patch
    out = x.reshape(b, c, patch, ps, patch, ps)
    out = out.transpose(0, 2, 4, 3, 5, 1)            # (b, Ph, Pw, ps, ps, c)
    return out.reshape(b, patch * patch, ps * ps * c)


def vit_forward(x_img, params, *, patch, num_layers, num_heads, hidden,
                batch_tile=8):
    B = x_img.shape[0]
    tok = _to_words(x_img, patch)                    # (B, P^2, f)
    n_patch, f = tok.shape[1], tok.shape[2]
    n_tok = n_patch + 1
    n_pad = _round_up(n_tok, 8)                      # sublane-aligned tokens
    f_pad = _round_up(f, 128)                        # lane-aligned patch feats
    num_classes = params["wfc"].shape[-1]
    c_pad = _round_up(num_classes, 128)              # lane-dense output
    b_tile = max(1, min(batch_tile, B))
    b_pad = _round_up(B, b_tile)
    n_steps = b_pad // b_tile
    scale = 1.0 / float(hidden) ** 0.5               # ViT-CIFAR: 1/sqrt(feats)

    bf16 = jnp.bfloat16

    # tokens: row 0 reserved for the cls slot (zeros), patches at rows 1..P^2,
    # zero-padded on tokens/features, streamed to the kernel as bf16.
    tok_pad = jnp.zeros((b_pad, n_pad, f_pad), bf16)
    tok_pad = tok_pad.at[:B, 1:n_tok, :f].set(tok.astype(bf16))

    # patch-embedding weight, zero-padded on the input-feature rows.
    w_emb = jnp.zeros((f_pad, hidden), jnp.float32).at[:f].set(params["w_emb"])

    # additive term folding cls token, positional embedding and emb bias:
    #   row 0            -> cls + pos[0]
    #   rows 1..n_tok-1  -> pos[i] + b_emb
    # tiled over the batch tile so the kernel adds it with no reshapes.
    add_t = jnp.zeros((n_pad, hidden), jnp.float32)
    add_t = add_t.at[0].set(params["cls"][0] + params["pos"][0])
    add_t = add_t.at[1:n_tok].set(params["pos"][1:] + params["b_emb"][0])
    add_full = jnp.tile(add_t, (b_tile, 1))          # (b_tile * n_pad, hidden)

    # fused QKV projection; attention scale folded into the Q third.
    wqkv = jnp.concatenate([params["wq"] * scale, params["wk"], params["wv"]],
                           axis=-1)
    bqkv = jnp.concatenate([params["bq"] * scale, params["bk"], params["bv"]],
                           axis=-1)

    # lane-dense classifier head (classes padded to 128; sliced back below)
    wfc = jnp.zeros((hidden, c_pad), jnp.float32).at[:, :num_classes].set(params["wfc"])
    bfc = jnp.zeros((1, c_pad), jnp.float32).at[:, :num_classes].set(params["bfc"])

    weight_args = [
        w_emb.astype(bf16), add_full,
        params["ln1_g"], params["ln1_b"], wqkv.astype(bf16), bqkv,
        params["wo"].astype(bf16), params["bo"],
        params["ln2_g"], params["ln2_b"],
        params["w1"].astype(bf16), params["b1"],
        params["w2"].astype(bf16), params["b2"],
        params["lnf_g"], params["lnf_b"], wfc.astype(bf16), bfc,
    ]

    def _const_spec(a):
        zeros = (0,) * a.ndim
        return pl.BlockSpec(a.shape, lambda i, _z=zeros: _z)

    in_specs = [pl.BlockSpec((b_tile, n_pad, f_pad), lambda i: (i, 0, 0))]
    in_specs += [_const_spec(a) for a in weight_args]
    out_spec = pl.BlockSpec((b_tile, 1, c_pad), lambda i: (i, 0, 0))

    kernel = make_vit_kernel(num_layers, num_heads, hidden, n_tok, n_pad, b_tile)
    out = pl.pallas_call(
        kernel,
        out_shape=jax.ShapeDtypeStruct((b_pad, 1, c_pad), jnp.float32),
        grid=(n_steps,),
        in_specs=in_specs,
        out_specs=out_spec,
        scratch_shapes=[pltpu.VMEM((b_tile * n_pad, hidden), jnp.float32)],
        compiler_params=pltpu.CompilerParams(
            dimension_semantics=("parallel",),
            vmem_limit_bytes=64 * 1024 * 1024),
    )(tok_pad, *weight_args)
    return out[:B, 0, :num_classes]                  # (B, num_classes)


# --------------------------- params & reference -------------------------------
def init_params(key, *, in_c, img_size, patch, hidden, mlp_hidden,
                num_layers, num_classes):
    ps = img_size // patch
    f = ps * ps * in_c
    n_tok = patch * patch + 1
    L = num_layers

    def nrm(k, shape, scale=0.02):
        return (scale * jax.random.normal(k, shape, jnp.float32)).astype(jnp.float32)

    ks = jax.random.split(key, 18)
    return {
        "w_emb": nrm(ks[0], (f, hidden)),
        "b_emb": nrm(ks[1], (1, hidden)),
        "cls":   nrm(ks[2], (1, hidden), 1.0),        # torch.randn
        "pos":   nrm(ks[3], (n_tok, hidden), 1.0),    # torch.randn
        "ln1_g": jnp.ones((L, 1, hidden), jnp.float32),
        "ln1_b": jnp.zeros((L, 1, hidden), jnp.float32),
        "wq": nrm(ks[4], (L, hidden, hidden)),
        "bq": nrm(ks[5], (L, 1, hidden)),
        "wk": nrm(ks[6], (L, hidden, hidden)),
        "bk": nrm(ks[7], (L, 1, hidden)),
        "wv": nrm(ks[8], (L, hidden, hidden)),
        "bv": nrm(ks[9], (L, 1, hidden)),
        "wo": nrm(ks[10], (L, hidden, hidden)),
        "bo": nrm(ks[11], (L, 1, hidden)),
        "ln2_g": jnp.ones((L, 1, hidden), jnp.float32),
        "ln2_b": jnp.zeros((L, 1, hidden), jnp.float32),
        "w1": nrm(ks[12], (L, hidden, mlp_hidden)),
        "b1": nrm(ks[13], (L, 1, mlp_hidden)),
        "w2": nrm(ks[14], (L, mlp_hidden, hidden)),
        "b2": nrm(ks[15], (L, 1, hidden)),
        "lnf_g": jnp.ones((1, hidden), jnp.float32),
        "lnf_b": jnp.zeros((1, hidden), jnp.float32),
        "wfc": nrm(ks[16], (hidden, num_classes)),
        "bfc": nrm(ks[17], (1, num_classes)),
    }


def vit_reference(x_img, p, *, patch, num_layers, num_heads, hidden):
    """Plain-JAX (f32) mirror of the PyTorch forward, for correctness checking."""
    tok = _to_words(x_img, patch)
    B, n_patch, _ = tok.shape
    dh = hidden // num_heads
    scale = 1.0 / float(hidden) ** 0.5
    x = tok @ p["w_emb"] + p["b_emb"]
    cls = jnp.broadcast_to(p["cls"][None], (B, 1, hidden))
    x = jnp.concatenate([cls, x], axis=1) + p["pos"][None]
    N = x.shape[1]
    for l in range(num_layers):
        h = _layer_norm(x, p["ln1_g"][l], p["ln1_b"][l])
        q = (h @ p["wq"][l] + p["bq"][l]).reshape(B, N, num_heads, dh).transpose(0, 2, 1, 3)
        k = (h @ p["wk"][l] + p["bk"][l]).reshape(B, N, num_heads, dh).transpose(0, 2, 1, 3)
        v = (h @ p["wv"][l] + p["bv"][l]).reshape(B, N, num_heads, dh).transpose(0, 2, 1, 3)
        s = jnp.einsum("bhqd,bhkd->bhqk", q, k) * scale
        a = jax.nn.softmax(s, axis=-1)
        ctx = jnp.einsum("bhqk,bhkd->bhqd", a, v).transpose(0, 2, 1, 3).reshape(B, N, hidden)
        x = x + ctx @ p["wo"][l] + p["bo"][l]
        h2 = _layer_norm(x, p["ln2_g"][l], p["ln2_b"][l])
        m = _gelu(h2 @ p["w1"][l] + p["b1"][l])
        m = _gelu(m @ p["w2"][l] + p["b2"][l])
        x = x + m
    c = _layer_norm(x[:, 0], p["lnf_g"], p["lnf_b"])
    return c @ p["wfc"] + p["bfc"]


# ----------------------------------- main --------------------------------------
if __name__ == "__main__":
    # Small shapes consistent with the module (hidden divisible by heads,
    # img_size divisible by patch; module hardcodes 3 input channels).
    B, IN_C, IMG, PATCH = 2, 3, 16, 4
    HIDDEN, MLP_HIDDEN, HEADS, LAYERS, CLASSES = 32, 64, 4, 2, 10

    key = jax.random.PRNGKey(0)
    kx, kp = jax.random.split(key)
    x = jax.random.normal(kx, (B, IN_C, IMG, IMG), jnp.float32)
    params = init_params(kp, in_c=IN_C, img_size=IMG, patch=PATCH, hidden=HIDDEN,
                         mlp_hidden=MLP_HIDDEN, num_layers=LAYERS, num_classes=CLASSES)

    out = vit_forward(x, params, patch=PATCH, num_layers=LAYERS,
                      num_heads=HEADS, hidden=HIDDEN)
    out = jax.block_until_ready(out)
    assert out.shape == (B, CLASSES), out.shape

    ref = vit_reference(x, params, patch=PATCH, num_layers=LAYERS,
                        num_heads=HEADS, hidden=HIDDEN)
    ref = jax.block_until_ready(ref)
    # Kernel runs the MXU in bf16 (f32 accumulation); compare with a loose
    # tolerance against the f32 reference.
    if not jnp.allclose(out, ref, atol=2e-2, rtol=2e-2):
        raise AssertionError(
            f"mismatch: max abs err={float(jnp.max(jnp.abs(out - ref)))}")
    print("KERNEL_OK")
</pallas_src>

<mosaic_0001>
module attributes {stable_mosaic.version = 11 : i64} {
  func.func @kernel(%arg0: i32, %arg1: memref<2x24x128xbf16, #tpu.memory_space<vmem>>, %arg2: memref<128x32xbf16, #tpu.memory_space<vmem>>, %arg3: memref<48x32xf32, #tpu.memory_space<vmem>>, %arg4: memref<2x1x32xf32, #tpu.memory_space<vmem>>, %arg5: memref<2x1x32xf32, #tpu.memory_space<vmem>>, %arg6: memref<2x32x96xbf16, #tpu.memory_space<vmem>>, %arg7: memref<2x1x96xf32, #tpu.memory_space<vmem>>, %arg8: memref<2x32x32xbf16, #tpu.memory_space<vmem>>, %arg9: memref<2x1x32xf32, #tpu.memory_space<vmem>>, %arg10: memref<2x1x32xf32, #tpu.memory_space<vmem>>, %arg11: memref<2x1x32xf32, #tpu.memory_space<vmem>>, %arg12: memref<2x32x64xbf16, #tpu.memory_space<vmem>>, %arg13: memref<2x1x64xf32, #tpu.memory_space<vmem>>, %arg14: memref<2x64x32xbf16, #tpu.memory_space<vmem>>, %arg15: memref<2x1x32xf32, #tpu.memory_space<vmem>>, %arg16: memref<1x32xf32, #tpu.memory_space<vmem>>, %arg17: memref<1x32xf32, #tpu.memory_space<vmem>>, %arg18: memref<32x128xbf16, #tpu.memory_space<vmem>>, %arg19: memref<1x128xf32, #tpu.memory_space<vmem>>, %arg20: memref<2x1x128xf32, #tpu.memory_space<vmem>>, %arg21: memref<48x32xf32, #tpu.memory_space<vmem>>) attributes {dimension_semantics = [#tpu.dimension_semantics<parallel>], iteration_bounds = array<i64: 1>, scalar_prefetch = 0 : i64, scratch_operands = 1 : i64, tpu.core_type = #tpu.core_type<tc>, window_params = [{transform_indices = @transform_0, window_bounds = array<i64: 2, 24, 128>}, {pipeline_mode = #tpu.pipeline_mode<synchronous>, transform_indices = @transform_1, window_bounds = array<i64: 128, 32>}, {pipeline_mode = #tpu.pipeline_mode<synchronous>, transform_indices = @transform_2, window_bounds = array<i64: 48, 32>}, {pipeline_mode = #tpu.pipeline_mode<synchronous>, transform_indices = @transform_3, window_bounds = array<i64: 2, 1, 32>}, {pipeline_mode = #tpu.pipeline_mode<synchronous>, transform_indices = @transform_4, window_bounds = array<i64: 2, 1, 32>}, {pipeline_mode = #tpu.pipeline_mode<synchronous>, transform_indices = @transform_5, window_bounds = array<i64: 2, 32, 96>}, {pipeline_mode = #tpu.pipeline_mode<synchronous>, transform_indices = @transform_6, window_bounds = array<i64: 2, 1, 96>}, {pipeline_mode = #tpu.pipeline_mode<synchronous>, transform_indices = @transform_7, window_bounds = array<i64: 2, 32, 32>}, {pipeline_mode = #tpu.pipeline_mode<synchronous>, transform_indices = @transform_8, window_bounds = array<i64: 2, 1, 32>}, {pipeline_mode = #tpu.pipeline_mode<synchronous>, transform_indices = @transform_9, window_bounds = array<i64: 2, 1, 32>}, {pipeline_mode = #tpu.pipeline_mode<synchronous>, transform_indices = @transform_10, window_bounds = array<i64: 2, 1, 32>}, {pipeline_mode = #tpu.pipeline_mode<synchronous>, transform_indices = @transform_11, window_bounds = array<i64: 2, 32, 64>}, {pipeline_mode = #tpu.pipeline_mode<synchronous>, transform_indices = @transform_12, window_bounds = array<i64: 2, 1, 64>}, {pipeline_mode = #tpu.pipeline_mode<synchronous>, transform_indices = @transform_13, window_bounds = array<i64: 2, 64, 32>}, {pipeline_mode = #tpu.pipeline_mode<synchronous>, transform_indices = @transform_14, window_bounds = array<i64: 2, 1, 32>}, {pipeline_mode = #tpu.pipeline_mode<synchronous>, transform_indices = @transform_15, window_bounds = array<i64: 1, 32>}, {pipeline_mode = #tpu.pipeline_mode<synchronous>, transform_indices = @transform_16, window_bounds = array<i64: 1, 32>}, {pipeline_mode = #tpu.pipeline_mode<synchronous>, transform_indices = @transform_17, window_bounds = array<i64: 32, 128>}, {pipeline_mode = #tpu.pipeline_mode<synchronous>, transform_indices = @transform_18, window_bounds = array<i64: 1, 128>}, {transform_indices = @transform_19, window_bounds = array<i64: 2, 1, 128>}]} {
    %c0 = arith.constant 0 : index
    %c0_0 = arith.constant 0 : index
    %c0_1 = arith.constant 0 : index
    %0 = vector.load %arg1[%c0, %c0_0, %c0_1] : memref<2x24x128xbf16, #tpu.memory_space<vmem>>, vector<2x24x128xbf16>
    %1 = vector.shape_cast %0 : vector<2x24x128xbf16> to vector<48x128xbf16>
    %c0_2 = arith.constant 0 : index
    %c0_3 = arith.constant 0 : index
    %2 = vector.load %arg2[%c0_2, %c0_3] : memref<128x32xbf16, #tpu.memory_space<vmem>>, vector<128x32xbf16>
    %cst = arith.constant dense<0.000000e+00> : vector<48x32xf32>
    %3 = tpu.matmul %1, %2, %cst {dimension_numbers = #tpu.dot_dimension_numbers<[1], [0], [0], [1], [0, 0, 1, 1], [], []>} : vector<48x128xbf16>, vector<128x32xbf16>, vector<48x32xf32> -> vector<48x32xf32>
    %c0_4 = arith.constant 0 : index
    %c0_5 = arith.constant 0 : index
    %4 = vector.load %arg3[%c0_4, %c0_5] : memref<48x32xf32, #tpu.memory_space<vmem>>, vector<48x32xf32>
    %5 = arith.addf %3, %4 : vector<48x32xf32>
    %6 = tpu.iota {dimensions = array<i32: 1>} : vector<24x24xi32>
    %c17_i32 = arith.constant 17 : i32
    %7 = vector.broadcast %c17_i32 : i32 to vector<24x24xi32>
    %8 = arith.cmpi slt, %6, %7 : vector<24x24xi32>
    %cst_6 = arith.constant 0.000000e+00 : f32
    %cst_7 = arith.constant -1.000000e+30 : f32
    %9 = vector.broadcast %cst_6 : f32 to vector<24x24xf32>
    %10 = vector.broadcast %cst_7 : f32 to vector<24x24xf32>
    %11 = arith.select %8, %9, %10 : vector<24x24xi1>, vector<24x24xf32>
    %12 = vector.shape_cast %11 : vector<24x24xf32> to vector<1x24x24xf32>
    %13 = vector.shape_cast %12 : vector<1x24x24xf32> to vector<1x24x24xf32>
    %14 = vector.broadcast %13 : vector<1x24x24xf32> to vector<2x24x24xf32>
    %c0_i32 = arith.constant 0 : i32
    %c2_i32 = arith.constant 2 : i32
    %15 = arith.addi %c0_i32, %c2_i32 : i32
    %c1_i32 = arith.constant 1 : i32
    %16 = scf.for %arg22 = %c0_i32 to %15 step %c1_i32 iter_args(%arg23 = %5) -> (vector<48x32xf32>)  : i32 {
      %56 = arith.index_cast %arg22 : i32 to index
      %c0_26 = arith.constant 0 : index
      %c0_27 = arith.constant 0 : index
      %57 = vector.load %arg4[%56, %c0_26, %c0_27] : memref<2x1x32xf32, #tpu.memory_space<vmem>>, vector<1x1x32xf32>
      %58 = vector.shape_cast %57 : vector<1x1x32xf32> to vector<1x32xf32>
      %59 = arith.index_cast %arg22 : i32 to index
      %c0_28 = arith.constant 0 : index
      %c0_29 = arith.constant 0 : index
      %60 = vector.load %arg5[%59, %c0_28, %c0_29] : memref<2x1x32xf32, #tpu.memory_space<vmem>>, vector<1x1x32xf32>
      %61 = vector.shape_cast %60 : vector<1x1x32xf32> to vector<1x32xf32>
      %cst_30 = arith.constant dense<0.000000e+00> : vector<48xf32>
      %62 = vector.multi_reduction <add>, %arg23, %cst_30 [1] : vector<48x32xf32> to vector<48xf32>
      %63 = vector.shape_cast %62 : vector<48xf32> to vector<48x1xf32>
      %cst_31 = arith.constant 3.200000e+01 : f32
      %64 = vector.broadcast %cst_31 : f32 to vector<48x1xf32>
      %65 = arith.divf %63, %64 : vector<48x1xf32>
      %66 = vector.broadcast %65 : vector<48x1xf32> to vector<48x32xf32>
      %67 = arith.subf %arg23, %66 : vector<48x32xf32>
      %68 = arith.mulf %67, %67 : vector<48x32xf32>
      %cst_32 = arith.constant dense<0.000000e+00> : vector<48xf32>
      %69 = vector.multi_reduction <add>, %68, %cst_32 [1] : vector<48x32xf32> to vector<48xf32>
      %70 = vector.shape_cast %69 : vector<48xf32> to vector<48x1xf32>
      %cst_33 = arith.constant 3.200000e+01 : f32
      %71 = vector.broadcast %cst_33 : f32 to vector<48x1xf32>
      %72 = arith.divf %70, %71 : vector<48x1xf32>
      %73 = vector.broadcast %65 : vector<48x1xf32> to vector<48x32xf32>
      %74 = arith.subf %arg23, %73 : vector<48x32xf32>
      %cst_34 = arith.constant 9.99999974E-6 : f32
      %75 = vector.broadcast %cst_34 : f32 to vector<48x1xf32>
      %76 = arith.addf %72, %75 : vector<48x1xf32>
      %77 = math.rsqrt %76 : vector<48x1xf32>
      %78 = vector.broadcast %77 : vector<48x1xf32> to vector<48x32xf32>
      %79 = arith.mulf %74, %78 : vector<48x32xf32>
      %80 = vector.broadcast %58 : vector<1x32xf32> to vector<48x32xf32>
      %81 = arith.mulf %79, %80 : vector<48x32xf32>
      %82 = vector.broadcast %61 : vector<1x32xf32> to vector<48x32xf32>
      %83 = arith.addf %81, %82 : vector<48x32xf32>
      %84 = arith.truncf %83 : vector<48x32xf32> to vector<48x32xbf16>
      %85 = arith.index_cast %arg22 : i32 to index
      %c0_35 = arith.constant 0 : index
      %c0_36 = arith.constant 0 : index
      %86 = vector.load %arg6[%85, %c0_35, %c0_36] : memref<2x32x96xbf16, #tpu.memory_space<vmem>>, vector<1x32x96xbf16>
      %87 = vector.shape_cast %86 : vector<1x32x96xbf16> to vector<32x96xbf16>
      %cst_37 = arith.constant dense<0.000000e+00> : vector<48x96xf32>
      %88 = tpu.matmul %84, %87, %cst_37 {dimension_numbers = #tpu.dot_dimension_numbers<[1], [0], [0], [1], [0, 0, 1, 1], [], []>} : vector<48x32xbf16>, vector<32x96xbf16>, vector<48x96xf32> -> vector<48x96xf32>
      %89 = arith.index_cast %arg22 : i32 to index
      %c0_38 = arith.constant 0 : index
      %c0_39 = arith.constant 0 : index
      %90 = vector.load %arg7[%89, %c0_38, %c0_39] : memref<2x1x96xf32, #tpu.memory_space<vmem>>, vector<1x1x96xf32>
      %91 = vector.shape_cast %90 : vector<1x1x96xf32> to vector<1x96xf32>
      %92 = vector.broadcast %91 : vector<1x96xf32> to vector<48x96xf32>
      %93 = arith.addf %88, %92 : vector<48x96xf32>
      %94 = vector.extract_strided_slice %93 {offsets = [0, 0], sizes = [48, 8], strides = [1, 1]} : vector<48x96xf32> to vector<48x8xf32>
      %95 = vector.shape_cast %94 : vector<48x8xf32> to vector<2x24x8xf32>
      %96 = vector.extract_strided_slice %93 {offsets = [0, 32], sizes = [48, 8], strides = [1, 1]} : vector<48x96xf32> to vector<48x8xf32>
      %97 = vector.shape_cast %96 : vector<48x8xf32> to vector<2x24x8xf32>
      %98 = vector.extract_strided_slice %93 {offsets = [0, 64], sizes = [48, 8], strides = [1, 1]} : vector<48x96xf32> to vector<48x8xf32>
      %99 = vector.shape_cast %98 : vector<48x8xf32> to vector<2x24x8xf32>
      %100 = arith.truncf %95 : vector<2x24x8xf32> to vector<2x24x8xbf16>
      %101 = arith.truncf %97 : vector<2x24x8xf32> to vector<2x24x8xbf16>
      "tpu.trace_start"() <{level = 10 : i32, message = "bqd,bkd->bqk"}> : () -> ()
      %cst_40 = arith.constant dense<0.000000e+00> : vector<2x24x24xf32>
      %102 = tpu.matmul %100, %101, %cst_40 {dimension_numbers = #tpu.dot_dimension_numbers<[2], [2], [1], [1], [0, 0, 0, 1, 1, 1], [0], [0]>} : vector<2x24x8xbf16>, vector<2x24x8xbf16>, vector<2x24x24xf32> -> vector<2x24x24xf32>
      "tpu.trace_stop"() : () -> ()
      %103 = arith.addf %102, %14 : vector<2x24x24xf32>
      %cst_41 = arith.constant dense<0xFF800000> : vector<2x24xf32>
      %104 = vector.multi_reduction <maximumf>, %103, %cst_41 [2] : vector<2x24x24xf32> to vector<2x24xf32>
      %105 = vector.shape_cast %104 : vector<2x24xf32> to vector<2x24x1xf32>
      %106 = vector.broadcast %105 : vector<2x24x1xf32> to vector<2x24x24xf32>
      %107 = arith.subf %103, %106 : vector<2x24x24xf32>
      %108 = math.exp %107 : vector<2x24x24xf32>
      %cst_42 = arith.constant dense<0.000000e+00> : vector<2x24xf32>
      %109 = vector.multi_reduction <add>, %108, %cst_42 [2] : vector<2x24x24xf32> to vector<2x24xf32>
      %110 = vector.shape_cast %109 : vector<2x24xf32> to vector<2x24x1xf32>
      %111 = tpu.reciprocal %110 {approx = true} : vector<2x24x1xf32> -> vector<2x24x1xf32>
      %112 = vector.broadcast %111 : vector<2x24x1xf32> to vector<2x24x24xf32>
      %113 = arith.mulf %108, %112 : vector<2x24x24xf32>
      %114 = arith.truncf %113 : vector<2x24x24xf32> to vector<2x24x24xbf16>
      %115 = arith.truncf %99 : vector<2x24x8xf32> to vector<2x24x8xbf16>
      "tpu.trace_start"() <{level = 10 : i32, message = "bqk,bkd->bqd"}> : () -> ()
      %cst_43 = arith.constant dense<0.000000e+00> : vector<2x24x8xf32>
      %116 = tpu.matmul %114, %115, %cst_43 {dimension_numbers = #tpu.dot_dimension_numbers<[2], [1], [1], [2], [0, 0, 0, 1, 1, 2], [0], [0]>} : vector<2x24x24xbf16>, vector<2x24x8xbf16>, vector<2x24x8xf32> -> vector<2x24x8xf32>
      "tpu.trace_stop"() : () -> ()
      %117 = vector.shape_cast %116 : vector<2x24x8xf32> to vector<48x8xf32>
      %c0_44 = arith.constant 0 : index
      %c0_45 = arith.constant 0 : index
      %118 = vector.load %arg21[%c0_44, %c0_45] : memref<48x32xf32, #tpu.memory_space<vmem>>, vector<48x8xf32>
      tpu.vector_store %arg21[%c0_44, %c0_45], %117 {strides = array<i32>} : memref<48x32xf32, #tpu.memory_space<vmem>>, vector<48x8xf32>,
      %119 = vector.extract_strided_slice %93 {offsets = [0, 8], sizes = [48, 8], strides = [1, 1]} : vector<48x96xf32> to vector<48x8xf32>
      %120 = vector.shape_cast %119 : vector<48x8xf32> to vector<2x24x8xf32>
      %121 = vector.extract_strided_slice %93 {offsets = [0, 40], sizes = [48, 8], strides = [1, 1]} : vector<48x96xf32> to vector<48x8xf32>
      %122 = vector.shape_cast %121 : vector<48x8xf32> to vector<2x24x8xf32>
      %123 = vector.extract_strided_slice %93 {offsets = [0, 72], sizes = [48, 8], strides = [1, 1]} : vector<48x96xf32> to vector<48x8xf32>
      %124 = vector.shape_cast %123 : vector<48x8xf32> to vector<2x24x8xf32>
      %125 = arith.truncf %120 : vector<2x24x8xf32> to vector<2x24x8xbf16>
      %126 = arith.truncf %122 : vector<2x24x8xf32> to vector<2x24x8xbf16>
      "tpu.trace_start"() <{level = 10 : i32, message = "bqd,bkd->bqk"}> : () -> ()
      %cst_46 = arith.constant dense<0.000000e+00> : vector<2x24x24xf32>
      %127 = tpu.matmul %125, %126, %cst_46 {dimension_numbers = #tpu.dot_dimension_numbers<[2], [2], [1], [1], [0, 0, 0, 1, 1, 1], [0], [0]>} : vector<2x24x8xbf16>, vector<2x24x8xbf16>, vector<2x24x24xf32> -> vector<2x24x24xf32>
      "tpu.trace_stop"() : () -> ()
      %128 = arith.addf %127, %14 : vector<2x24x24xf32>
      %cst_47 = arith.constant dense<0xFF800000> : vector<2x24xf32>
      %129 = vector.multi_reduction <maximumf>, %128, %cst_47 [2] : vector<2x24x24xf32> to vector<2x24xf32>
      %130 = vector.shape_cast %129 : vector<2x24xf32> to vector<2x24x1xf32>
      %131 = vector.broadcast %130 : vector<2x24x1xf32> to vector<2x24x24xf32>
      %132 = arith.subf %128, %131 : vector<2x24x24xf32>
      %133 = math.exp %132 : vector<2x24x24xf32>
      %cst_48 = arith.constant dense<0.000000e+00> : vector<2x24xf32>
      %134 = vector.multi_reduction <add>, %133, %cst_48 [2] : vector<2x24x24xf32> to vector<2x24xf32>
      %135 = vector.shape_cast %134 : vector<2x24xf32> to vector<2x24x1xf32>
      %136 = tpu.reciprocal %135 {approx = true} : vector<2x24x1xf32> -> vector<2x24x1xf32>
      %137 = vector.broadcast %136 : vector<2x24x1xf32> to vector<2x24x24xf32>
      %138 = arith.mulf %133, %137 : vector<2x24x24xf32>
      %139 = arith.truncf %138 : vector<2x24x24xf32> to vector<2x24x24xbf16>
      %140 = arith.truncf %124 : vector<2x24x8xf32> to vector<2x24x8xbf16>
      "tpu.trace_start"() <{level = 10 : i32, message = "bqk,bkd->bqd"}> : () -> ()
      %cst_49 = arith.constant dense<0.000000e+00> : vector<2x24x8xf32>
      %141 = tpu.matmul %139, %140, %cst_49 {dimension_numbers = #tpu.dot_dimension_numbers<[2], [1], [1], [2], [0, 0, 0, 1, 1, 2], [0], [0]>} : vector<2x24x24xbf16>, vector<2x24x8xbf16>, vector<2x24x8xf32> -> vector<2x24x8xf32>
      "tpu.trace_stop"() : () -> ()
      %142 = vector.shape_cast %141 : vector<2x24x8xf32> to vector<48x8xf32>
      %c0_50 = arith.constant 0 : index
      %c8 = arith.constant 8 : index
      %143 = vector.load %arg21[%c0_50, %c8] : memref<48x32xf32, #tpu.memory_space<vmem>>, vector<48x8xf32>
      tpu.vector_store %arg21[%c0_50, %c8], %142 {strides = array<i32>} : memref<48x32xf32, #tpu.memory_space<vmem>>, vector<48x8xf32>,
      %144 = vector.extract_strided_slice %93 {offsets = [0, 16], sizes = [48, 8], strides = [1, 1]} : vector<48x96xf32> to vector<48x8xf32>
      %145 = vector.shape_cast %144 : vector<48x8xf32> to vector<2x24x8xf32>
      %146 = vector.extract_strided_slice %93 {offsets = [0, 48], sizes = [48, 8], strides = [1, 1]} : vector<48x96xf32> to vector<48x8xf32>
      %147 = vector.shape_cast %146 : vector<48x8xf32> to vector<2x24x8xf32>
      %148 = vector.extract_strided_slice %93 {offsets = [0, 80], sizes = [48, 8], strides = [1, 1]} : vector<48x96xf32> to vector<48x8xf32>
      %149 = vector.shape_cast %148 : vector<48x8xf32> to vector<2x24x8xf32>
      %150 = arith.truncf %145 : vector<2x24x8xf32> to vector<2x24x8xbf16>
      %151 = arith.truncf %147 : vector<2x24x8xf32> to vector<2x24x8xbf16>
      "tpu.trace_start"() <{level = 10 : i32, message = "bqd,bkd->bqk"}> : () -> ()
      %cst_51 = arith.constant dense<0.000000e+00> : vector<2x24x24xf32>
      %152 = tpu.matmul %150, %151, %cst_51 {dimension_numbers = #tpu.dot_dimension_numbers<[2], [2], [1], [1], [0, 0, 0, 1, 1, 1], [0], [0]>} : vector<2x24x8xbf16>, vector<2x24x8xbf16>, vector<2x24x24xf32> -> vector<2x24x24xf32>
      "tpu.trace_stop"() : () -> ()
      %153 = arith.addf %152, %14 : vector<2x24x24xf32>
      %cst_52 = arith.constant dense<0xFF800000> : vector<2x24xf32>
      %154 = vector.multi_reduction <maximumf>, %153, %cst_52 [2] : vector<2x24x24xf32> to vector<2x24xf32>
      %155 = vector.shape_cast %154 : vector<2x24xf32> to vector<2x24x1xf32>
      %156 = vector.broadcast %155 : vector<2x24x1xf32> to vector<2x24x24xf32>
      %157 = arith.subf %153, %156 : vector<2x24x24xf32>
      %158 = math.exp %157 : vector<2x24x24xf32>
      %cst_53 = arith.constant dense<0.000000e+00> : vector<2x24xf32>
      %159 = vector.multi_reduction <add>, %158, %cst_53 [2] : vector<2x24x24xf32> to vector<2x24xf32>
      %160 = vector.shape_cast %159 : vector<2x24xf32> to vector<2x24x1xf32>
      %161 = tpu.reciprocal %160 {approx = true} : vector<2x24x1xf32> -> vector<2x24x1xf32>
      %162 = vector.broadcast %161 : vector<2x24x1xf32> to vector<2x24x24xf32>
      %163 = arith.mulf %158, %162 : vector<2x24x24xf32>
      %164 = arith.truncf %163 : vector<2x24x24xf32> to vector<2x24x24xbf16>
      %165 = arith.truncf %149 : vector<2x24x8xf32> to vector<2x24x8xbf16>
      "tpu.trace_start"() <{level = 10 : i32, message = "bqk,bkd->bqd"}> : () -> ()
      %cst_54 = arith.constant dense<0.000000e+00> : vector<2x24x8xf32>
      %166 = tpu.matmul %164, %165, %cst_54 {dimension_numbers = #tpu.dot_dimension_numbers<[2], [1], [1], [2], [0, 0, 0, 1, 1, 2], [0], [0]>} : vector<2x24x24xbf16>, vector<2x24x8xbf16>, vector<2x24x8xf32> -> vector<2x24x8xf32>
      "tpu.trace_stop"() : () -> ()
      %167 = vector.shape_cast %166 : vector<2x24x8xf32> to vector<48x8xf32>
      %c0_55 = arith.constant 0 : index
      %c16 = arith.constant 16 : index
      %168 = vector.load %arg21[%c0_55, %c16] : memref<48x32xf32, #tpu.memory_space<vmem>>, vector<48x8xf32>
      tpu.vector_store %arg21[%c0_55, %c16], %167 {strides = array<i32>} : memref<48x32xf32, #tpu.memory_space<vmem>>, vector<48x8xf32>,
      %169 = vector.extract_strided_slice %93 {offsets = [0, 24], sizes = [48, 8], strides = [1, 1]} : vector<48x96xf32> to vector<48x8xf32>
      %170 = vector.shape_cast %169 : vector<48x8xf32> to vector<2x24x8xf32>
      %171 = vector.extract_strided_slice %93 {offsets = [0, 56], sizes = [48, 8], strides = [1, 1]} : vector<48x96xf32> to vector<48x8xf32>
      %172 = vector.shape_cast %171 : vector<48x8xf32> to vector<2x24x8xf32>
      %173 = vector.extract_strided_slice %93 {offsets = [0, 88], sizes = [48, 8], strides = [1, 1]} : vector<48x96xf32> to vector<48x8xf32>
      %174 = vector.shape_cast %173 : vector<48x8xf32> to vector<2x24x8xf32>
      %175 = arith.truncf %170 : vector<2x24x8xf32> to vector<2x24x8xbf16>
      %176 = arith.truncf %172 : vector<2x24x8xf32> to vector<2x24x8xbf16>
      "tpu.trace_start"() <{level = 10 : i32, message = "bqd,bkd->bqk"}> : () -> ()
      %cst_56 = arith.constant dense<0.000000e+00> : vector<2x24x24xf32>
      %177 = tpu.matmul %175, %176, %cst_56 {dimension_numbers = #tpu.dot_dimension_numbers<[2], [2], [1], [1], [0, 0, 0, 1, 1, 1], [0], [0]>} : vector<2x24x8xbf16>, vector<2x24x8xbf16>, vector<2x24x24xf32> -> vector<2x24x24xf32>
      "tpu.trace_stop"() : () -> ()
      %178 = arith.addf %177, %14 : vector<2x24x24xf32>
      %cst_57 = arith.constant dense<0xFF800000> : vector<2x24xf32>
      %179 = vector.multi_reduction <maximumf>, %178, %cst_57 [2] : vector<2x24x24xf32> to vector<2x24xf32>
      %180 = vector.shape_cast %179 : vector<2x24xf32> to vector<2x24x1xf32>
      %181 = vector.broadcast %180 : vector<2x24x1xf32> to vector<2x24x24xf32>
      %182 = arith.subf %178, %181 : vector<2x24x24xf32>
      %183 = math.exp %182 : vector<2x24x24xf32>
      %cst_58 = arith.constant dense<0.000000e+00> : vector<2x24xf32>
      %184 = vector.multi_reduction <add>, %183, %cst_58 [2] : vector<2x24x24xf32> to vector<2x24xf32>
      %185 = vector.shape_cast %184 : vector<2x24xf32> to vector<2x24x1xf32>
      %186 = tpu.reciprocal %185 {approx = true} : vector<2x24x1xf32> -> vector<2x24x1xf32>
      %187 = vector.broadcast %186 : vector<2x24x1xf32> to vector<2x24x24xf32>
      %188 = arith.mulf %183, %187 : vector<2x24x24xf32>
      %189 = arith.truncf %188 : vector<2x24x24xf32> to vector<2x24x24xbf16>
      %190 = arith.truncf %174 : vector<2x24x8xf32> to vector<2x24x8xbf16>
      "tpu.trace_start"() <{level = 10 : i32, message = "bqk,bkd->bqd"}> : () -> ()
      %cst_59 = arith.constant dense<0.000000e+00> : vector<2x24x8xf32>
      %191 = tpu.matmul %189, %190, %cst_59 {dimension_numbers = #tpu.dot_dimension_numbers<[2], [1], [1], [2], [0, 0, 0, 1, 1, 2], [0], [0]>} : vector<2x24x24xbf16>, vector<2x24x8xbf16>, vector<2x24x8xf32> -> vector<2x24x8xf32>
      "tpu.trace_stop"() : () -> ()
      %192 = vector.shape_cast %191 : vector<2x24x8xf32> to vector<48x8xf32>
      %c0_60 = arith.constant 0 : index
      %c24 = arith.constant 24 : index
      %193 = vector.load %arg21[%c0_60, %c24] : memref<48x32xf32, #tpu.memory_space<vmem>>, vector<48x8xf32>
      tpu.vector_store %arg21[%c0_60, %c24], %192 {strides = array<i32>} : memref<48x32xf32, #tpu.memory_space<vmem>>, vector<48x8xf32>,
      %c0_61 = arith.constant 0 : index
      %c0_62 = arith.constant 0 : index
      %194 = vector.load %arg21[%c0_61, %c0_62] : memref<48x32xf32, #tpu.memory_space<vmem>>, vector<48x32xf32>
      %195 = arith.truncf %194 : vector<48x32xf32> to vector<48x32xbf16>
      %196 = arith.index_cast %arg22 : i32 to index
      %c0_63 = arith.constant 0 : index
      %c0_64 = arith.constant 0 : index
      %197 = vector.load %arg8[%196, %c0_63, %c0_64] : memref<2x32x32xbf16, #tpu.memory_space<vmem>>, vector<1x32x32xbf16>
      %198 = vector.shape_cast %197 : vector<1x32x32xbf16> to vector<32x32xbf16>
      %cst_65 = arith.constant dense<0.000000e+00> : vector<48x32xf32>
      %199 = tpu.matmul %195, %198, %cst_65 {dimension_numbers = #tpu.dot_dimension_numbers<[1], [0], [0], [1], [0, 0, 1, 1], [], []>} : vector<48x32xbf16>, vector<32x32xbf16>, vector<48x32xf32> -> vector<48x32xf32>
      %200 = arith.index_cast %arg22 : i32 to index
      %c0_66 = arith.constant 0 : index
      %c0_67 = arith.constant 0 : index
      %201 = vector.load %arg9[%200, %c0_66, %c0_67] : memref<2x1x32xf32, #tpu.memory_space<vmem>>, vector<1x1x32xf32>
      %202 = vector.shape_cast %201 : vector<1x1x32xf32> to vector<1x32xf32>
      %203 = vector.broadcast %202 : vector<1x32xf32> to vector<48x32xf32>
      %204 = arith.addf %199, %203 : vector<48x32xf32>
      %205 = arith.addf %arg23, %204 : vector<48x32xf32>
      %206 = arith.index_cast %arg22 : i32 to index
      %c0_68 = arith.constant 0 : index
      %c0_69 = arith.constant 0 : index
      %207 = vector.load %arg10[%206, %c0_68, %c0_69] : memref<2x1x32xf32, #tpu.memory_space<vmem>>, vector<1x1x32xf32>
      %208 = vector.shape_cast %207 : vector<1x1x32xf32> to vector<1x32xf32>
      %209 = arith.index_cast %arg22 : i32 to index
      %c0_70 = arith.constant 0 : index
      %c0_71 = arith.constant 0 : index
      %210 = vector.load %arg11[%209, %c0_70, %c0_71] : memref<2x1x32xf32, #tpu.memory_space<vmem>>, vector<1x1x32xf32>
      %211 = vector.shape_cast %210 : vector<1x1x32xf32> to vector<1x32xf32>
      %cst_72 = arith.constant dense<0.000000e+00> : vector<48xf32>
      %212 = vector.multi_reduction <add>, %205, %cst_72 [1] : vector<48x32xf32> to vector<48xf32>
      %213 = vector.shape_cast %212 : vector<48xf32> to vector<48x1xf32>
      %cst_73 = arith.constant 3.200000e+01 : f32
      %214 = vector.broadcast %cst_73 : f32 to vector<48x1xf32>
      %215 = arith.divf %213, %214 : vector<48x1xf32>
      %216 = vector.broadcast %215 : vector<48x1xf32> to vector<48x32xf32>
      %217 = arith.subf %205, %216 : vector<48x32xf32>
      %218 = arith.mulf %217, %217 : vector<48x32xf32>
      %cst_74 = arith.constant dense<0.000000e+00> : vector<48xf32>
      %219 = vector.multi_reduction <add>, %218, %cst_74 [1] : vector<48x32xf32> to vector<48xf32>
      %220 = vector.shape_cast %219 : vector<48xf32> to vector<48x1xf32>
      %cst_75 = arith.constant 3.200000e+01 : f32
      %221 = vector.broadcast %cst_75 : f32 to vector<48x1xf32>
      %222 = arith.divf %220, %221 : vector<48x1xf32>
      %223 = vector.broadcast %215 : vector<48x1xf32> to vector<48x32xf32>
      %224 = arith.subf %205, %223 : vector<48x32xf32>
      %cst_76 = arith.constant 9.99999974E-6 : f32
      %225 = vector.broadcast %cst_76 : f32 to vector<48x1xf32>
      %226 = arith.addf %222, %225 : vector<48x1xf32>
      %227 = math.rsqrt %226 : vector<48x1xf32>
      %228 = vector.broadcast %227 : vector<48x1xf32> to vector<48x32xf32>
      %229 = arith.mulf %224, %228 : vector<48x32xf32>
      %230 = vector.broadcast %208 : vector<1x32xf32> to vector<48x32xf32>
      %231 = arith.mulf %229, %230 : vector<48x32xf32>
      %232 = vector.broadcast %211 : vector<1x32xf32> to vector<48x32xf32>
      %233 = arith.addf %231, %232 : vector<48x32xf32>
      %234 = arith.truncf %233 : vector<48x32xf32> to vector<48x32xbf16>
      %235 = arith.index_cast %arg22 : i32 to index
      %c0_77 = arith.constant 0 : index
      %c0_78 = arith.constant 0 : index
      %236 = vector.load %arg12[%235, %c0_77, %c0_78] : memref<2x32x64xbf16, #tpu.memory_space<vmem>>, vector<1x32x64xbf16>
      %237 = vector.shape_cast %236 : vector<1x32x64xbf16> to vector<32x64xbf16>
      %cst_79 = arith.constant dense<0.000000e+00> : vector<48x64xf32>
      %238 = tpu.matmul %234, %237, %cst_79 {dimension_numbers = #tpu.dot_dimension_numbers<[1], [0], [0], [1], [0, 0, 1, 1], [], []>} : vector<48x32xbf16>, vector<32x64xbf16>, vector<48x64xf32> -> vector<48x64xf32>
      %239 = arith.index_cast %arg22 : i32 to index
      %c0_80 = arith.constant 0 : index
      %c0_81 = arith.constant 0 : index
      %240 = vector.load %arg13[%239, %c0_80, %c0_81] : memref<2x1x64xf32, #tpu.memory_space<vmem>>, vector<1x1x64xf32>
      %241 = vector.shape_cast %240 : vector<1x1x64xf32> to vector<1x64xf32>
      %242 = vector.broadcast %241 : vector<1x64xf32> to vector<48x64xf32>
      %243 = arith.addf %238, %242 : vector<48x64xf32>
      %cst_82 = arith.constant 5.000000e-01 : f32
      %244 = vector.broadcast %cst_82 : f32 to vector<48x64xf32>
      %245 = arith.mulf %244, %243 : vector<48x64xf32>
      %cst_83 = arith.constant 0.707106769 : f32
      %246 = vector.broadcast %cst_83 : f32 to vector<48x64xf32>
      %247 = arith.mulf %243, %246 : vector<48x64xf32>
      %248 = math.absf %247 : vector<48x64xf32>
      %cst_84 = arith.constant 0.327591091 : f32
      %249 = vector.broadcast %cst_84 : f32 to vector<48x64xf32>
      %250 = arith.mulf %249, %248 : vector<48x64xf32>
      %cst_85 = arith.constant 1.000000e+00 : f32
      %251 = vector.broadcast %cst_85 : f32 to vector<48x64xf32>
      %252 = arith.addf %251, %250 : vector<48x64xf32>
      %cst_86 = arith.constant 1.000000e+00 : f32
      %253 = vector.broadcast %cst_86 : f32 to vector<48x64xf32>
      %254 = arith.divf %253, %252 : vector<48x64xf32>
      %cst_87 = arith.constant 1.06140542 : f32
      %255 = vector.broadcast %cst_87 : f32 to vector<48x64xf32>
      %256 = arith.mulf %255, %254 : vector<48x64xf32>
      %cst_88 = arith.constant 1.45315206 : f32
      %257 = vector.broadcast %cst_88 : f32 to vector<48x64xf32>
      %258 = arith.subf %256, %257 : vector<48x64xf32>
      %259 = arith.mulf %258, %254 : vector<48x64xf32>
      %cst_89 = arith.constant 1.42141378 : f32
      %260 = vector.broadcast %cst_89 : f32 to vector<48x64xf32>
      %261 = arith.addf %259, %260 : vector<48x64xf32>
      %262 = arith.mulf %261, %254 : vector<48x64xf32>
      %cst_90 = arith.constant 0.284496725 : f32
      %263 = vector.broadcast %cst_90 : f32 to vector<48x64xf32>
      %264 = arith.subf %262, %263 : vector<48x64xf32>
      %265 = arith.mulf %264, %254 : vector<48x64xf32>
      %cst_91 = arith.constant 0.254829586 : f32
      %266 = vector.broadcast %cst_91 : f32 to vector<48x64xf32>
      %267 = arith.addf %265, %266 : vector<48x64xf32>
      %268 = arith.mulf %267, %254 : vector<48x64xf32>
      %269 = arith.mulf %248, %248 : vector<48x64xf32>
      %cst_92 = arith.constant 0.000000e+00 : f32
      %270 = vector.broadcast %cst_92 : f32 to vector<48x64xf32>
      %271 = arith.subf %270, %269 : vector<48x64xf32>
      %272 = math.exp %271 : vector<48x64xf32>
      %273 = arith.mulf %268, %272 : vector<48x64xf32>
      %cst_93 = arith.constant 1.000000e+00 : f32
      %274 = vector.broadcast %cst_93 : f32 to vector<48x64xf32>
      %275 = arith.subf %274, %273 : vector<48x64xf32>
      %cst_94 = arith.constant 0.000000e+00 : f32
      %276 = vector.broadcast %cst_94 : f32 to vector<48x64xf32>
      %277 = arith.cmpf olt, %247, %276 : vector<48x64xf32>
      %cst_95 = arith.constant 0.000000e+00 : f32
      %278 = vector.broadcast %cst_95 : f32 to vector<48x64xf32>
      %279 = arith.subf %278, %275 : vector<48x64xf32>
      %280 = arith.select %277, %279, %275 : vector<48x64xi1>, vector<48x64xf32>
      %cst_96 = arith.constant 1.000000e+00 : f32
      %281 = vector.broadcast %cst_96 : f32 to vector<48x64xf32>
      %282 = arith.addf %281, %280 : vector<48x64xf32>
      %283 = arith.mulf %245, %282 : vector<48x64xf32>
      %284 = arith.truncf %283 : vector<48x64xf32> to vector<48x64xbf16>
      %285 = arith.index_cast %arg22 : i32 to index
      %c0_97 = arith.constant 0 : index
      %c0_98 = arith.constant 0 : index
      %286 = vector.load %arg14[%285, %c0_97, %c0_98] : memref<2x64x32xbf16, #tpu.memory_space<vmem>>, vector<1x64x32xbf16>
      %287 = vector.shape_cast %286 : vector<1x64x32xbf16> to vector<64x32xbf16>
      %cst_99 = arith.constant dense<0.000000e+00> : vector<48x32xf32>
      %288 = tpu.matmul %284, %287, %cst_99 {dimension_numbers = #tpu.dot_dimension_numbers<[1], [0], [0], [1], [0, 0, 1, 1], [], []>} : vector<48x64xbf16>, vector<64x32xbf16>, vector<48x32xf32> -> vector<48x32xf32>
      %289 = arith.index_cast %arg22 : i32 to index
      %c0_100 = arith.constant 0 : index
      %c0_101 = arith.constant 0 : index
      %290 = vector.load %arg15[%289, %c0_100, %c0_101] : memref<2x1x32xf32, #tpu.memory_space<vmem>>, vector<1x1x32xf32>
      %291 = vector.shape_cast %290 : vector<1x1x32xf32> to vector<1x32xf32>
      %292 = vector.broadcast %291 : vector<1x32xf32> to vector<48x32xf32>
      %293 = arith.addf %288, %292 : vector<48x32xf32>
      %cst_102 = arith.constant 5.000000e-01 : f32
      %294 = vector.broadcast %cst_102 : f32 to vector<48x32xf32>
      %295 = arith.mulf %294, %293 : vector<48x32xf32>
      %cst_103 = arith.constant 0.707106769 : f32
      %296 = vector.broadcast %cst_103 : f32 to vector<48x32xf32>
      %297 = arith.mulf %293, %296 : vector<48x32xf32>
      %298 = math.absf %297 : vector<48x32xf32>
      %cst_104 = arith.constant 0.327591091 : f32
      %299 = vector.broadcast %cst_104 : f32 to vector<48x32xf32>
      %300 = arith.mulf %299, %298 : vector<48x32xf32>
      %cst_105 = arith.constant 1.000000e+00 : f32
      %301 = vector.broadcast %cst_105 : f32 to vector<48x32xf32>
      %302 = arith.addf %301, %300 : vector<48x32xf32>
      %cst_106 = arith.constant 1.000000e+00 : f32
      %303 = vector.broadcast %cst_106 : f32 to vector<48x32xf32>
      %304 = arith.divf %303, %302 : vector<48x32xf32>
      %cst_107 = arith.constant 1.06140542 : f32
      %305 = vector.broadcast %cst_107 : f32 to vector<48x32xf32>
      %306 = arith.mulf %305, %304 : vector<48x32xf32>
      %cst_108 = arith.constant 1.45315206 : f32
      %307 = vector.broadcast %cst_108 : f32 to vector<48x32xf32>
      %308 = arith.subf %306, %307 : vector<48x32xf32>
      %309 = arith.mulf %308, %304 : vector<48x32xf32>
      %cst_109 = arith.constant 1.42141378 : f32
      %310 = vector.broadcast %cst_109 : f32 to vector<48x32xf32>
      %311 = arith.addf %309, %310 : vector<48x32xf32>
      %312 = arith.mulf %311, %304 : vector<48x32xf32>
      %cst_110 = arith.constant 0.284496725 : f32
      %313 = vector.broadcast %cst_110 : f32 to vector<48x32xf32>
      %314 = arith.subf %312, %313 : vector<48x32xf32>
      %315 = arith.mulf %314, %304 : vector<48x32xf32>
      %cst_111 = arith.constant 0.254829586 : f32
      %316 = vector.broadcast %cst_111 : f32 to vector<48x32xf32>
      %317 = arith.addf %315, %316 : vector<48x32xf32>
      %318 = arith.mulf %317, %304 : vector<48x32xf32>
      %319 = arith.mulf %298, %298 : vector<48x32xf32>
      %cst_112 = arith.constant 0.000000e+00 : f32
      %320 = vector.broadcast %cst_112 : f32 to vector<48x32xf32>
      %321 = arith.subf %320, %319 : vector<48x32xf32>
      %322 = math.exp %321 : vector<48x32xf32>
      %323 = arith.mulf %318, %322 : vector<48x32xf32>
      %cst_113 = arith.constant 1.000000e+00 : f32
      %324 = vector.broadcast %cst_113 : f32 to vector<48x32xf32>
      %325 = arith.subf %324, %323 : vector<48x32xf32>
      %cst_114 = arith.constant 0.000000e+00 : f32
      %326 = vector.broadcast %cst_114 : f32 to vector<48x32xf32>
      %327 = arith.cmpf olt, %297, %326 : vector<48x32xf32>
      %cst_115 = arith.constant 0.000000e+00 : f32
      %328 = vector.broadcast %cst_115 : f32 to vector<48x32xf32>
      %329 = arith.subf %328, %325 : vector<48x32xf32>
      %330 = arith.select %327, %329, %325 : vector<48x32xi1>, vector<48x32xf32>
      %cst_116 = arith.constant 1.000000e+00 : f32
      %331 = vector.broadcast %cst_116 : f32 to vector<48x32xf32>
      %332 = arith.addf %331, %330 : vector<48x32xf32>
      %333 = arith.mulf %295, %332 : vector<48x32xf32>
      %334 = arith.addf %205, %333 : vector<48x32xf32>
      scf.yield %334 : vector<48x32xf32>
    }
    %c2_i32_8 = arith.constant 2 : i32
    %17 = vector.shape_cast %16 : vector<48x32xf32> to vector<2x24x32xf32>
    %18 = vector.extract_strided_slice %17 {offsets = [0, 0, 0], sizes = [2, 1, 32], strides = [1, 1, 1]} : vector<2x24x32xf32> to vector<2x1x32xf32>
    %c0_9 = arith.constant 0 : index
    %c0_10 = arith.constant 0 : index
    %19 = vector.load %arg16[%c0_9, %c0_10] : memref<1x32xf32, #tpu.memory_space<vmem>>, vector<1x32xf32>
    %c0_11 = arith.constant 0 : index
    %c0_12 = arith.constant 0 : index
    %20 = vector.load %arg17[%c0_11, %c0_12] : memref<1x32xf32, #tpu.memory_space<vmem>>, vector<1x32xf32>
    %cst_13 = arith.constant dense<0.000000e+00> : vector<2x1xf32>
    %21 = vector.multi_reduction <add>, %18, %cst_13 [2] : vector<2x1x32xf32> to vector<2x1xf32>
    %22 = vector.shape_cast %21 : vector<2x1xf32> to vector<2x1x1xf32>
    %cst_14 = arith.constant 3.200000e+01 : f32
    %23 = vector.broadcast %cst_14 : f32 to vector<2x1x1xf32>
    %24 = arith.divf %22, %23 : vector<2x1x1xf32>
    %25 = vector.broadcast %24 : vector<2x1x1xf32> to vector<2x1x32xf32>
    %26 = arith.subf %18, %25 : vector<2x1x32xf32>
    %27 = arith.mulf %26, %26 : vector<2x1x32xf32>
    %cst_15 = arith.constant dense<0.000000e+00> : vector<2x1xf32>
    %28 = vector.multi_reduction <add>, %27, %cst_15 [2] : vector<2x1x32xf32> to vector<2x1xf32>
    %29 = vector.shape_cast %28 : vector<2x1xf32> to vector<2x1x1xf32>
    %cst_16 = arith.constant 3.200000e+01 : f32
    %30 = vector.broadcast %cst_16 : f32 to vector<2x1x1xf32>
    %31 = arith.divf %29, %30 : vector<2x1x1xf32>
    %32 = vector.broadcast %24 : vector<2x1x1xf32> to vector<2x1x32xf32>
    %33 = arith.subf %18, %32 : vector<2x1x32xf32>
    %cst_17 = arith.constant 9.99999974E-6 : f32
    %34 = vector.broadcast %cst_17 : f32 to vector<2x1x1xf32>
    %35 = arith.addf %31, %34 : vector<2x1x1xf32>
    %36 = math.rsqrt %35 : vector<2x1x1xf32>
    %37 = vector.broadcast %36 : vector<2x1x1xf32> to vector<2x1x32xf32>
    %38 = arith.mulf %33, %37 : vector<2x1x32xf32>
    %39 = vector.shape_cast %19 : vector<1x32xf32> to vector<1x1x32xf32>
    %40 = vector.broadcast %39 : vector<1x1x32xf32> to vector<2x1x32xf32>
    %41 = arith.mulf %38, %40 : vector<2x1x32xf32>
    %42 = vector.shape_cast %20 : vector<1x32xf32> to vector<1x1x32xf32>
    %43 = vector.broadcast %42 : vector<1x1x32xf32> to vector<2x1x32xf32>
    %44 = arith.addf %41, %43 : vector<2x1x32xf32>
    %c0_18 = arith.constant 0 : index
    %c0_19 = arith.constant 0 : index
    %45 = vector.load %arg18[%c0_18, %c0_19] : memref<32x128xbf16, #tpu.memory_space<vmem>>, vector<32x128xbf16>
    %46 = vector.shape_cast %45 : vector<32x128xbf16> to vector<1x32x128xbf16>
    %47 = vector.shape_cast %46 : vector<1x32x128xbf16> to vector<1x32x128xbf16>
    %48 = vector.broadcast %47 : vector<1x32x128xbf16> to vector<2x32x128xbf16>
    %49 = arith.truncf %44 : vector<2x1x32xf32> to vector<2x1x32xbf16>
    "tpu.trace_start"() <{level = 10 : i32, message = "bih,bhc->bic"}> : () -> ()
    %cst_20 = arith.constant dense<0.000000e+00> : vector<2x1x128xf32>
    %50 = tpu.matmul %49, %48, %cst_20 {dimension_numbers = #tpu.dot_dimension_numbers<[2], [1], [1], [2], [0, 0, 0, 1, 1, 2], [0], [0]>} : vector<2x1x32xbf16>, vector<2x32x128xbf16>, vector<2x1x128xf32> -> vector<2x1x128xf32>
    "tpu.trace_stop"() : () -> ()
    %c0_21 = arith.constant 0 : index
    %c0_22 = arith.constant 0 : index
    %51 = vector.load %arg19[%c0_21, %c0_22] : memref<1x128xf32, #tpu.memory_space<vmem>>, vector<1x128xf32>
    %52 = vector.shape_cast %51 : vector<1x128xf32> to vector<1x1x128xf32>
    %53 = vector.broadcast %52 : vector<1x1x128xf32> to vector<2x1x128xf32>
    %54 = arith.addf %50, %53 : vector<2x1x128xf32>
    %c0_23 = arith.constant 0 : index
    %c0_24 = arith.constant 0 : index
    %c0_25 = arith.constant 0 : index
    %55 = vector.load %arg20[%c0_23, %c0_24, %c0_25] : memref<2x1x128xf32, #tpu.memory_space<vmem>>, vector<2x1x128xf32>
    tpu.vector_store %arg20[%c0_23, %c0_24, %c0_25], %54 {strides = array<i32>} : memref<2x1x128xf32, #tpu.memory_space<vmem>>, vector<2x1x128xf32>,
    return
  }
  func.func @transform_0(%arg0: i32) -> (i32, i32, i32) {
    %c0_i32 = arith.constant 0 : i32
    %c0_i32_0 = arith.constant 0 : i32
    %c0_i32_1 = arith.constant 0 : i32
    return %arg0, %c0_i32, %c0_i32_0 : i32, i32, i32
  }
  func.func @transform_1(%arg0: i32) -> (i32, i32) {
    %c0_i32 = arith.constant 0 : i32
    %c0_i32_0 = arith.constant 0 : i32
    %c0_i32_1 = arith.constant 0 : i32
    return %c0_i32, %c0_i32_0 : i32, i32
  }
  func.func @transform_2(%arg0: i32) -> (i32, i32) {
    %c0_i32 = arith.constant 0 : i32
    %c0_i32_0 = arith.constant 0 : i32
    %c0_i32_1 = arith.constant 0 : i32
    return %c0_i32, %c0_i32_0 : i32, i32
  }
  func.func @transform_3(%arg0: i32) -> (i32, i32, i32) {
    %c0_i32 = arith.constant 0 : i32
    %c0_i32_0 = arith.constant 0 : i32
    %c0_i32_1 = arith.constant 0 : i32
    %c0_i32_2 = arith.constant 0 : i32
    return %c0_i32, %c0_i32_0, %c0_i32_1 : i32, i32, i32
  }
  func.func @transform_4(%arg0: i32) -> (i32, i32, i32) {
    %c0_i32 = arith.constant 0 : i32
    %c0_i32_0 = arith.constant 0 : i32
    %c0_i32_1 = arith.constant 0 : i32
    %c0_i32_2 = arith.constant 0 : i32
    return %c0_i32, %c0_i32_0, %c0_i32_1 : i32, i32, i32
  }
  func.func @transform_5(%arg0: i32) -> (i32, i32, i32) {
    %c0_i32 = arith.constant 0 : i32
    %c0_i32_0 = arith.constant 0 : i32
    %c0_i32_1 = arith.constant 0 : i32
    %c0_i32_2 = arith.constant 0 : i32
    return %c0_i32, %c0_i32_0, %c0_i32_1 : i32, i32, i32
  }
  func.func @transform_6(%arg0: i32) -> (i32, i32, i32) {
    %c0_i32 = arith.constant 0 : i32
    %c0_i32_0 = arith.constant 0 : i32
    %c0_i32_1 = arith.constant 0 : i32
    %c0_i32_2 = arith.constant 0 : i32
    return %c0_i32, %c0_i32_0, %c0_i32_1 : i32, i32, i32
  }
  func.func @transform_7(%arg0: i32) -> (i32, i32, i32) {
    %c0_i32 = arith.constant 0 : i32
    %c0_i32_0 = arith.constant 0 : i32
    %c0_i32_1 = arith.constant 0 : i32
    %c0_i32_2 = arith.constant 0 : i32
    return %c0_i32, %c0_i32_0, %c0_i32_1 : i32, i32, i32
  }
  func.func @transform_8(%arg0: i32) -> (i32, i32, i32) {
    %c0_i32 = arith.constant 0 : i32
    %c0_i32_0 = arith.constant 0 : i32
    %c0_i32_1 = arith.constant 0 : i32
    %c0_i32_2 = arith.constant 0 : i32
    return %c0_i32, %c0_i32_0, %c0_i32_1 : i32, i32, i32
  }
  func.func @transform_9(%arg0: i32) -> (i32, i32, i32) {
    %c0_i32 = arith.constant 0 : i32
    %c0_i32_0 = arith.constant 0 : i32
    %c0_i32_1 = arith.constant 0 : i32
    %c0_i32_2 = arith.constant 0 : i32
    return %c0_i32, %c0_i32_0, %c0_i32_1 : i32, i32, i32
  }
  func.func @transform_10(%arg0: i32) -> (i32, i32, i32) {
    %c0_i32 = arith.constant 0 : i32
    %c0_i32_0 = arith.constant 0 : i32
    %c0_i32_1 = arith.constant 0 : i32
    %c0_i32_2 = arith.constant 0 : i32
    return %c0_i32, %c0_i32_0, %c0_i32_1 : i32, i32, i32
  }
  func.func @transform_11(%arg0: i32) -> (i32, i32, i32) {
    %c0_i32 = arith.constant 0 : i32
    %c0_i32_0 = arith.constant 0 : i32
    %c0_i32_1 = arith.constant 0 : i32
    %c0_i32_2 = arith.constant 0 : i32
    return %c0_i32, %c0_i32_0, %c0_i32_1 : i32, i32, i32
  }
  func.func @transform_12(%arg0: i32) -> (i32, i32, i32) {
    %c0_i32 = arith.constant 0 : i32
    %c0_i32_0 = arith.constant 0 : i32
    %c0_i32_1 = arith.constant 0 : i32
    %c0_i32_2 = arith.constant 0 : i32
    return %c0_i32, %c0_i32_0, %c0_i32_1 : i32, i32, i32
  }
  func.func @transform_13(%arg0: i32) -> (i32, i32, i32) {
    %c0_i32 = arith.constant 0 : i32
    %c0_i32_0 = arith.constant 0 : i32
    %c0_i32_1 = arith.constant 0 : i32
    %c0_i32_2 = arith.constant 0 : i32
    return %c0_i32, %c0_i32_0, %c0_i32_1 : i32, i32, i32
  }
  func.func @transform_14(%arg0: i32) -> (i32, i32, i32) {
    %c0_i32 = arith.constant 0 : i32
    %c0_i32_0 = arith.constant 0 : i32
    %c0_i32_1 = arith.constant 0 : i32
    %c0_i32_2 = arith.constant 0 : i32
    return %c0_i32, %c0_i32_0, %c0_i32_1 : i32, i32, i32
  }
  func.func @transform_15(%arg0: i32) -> (i32, i32) {
    %c0_i32 = arith.constant 0 : i32
    %c0_i32_0 = arith.constant 0 : i32
    %c0_i32_1 = arith.constant 0 : i32
    return %c0_i32, %c0_i32_0 : i32, i32
  }
  func.func @transform_16(%arg0: i32) -> (i32, i32) {
    %c0_i32 = arith.constant 0 : i32
    %c0_i32_0 = arith.constant 0 : i32
    %c0_i32_1 = arith.constant 0 : i32
    return %c0_i32, %c0_i32_0 : i32, i32
  }
  func.func @transform_17(%arg0: i32) -> (i32, i32) {
    %c0_i32 = arith.constant 0 : i32
    %c0_i32_0 = arith.constant 0 : i32
    %c0_i32_1 = arith.constant 0 : i32
    return %c0_i32, %c0_i32_0 : i32, i32
  }
  func.func @transform_18(%arg0: i32) -> (i32, i32) {
    %c0_i32 = arith.constant 0 : i32
    %c0_i32_0 = arith.constant 0 : i32
    %c0_i32_1 = arith.constant 0 : i32
    return %c0_i32, %c0_i32_0 : i32, i32
  }
  func.func @transform_19(%arg0: i32) -> (i32, i32, i32) {
    %c0_i32 = arith.constant 0 : i32
    %c0_i32_0 = arith.constant 0 : i32
    %c0_i32_1 = arith.constant 0 : i32
    return %arg0, %c0_i32, %c0_i32_0 : i32, i32, i32
  }
}

</mosaic_0001>

<llo_original>
// kernel: tpu_custom_call.1
$region0: #{tpu_custom_call.1}
  #allocation0 [shape = 'u32[]', space=smem, size = 0x4, offset = 0x4, fixed_abs, tag = 'smem constant byte address 0x4 - core index']
  #allocation1 [shape = 'u32[72,128]{1,0:T(1,128)}', space=vmem, size = 0x9000, scoped, tag = 'internal scratch']
  #allocation2 [shape = 'f32[48,32]{1,0:T(8,128)}', space=vmem, size = 0x6000, scoped, tag = 'scratch operand']
  %s0 = inlined_call_operand.vmem [shape: bf16[2,24,128], index: 0, kind: input, shape index: {}]
  %s1 = inlined_call_operand.vmem [shape: bf16[128,32], index: 1, kind: input, shape index: {}]
  %s2 = inlined_call_operand.vmem [shape: f32[48,32], index: 2, kind: input, shape index: {}]
  %s3 = inlined_call_operand.vmem [shape: f32[2,1,32], index: 3, kind: input, shape index: {}]
  %s4 = inlined_call_operand.vmem [shape: f32[2,1,32], index: 4, kind: input, shape index: {}]
  %s5 = inlined_call_operand.vmem [shape: bf16[2,32,96], index: 5, kind: input, shape index: {}]
  %s6 = inlined_call_operand.vmem [shape: f32[2,1,96], index: 6, kind: input, shape index: {}]
  %s7 = inlined_call_operand.vmem [shape: bf16[2,32,32], index: 7, kind: input, shape index: {}]
  %s8 = inlined_call_operand.vmem [shape: f32[2,1,32], index: 8, kind: input, shape index: {}]
  %s9 = inlined_call_operand.vmem [shape: f32[2,1,32], index: 9, kind: input, shape index: {}]
  %s10 = inlined_call_operand.vmem [shape: f32[2,1,32], index: 10, kind: input, shape index: {}]
  %s11 = inlined_call_operand.vmem [shape: bf16[2,32,64], index: 11, kind: input, shape index: {}]
  %s12 = inlined_call_operand.vmem [shape: f32[2,1,64], index: 12, kind: input, shape index: {}]
  %s13 = inlined_call_operand.vmem [shape: bf16[2,64,32], index: 13, kind: input, shape index: {}]
  %s14 = inlined_call_operand.vmem [shape: f32[2,1,32], index: 14, kind: input, shape index: {}]
  %s15 = inlined_call_operand.vmem [shape: f32[1,32], index: 15, kind: input, shape index: {}]
  %s16 = inlined_call_operand.vmem [shape: f32[1,32], index: 16, kind: input, shape index: {}]
  %s17 = inlined_call_operand.vmem [shape: bf16[32,128], index: 17, kind: input, shape index: {}]
  %s18 = inlined_call_operand.vmem [shape: f32[1,128], index: 18, kind: input, shape index: {}]
  %s19 = inlined_call_operand.hbm [shape: f32[2,1,128], index: 19, kind: output, shape index: {}]
  %s20 = sld [smem:[#allocation0]]
  $region93: #{tpu_custom_call.1} parent=0
    _
  %s22 = ssub.s32 1, %s20
  %s23 = scalar_select 0, %s22, %s20
  $region1: #{tpu_custom_call.1} parent=0
    #allocation3 [shape = 'u8[1024]{0}', space=vmem, size = 0x400, scoped, tag = 'output window, operand 0, single buffered']
    #allocation4 [shape = 's32[1]{0}', space=sflag, size = 0x4, scoped, tag = 'scoped memory for tpu_custom_call.1']
    %24 = vsyncpa [#allocation4], 0
    // Predicated region
    $region2: #{tpu_custom_call.1} parent=1 // pred_check
      _
    $region3: #{tpu_custom_call.1} parent=1 // pred_check_branch
      %26 = sbr.rel (0) target = $region5
    $region4: #{tpu_custom_call.1} parent=1 // pred_region
      _
    $region5: #{tpu_custom_call.1} parent=1 // pred_fallthru
      _
    // Predicated region
    $region6: #{tpu_custom_call.1} parent=1 // pred_check
      _
    $region7: #{tpu_custom_call.1} parent=1 // pred_check_branch
      %28 = sbr.rel (0) target = $region9
    $region8: #{tpu_custom_call.1} parent=1 // pred_region
      _
    $region9: #{tpu_custom_call.1} parent=1 // pred_fallthru
      _
    // Predicated region
    $region10: #{tpu_custom_call.1} parent=1 // pred_check
      _
    $region11: #{tpu_custom_call.1} parent=1 // pred_check_branch
      %30 = sbr.rel (0) target = $region13
    $region12: #{tpu_custom_call.1} parent=1 // pred_region
      _
    $region13: #{tpu_custom_call.1} parent=1 // pred_fallthru
      _
    // Predicated region
    $region14: #{tpu_custom_call.1} parent=1 // pred_check
      _
    $region15: #{tpu_custom_call.1} parent=1 // pred_check_branch
      %32 = sbr.rel (0) target = $region17
    $region16: #{tpu_custom_call.1} parent=1 // pred_region
      _
    $region17: #{tpu_custom_call.1} parent=1 // pred_fallthru
      _
    // Predicated region
    $region18: #{tpu_custom_call.1} parent=1 // pred_check
      _
    $region19: #{tpu_custom_call.1} parent=1 // pred_check_branch
      %34 = sbr.rel (0) target = $region21
    $region20: #{tpu_custom_call.1} parent=1 // pred_region
      _
    $region21: #{tpu_custom_call.1} parent=1 // pred_fallthru
      _
    // Predicated region
    $region22: #{tpu_custom_call.1} parent=1 // pred_check
      _
    $region23: #{tpu_custom_call.1} parent=1 // pred_check_branch
      %36 = sbr.rel (0) target = $region25
    $region24: #{tpu_custom_call.1} parent=1 // pred_region
      _
    $region25: #{tpu_custom_call.1} parent=1 // pred_fallthru
      _
    // Predicated region
    $region26: #{tpu_custom_call.1} parent=1 // pred_check
      _
    $region27: #{tpu_custom_call.1} parent=1 // pred_check_branch
      %38 = sbr.rel (0) target = $region29
    $region28: #{tpu_custom_call.1} parent=1 // pred_region
      _
    $region29: #{tpu_custom_call.1} parent=1 // pred_fallthru
      _
    // Predicated region
    $region30: #{tpu_custom_call.1} parent=1 // pred_check
      _
    $region31: #{tpu_custom_call.1} parent=1 // pred_check_branch
      %40 = sbr.rel (0) target = $region33
    $region32: #{tpu_custom_call.1} parent=1 // pred_region
      _
    $region33: #{tpu_custom_call.1} parent=1 // pred_fallthru
      _
    // Predicated region
    $region34: #{tpu_custom_call.1} parent=1 // pred_check
      _
    $region35: #{tpu_custom_call.1} parent=1 // pred_check_branch
      %42 = sbr.rel (0) target = $region37
    $region36: #{tpu_custom_call.1} parent=1 // pred_region
      _
    $region37: #{tpu_custom_call.1} parent=1 // pred_fallthru
      _
    // Predicated region
    $region38: #{tpu_custom_call.1} parent=1 // pred_check
      _
    $region39: #{tpu_custom_call.1} parent=1 // pred_check_branch
      %44 = sbr.rel (0) target = $region41
    $region40: #{tpu_custom_call.1} parent=1 // pred_region
      _
    $region41: #{tpu_custom_call.1} parent=1 // pred_fallthru
      _
    // Predicated region
    $region42: #{tpu_custom_call.1} parent=1 // pred_check
      _
    $region43: #{tpu_custom_call.1} parent=1 // pred_check_branch
      %46 = sbr.rel (0) target = $region45
    $region44: #{tpu_custom_call.1} parent=1 // pred_region
      _
    $region45: #{tpu_custom_call.1} parent=1 // pred_fallthru
      _
    // Predicated region
    $region46: #{tpu_custom_call.1} parent=1 // pred_check
      _
    $region47: #{tpu_custom_call.1} parent=1 // pred_check_branch
      %48 = sbr.rel (0) target = $region49
    $region48: #{tpu_custom_call.1} parent=1 // pred_region
      _
    $region49: #{tpu_custom_call.1} parent=1 // pred_fallthru
      _
    // Predicated region
    $region50: #{tpu_custom_call.1} parent=1 // pred_check
      _
    $region51: #{tpu_custom_call.1} parent=1 // pred_check_branch
      %50 = sbr.rel (0) target = $region53
    $region52: #{tpu_custom_call.1} parent=1 // pred_region
      _
    $region53: #{tpu_custom_call.1} parent=1 // pred_fallthru
      _
    // Predicated region
    $region54: #{tpu_custom_call.1} parent=1 // pred_check
      _
    $region55: #{tpu_custom_call.1} parent=1 // pred_check_branch
      %52 = sbr.rel (0) target = $region57
    $region56: #{tpu_custom_call.1} parent=1 // pred_region
      _
    $region57: #{tpu_custom_call.1} parent=1 // pred_fallthru
      _
    // Predicated region
    $region58: #{tpu_custom_call.1} parent=1 // pred_check
      _
    $region59: #{tpu_custom_call.1} parent=1 // pred_check_branch
      %54 = sbr.rel (0) target = $region61
    $region60: #{tpu_custom_call.1} parent=1 // pred_region
      _
    $region61: #{tpu_custom_call.1} parent=1 // pred_fallthru
      _
    // Predicated region
    $region62: #{tpu_custom_call.1} parent=1 // pred_check
      _
    $region63: #{tpu_custom_call.1} parent=1 // pred_check_branch
      %56 = sbr.rel (0) target = $region65
    $region64: #{tpu_custom_call.1} parent=1 // pred_region
      _
    $region65: #{tpu_custom_call.1} parent=1 // pred_fallthru
      _
    // Predicated region
    $region66: #{tpu_custom_call.1} parent=1 // pred_check
      _
    $region67: #{tpu_custom_call.1} parent=1 // pred_check_branch
      %58 = sbr.rel (0) target = $region69
    $region68: #{tpu_custom_call.1} parent=1 // pred_region
      _
    $region69: #{tpu_custom_call.1} parent=1 // pred_fallthru
      _
    // Predicated region
    $region70: #{tpu_custom_call.1} parent=1 // pred_check
      _
    $region71: #{tpu_custom_call.1} parent=1 // pred_check_branch
      %60 = sbr.rel (0) target = $region73
    $region72: #{tpu_custom_call.1} parent=1 // pred_region
      _
    $region73: #{tpu_custom_call.1} parent=1 // pred_fallthru
      _
    // Predicated region
    $region74: #{tpu_custom_call.1} parent=1 // pred_check
      _
    $region75: #{tpu_custom_call.1} parent=1 // pred_check_branch
      %62 = sbr.rel (0) target = $region77
    $region76: #{tpu_custom_call.1} parent=1 // pred_region
      _
    $region77: #{tpu_custom_call.1} parent=1 // pred_fallthru
      _
    %v64 = vld [vmem:[%s0] sm:$0xf]
    %v65 = vld [vmem:[%s0 + $0x4] sm:$0xf]
    %v66 = vld [vmem:[%s0 + $0x8] sm:$0xf]
    %v67 = vld [vmem:[%s0 + $0xc] sm:$0xf]
    %v68 = vld [vmem:[%s0 + $0x10] sm:$0xf]
    %v69 = vld [vmem:[%s0 + $0x14] sm:$0xf]
    %v70 = vld [vmem:[%s1] sm:$0xf]
    %v71 = vld [vmem:[%s1 + $0x4] sm:$0xf]
    %v72 = vld [vmem:[%s1 + $0x8] sm:$0xf]
    %v73 = vld [vmem:[%s1 + $0xc] sm:$0xf]
    %v74 = vld [vmem:[%s1 + $0x10] sm:$0xf]
    %v75 = vld [vmem:[%s1 + $0x14] sm:$0xf]
    %v76 = vld [vmem:[%s1 + $0x18] sm:$0xf]
    %v77 = vld [vmem:[%s1 + $0x1c] sm:$0xf]
    %v78 = vld [vmem:[%s1 + $0x20] sm:$0xf]
    %v79 = vld [vmem:[%s1 + $0x24] sm:$0xf]
    %v80 = vld [vmem:[%s1 + $0x28] sm:$0xf]
    %v81 = vld [vmem:[%s1 + $0x2c] sm:$0xf]
    %v82 = vld [vmem:[%s1 + $0x30] sm:$0xf]
    %v83 = vld [vmem:[%s1 + $0x34] sm:$0xf]
    %v84 = vld [vmem:[%s1 + $0x38] sm:$0xf]
    %v85 = vld [vmem:[%s1 + $0x3c] sm:$0xf]
    %v86 = vld [vmem:[%s2] sm:$0xff]
    %v87 = vld [vmem:[%s2 + $0x8] sm:$0xff]
    %v88 = vld [vmem:[%s2 + $0x10] sm:$0xff]
    %v89 = vld [vmem:[%s2 + $0x18] sm:$0xff]
    %v90 = vld [vmem:[%s2 + $0x20] sm:$0xff]
    %v91 = vld [vmem:[%s2 + $0x28] sm:$0xff]
    %v98 = vunpack.c.l.b16 %v64
    %v99 = vunpack.c.l.b16 %v65
    %v100 = vunpack.c.l.b16 %v66
    %v101 = vunpack.c.l.b16 %v67
    %v102 = vunpack.c.l.b16 %v68
    %v103 = vunpack.c.l.b16 %v69
    %v104 = vpack.c.b16 %v99, %v98
    %v105 = vpack.c.b16 %v101, %v100
    %v106 = vpack.c.b16 %v103, %v102
    %v126 = vunpack.c.l.b16 %v70
    %v127 = vunpack.c.l.b16 %v71
    %v128 = vunpack.c.l.b16 %v72
    %v129 = vunpack.c.l.b16 %v73
    %v130 = vunpack.c.l.b16 %v74
    %v131 = vunpack.c.l.b16 %v75
    %v132 = vunpack.c.l.b16 %v76
    %v133 = vunpack.c.l.b16 %v77
    %v134 = vunpack.c.l.b16 %v78
    %v135 = vunpack.c.l.b16 %v79
    %v136 = vunpack.c.l.b16 %v80
    %v137 = vunpack.c.l.b16 %v81
    %v138 = vunpack.c.l.b16 %v82
    %v139 = vunpack.c.l.b16 %v83
    %v140 = vunpack.c.l.b16 %v84
    %v141 = vunpack.c.l.b16 %v85
    %v142 = vpack.c.b16 %v127, %v126
    %v143 = vpack.c.b16 %v129, %v128
    %v144 = vpack.c.b16 %v131, %v130
    %v145 = vpack.c.b16 %v133, %v132
    %v146 = vpack.c.b16 %v135, %v134
    %v147 = vpack.c.b16 %v137, %v136
    %v148 = vpack.c.b16 %v139, %v138
    %v149 = vpack.c.b16 %v141, %v140
    %158 = vmatpush.bf16.msra.mxu0 %v149
    %159 = vmatpush.bf16.msra.mxu0 %v148
    %160 = vmatpush.bf16.msra.mxu0 %v147
    %161 = vmatpush.bf16.msra.mxu0 %v146
    %162 = vmatpush.bf16.msra.mxu0 %v145
    %163 = vmatpush.bf16.msra.mxu0 %v144
    %164 = vmatpush.bf16.msra.mxu0 %v143
    %165 = vmatpush.bf16.msra.mxu0 %v142
    %166 = vmatmul.bf16.gmra.mxu0 %v104
    %v167 = vpop.f32.mrf.mxu0
    %v168 = vadd.f32 %v86, %v167
    %v169 = vpop.f32.mrf.mxu0
    %v170 = vadd.f32 %v87, %v169
    %171 = vmatmul.bf16.gmra.mxu0 %v105
    %v172 = vpop.f32.mrf.mxu0
    %v173 = vadd.f32 %v88, %v172
    %v174 = vpop.f32.mrf.mxu0
    %v175 = vadd.f32 %v89, %v174
    %176 = vmatmul.bf16.gmra.mxu0 %v106
    %v177 = vpop.f32.mrf.mxu0
    %v178 = vadd.f32 %v90, %v177
    %v179 = vpop.f32.mrf.mxu0
    %v180 = vadd.f32 %v91, %v179
    %181 = vdwg.mxu0
    %v182 = vlaneseq
    %v183 = vand.u32 %v182, 127
    %vm184 = vcmp.lt.s32.totalorder %v183, 17
    %v185 = vsel %vm184, 0.0, -1e+30
    loop: start=0, step=1, limit=2
    $region78: #{tpu_custom_call.1} parent=1 // loop_pre_header
      _
    $region79: #{tpu_custom_call.1} parent=1 // loop_header
      %s187 = sphi 0, %s191
      %p188 = scmp.ge.s32.totalorder %s187, 2
      %v192 = vphi %v168, %v2289
      %v193 = vphi %v170, %v2290
      %v194 = vphi %v173, %v2291
      %v195 = vphi %v175, %v2292
      %v196 = vphi %v178, %v2293
      %v197 = vphi %v180, %v2294
    $region80: #{tpu_custom_call.1} parent=1 // loop_header_branch
      %190 = sbr.rel (%p188) target = $region84
    $region81: #{tpu_custom_call.1} parent=1 // loop_body
      %s198 = scalar_lea.vmem %s3, %s187
      %v199 = vld [vmem:[%s198] sm:$0x1]
      %s200 = scalar_lea.vmem %s4, %s187
      %v201 = vld [vmem:[%s200] sm:$0x1]
      %vm202 = vcmask 261120
      %v203 = vsel %vm202, %v192, 0.0
      %204 = vadd.xlane.f32.xlu0 %v203
      %v205 = vpop.xlane.xlu0 %204
      %v206 = vsel %vm202, %v193, 0.0
      %207 = vadd.xlane.f32.xlu0 %v206
      %v208 = vpop.xlane.xlu0 %207
      %v209 = vsel %vm202, %v194, 0.0
      %210 = vadd.xlane.f32.xlu0 %v209
      %v211 = vpop.xlane.xlu0 %210
      %v212 = vsel %vm202, %v195, 0.0
      %213 = vadd.xlane.f32.xlu0 %v212
      %v214 = vpop.xlane.xlu0 %213
      %v215 = vsel %vm202, %v196, 0.0
      %216 = vadd.xlane.f32.xlu0 %v215
      %v217 = vpop.xlane.xlu0 %216
      %v218 = vsel %vm202, %v197, 0.0
      %219 = vadd.xlane.f32.xlu0 %v218
      %v220 = vpop.xlane.xlu0 %219
      %v221 = vrcp.pop 32.0
      %v222 = vmul.f32 32.0, %v221
      %v223 = vsub.f32 1.0, %v222
      %v224 = vmul.f32 %v221, %v223
      %v225 = vadd.f32 %v221, %v224
      %vm226 = vweird.f32 %v221
      %v227 = vsel %vm226, %v221, %v225
      %v228 = vmul.f32 %v205, %v227
      %v229 = vmul.f32 %v208, %v227
      %v230 = vmul.f32 %v211, %v227
      %v231 = vmul.f32 %v214, %v227
      %v232 = vmul.f32 %v217, %v227
      %v233 = vmul.f32 %v220, %v227
      %v234 = vsub.f32 %v192, %v228
      %v235 = vsub.f32 %v193, %v229
      %v236 = vsub.f32 %v194, %v230
      %v237 = vsub.f32 %v195, %v231
      %v238 = vsub.f32 %v196, %v232
      %v239 = vsub.f32 %v197, %v233
      %v240 = vmul.f32 %v234, %v234
      %v241 = vmul.f32 %v235, %v235
      %v242 = vmul.f32 %v236, %v236
      %v243 = vmul.f32 %v237, %v237
      %v244 = vmul.f32 %v238, %v238
      %v245 = vmul.f32 %v239, %v239
      %v246 = vsel %vm202, %v240, 0.0
      %247 = vadd.xlane.f32.xlu0 %v246
      %v248 = vpop.xlane.xlu0 %247
      %v249 = vsel %vm202, %v241, 0.0
      %250 = vadd.xlane.f32.xlu0 %v249
      %v251 = vpop.xlane.xlu0 %250
      %v252 = vsel %vm202, %v242, 0.0
      %253 = vadd.xlane.f32.xlu0 %v252
      %v254 = vpop.xlane.xlu0 %253
      %v255 = vsel %vm202, %v243, 0.0
      %256 = vadd.xlane.f32.xlu0 %v255
      %v257 = vpop.xlane.xlu0 %256
      %v258 = vsel %vm202, %v244, 0.0
      %259 = vadd.xlane.f32.xlu0 %v258
      %v260 = vpop.xlane.xlu0 %259
      %v261 = vsel %vm202, %v245, 0.0
      %262 = vadd.xlane.f32.xlu0 %v261
      %v263 = vpop.xlane.xlu0 %262
      %v264 = vmul.f32 %v248, %v227
      %v265 = vmul.f32 %v251, %v227
      %v266 = vmul.f32 %v254, %v227
      %v267 = vmul.f32 %v257, %v227
      %v268 = vmul.f32 %v260, %v227
      %v269 = vmul.f32 %v263, %v227
      %v270 = vadd.f32 %v264, 1e-05
      %v271 = vadd.f32 %v265, 1e-05
      %v272 = vadd.f32 %v266, 1e-05
      %v273 = vadd.f32 %v267, 1e-05
      %v274 = vadd.f32 %v268, 1e-05
      %v275 = vadd.f32 %v269, 1e-05
      %v276 = vrsqrt.pop %v270
      %v277 = vmul.f32 %v276, %v270
      %v278 = vmul.f32 %v277, %v276
      %v279 = vmul.f32 0.5, %v278
      %v280 = vsub.f32 1.5, %v279
      %v281 = vmul.f32 %v276, %v280
      %vm282 = vweird.f32 %v270
      %vm283 = vweird.f32 %v276
      %vm284 = vmor %vm282, %vm283
      %v285 = vsel %vm284, %v276, %v281
      %v286 = vrsqrt.pop %v271
      %v287 = vmul.f32 %v286, %v271
      %v288 = vmul.f32 %v287, %v286
      %v289 = vmul.f32 0.5, %v288
      %v290 = vsub.f32 1.5, %v289
      %v291 = vmul.f32 %v286, %v290
      %vm292 = vweird.f32 %v271
      %vm293 = vweird.f32 %v286
      %vm294 = vmor %vm292, %vm293
      %v295 = vsel %vm294, %v286, %v291
      %v296 = vrsqrt.pop %v272
      %v297 = vmul.f32 %v296, %v272
      %v298 = vmul.f32 %v297, %v296
      %v299 = vmul.f32 0.5, %v298
      %v300 = vsub.f32 1.5, %v299
      %v301 = vmul.f32 %v296, %v300
      %vm302 = vweird.f32 %v272
      %vm303 = vweird.f32 %v296
      %vm304 = vmor %vm302, %vm303
      %v305 = vsel %vm304, %v296, %v301
      %v306 = vrsqrt.pop %v273
      %v307 = vmul.f32 %v306, %v273
      %v308 = vmul.f32 %v307, %v306
      %v309 = vmul.f32 0.5, %v308
      %v310 = vsub.f32 1.5, %v309
      %v311 = vmul.f32 %v306, %v310
      %vm312 = vweird.f32 %v273
      %vm313 = vweird.f32 %v306
      %vm314 = vmor %vm312, %vm313
      %v315 = vsel %vm314, %v306, %v311
      %v316 = vrsqrt.pop %v274
      %v317 = vmul.f32 %v316, %v274
      %v318 = vmul.f32 %v317, %v316
      %v319 = vmul.f32 0.5, %v318
      %v320 = vsub.f32 1.5, %v319
      %v321 = vmul.f32 %v316, %v320
      %vm322 = vweird.f32 %v274
      %vm323 = vweird.f32 %v316
      %vm324 = vmor %vm322, %vm323
      %v325 = vsel %vm324, %v316, %v321
      %v326 = vrsqrt.pop %v275
      %v327 = vmul.f32 %v326, %v275
      %v328 = vmul.f32 %v327, %v326
      %v329 = vmul.f32 0.5, %v328
      %v330 = vsub.f32 1.5, %v329
      %v331 = vmul.f32 %v326, %v330
      %vm332 = vweird.f32 %v275
      %vm333 = vweird.f32 %v326
      %vm334 = vmor %vm332, %vm333
      %v335 = vsel %vm334, %v326, %v331
      %v336 = vmul.f32 %v234, %v285
      %v337 = vmul.f32 %v235, %v295
      %v338 = vmul.f32 %v236, %v305
      %v339 = vmul.f32 %v237, %v315
      %v340 = vmul.f32 %v238, %v325
      %v341 = vmul.f32 %v239, %v335
      %v343 = vperm.slane %v199, 0
      %v345 = vmul.f32 %v336, %v343
      %v346 = vmul.f32 %v337, %v343
      %v347 = vmul.f32 %v338, %v343
      %v348 = vmul.f32 %v339, %v343
      %v349 = vmul.f32 %v340, %v343
      %v350 = vmul.f32 %v341, %v343
      %v352 = vperm.slane %v201, 0
      %v354 = vadd.f32 %v345, %v352
      %v355 = vadd.f32 %v346, %v352
      %v356 = vadd.f32 %v347, %v352
      %v357 = vadd.f32 %v348, %v352
      %v358 = vadd.f32 %v349, %v352
      %v359 = vadd.f32 %v350, %v352
      %v360 = vpack.c.bf16 %v355, %v354
      %v361 = vpack.c.bf16 %v357, %v356
      %v362 = vpack.c.bf16 %v359, %v358
      %s363 = smul.u32 %s187, 4
      %s364 = smul.addr %s363, 4
      %s365 = scalar_lea.vmem %s5, %s364
      %v366 = vld [vmem:[%s365] sm:$0xf]
      %v367 = vld [vmem:[%s365 + $0x4] sm:$0xf]
      %v368 = vld [vmem:[%s365 + $0x8] sm:$0xf]
      %v369 = vld [vmem:[%s365 + $0xc] sm:$0xf]
      %s370 = scalar_lea.vmem %s6, %s187
      %v371 = vld [vmem:[%s370] sm:$0x1]
      %v373 = vperm.slane %v371, 0
      %v379 = vunpack.c.l.b16 %v366
      %v380 = vunpack.c.l.b16 %v367
      %v381 = vunpack.c.l.b16 %v368
      %v382 = vunpack.c.l.b16 %v369
      %v383 = vpack.c.b16 %v380, %v379
      %v384 = vpack.c.b16 %v382, %v381
      %v388 = vsel %vm202, %v360, 0
      %v391 = vsel %vm202, %v361, 0
      %v394 = vsel %vm202, %v362, 0
      %396 = vmatpush.bf16.msra.mxu0 0
      %397 = vmatpush.bf16.msra.mxu0 0
      %398 = vmatpush.bf16.msra.mxu0 0
      %399 = vmatpush.bf16.msra.mxu0 0
      %400 = vmatpush.bf16.msra.mxu0 0
      %401 = vmatpush.bf16.msra.mxu0 0
      %402 = vmatpush.bf16.msra.mxu0 %v384
      %403 = vmatpush.bf16.msra.mxu0 %v383
      %404 = vmatmul.bf16.gmra.mxu0 %v388
      %v405 = vpop.f32.mrf.mxu0
      %v406 = vadd.f32 %v373, %v405
      %v407 = vpop.f32.mrf.mxu0
      %v408 = vadd.f32 %v373, %v407
      %409 = vmatmul.bf16.gmra.mxu0 %v391
      %v410 = vpop.f32.mrf.mxu0
      %v411 = vadd.f32 %v373, %v410
      %v412 = vpop.f32.mrf.mxu0
      %v413 = vadd.f32 %v373, %v412
      %414 = vmatmul.bf16.gmra.mxu0 %v394
      %v415 = vpop.f32.mrf.mxu0
      %v416 = vadd.f32 %v373, %v415
      %v417 = vpop.f32.mrf.mxu0
      %v418 = vadd.f32 %v373, %v417
      %419 = vdwg.mxu0
      %v420 = vpack.c.bf16 %v406, %v406
      %v421 = vpack.c.bf16 %v408, %v408
      %v422 = vpack.c.bf16 %v411, %v411
      %v423 = vpack.c.bf16 %v413, %v413
      %v424 = vpack.c.bf16 %v416, %v416
      %v425 = vpack.c.bf16 %v418, %v418
      %v429 = vunpack.c.l.b16 %v420
      %v430 = vunpack.c.l.b16 %v421
      %v431 = vunpack.c.l.b16 %v422
      %v432 = vpack.c.b16 %v430, %v429
      %v433 = vpack.c.b16 %v431, %v431
      %434 = vrot.lane.b32.xlu0 %v432, 96
      %v435 = vpop.permute.xlu0 %434
      %436 = vrot.lane.b32.xlu0 %v433, 96
      %v437 = vpop.permute.xlu0 %436
      %vm438 = vcmask 64512
      %v440 = vsel %vm438, %v432, 0
      %v443 = vsel %vm438, %v433, 0
      %v446 = vsel %vm438, %v435, 0
      %v449 = vsel %vm438, %v437, 0
      %451 = vmatpush.bf16.xpose.msra.mxu0 0
      %452 = vmatpush.bf16.xpose.msra.mxu0 0
      %453 = vmatpush.bf16.xpose.msra.mxu0 0
      %454 = vmatpush.bf16.xpose.msra.mxu0 0
      %455 = vmatpush.bf16.xpose.msra.mxu0 0
      %456 = vmatpush.bf16.xpose.msra.mxu0 0
      %457 = vmatpush.bf16.xpose.msra.mxu0 %v449
      %458 = vmatpush.bf16.xpose.msra.mxu0 %v446
      %459 = vmatmul.bf16.gmra.mxu0 %v440
      %v460 = vpop.f32.mrf.mxu0
      %v461 = vadd.f32 %v185, %v460
      %v462 = vpop.f32.mrf.mxu0
      %v463 = vadd.f32 %v185, %v462
      %464 = vmatmul.bf16.gmra.mxu0 %v443
      %v465 = vpop.f32.mrf.mxu0
      %v466 = vadd.f32 %v185, %v465
      %v467 = vpop.f32.mrf.mxu0
      %468 = vdwg.mxu0
      %v472 = vunpack.c.l.b16 %v423
      %v473 = vunpack.c.l.b16 %v424
      %v474 = vunpack.c.l.b16 %v425
      %v475 = vpack.c.b16 %v473, %v472
      %v476 = vpack.c.b16 %v474, %v474
      %477 = vrot.lane.b32.xlu0 %v475, 96
      %v478 = vpop.permute.xlu0 %477
      %479 = vrot.lane.b32.xlu0 %v476, 96
      %v480 = vpop.permute.xlu0 %479
      %v482 = vsel %vm438, %v475, 0
      %v485 = vsel %vm438, %v476, 0
      %v488 = vsel %vm438, %v478, 0
      %v491 = vsel %vm438, %v480, 0
      %493 = vmatpush.bf16.xpose.msra.mxu0 0
      %494 = vmatpush.bf16.xpose.msra.mxu0 0
      %495 = vmatpush.bf16.xpose.msra.mxu0 0
      %496 = vmatpush.bf16.xpose.msra.mxu0 0
      %497 = vmatpush.bf16.xpose.msra.mxu0 0
      %498 = vmatpush.bf16.xpose.msra.mxu0 0
      %499 = vmatpush.bf16.xpose.msra.mxu0 %v491
      %500 = vmatpush.bf16.xpose.msra.mxu0 %v488
      %501 = vmatmul.bf16.gmra.mxu0 %v482
      %v502 = vpop.f32.mrf.mxu0
      %v503 = vadd.f32 %v185, %v502
      %v504 = vpop.f32.mrf.mxu0
      %v505 = vadd.f32 %v185, %v504
      %506 = vmatmul.bf16.gmra.mxu0 %v485
      %v507 = vpop.f32.mrf.mxu0
      %v508 = vadd.f32 %v185, %v507
      %v509 = vpop.f32.mrf.mxu0
      %510 = vdwg.mxu0
      %vm511 = vcmask 195584
      %v512 = vsel %vm511, %v461, -inf
      %513 = vmax.xlane.f32.xlu0 %v512
      %v514 = vpop.xlane.xlu0 %513
      %v515 = vsel %vm511, %v463, -inf
      %516 = vmax.xlane.f32.xlu0 %v515
      %v517 = vpop.xlane.xlu0 %516
      %v518 = vsel %vm511, %v466, -inf
      %519 = vmax.xlane.f32.xlu0 %v518
      %v520 = vpop.xlane.xlu0 %519
      %v521 = vsel %vm511, %v503, -inf
      %522 = vmax.xlane.f32.xlu0 %v521
      %v523 = vpop.xlane.xlu0 %522
      %v524 = vsel %vm511, %v505, -inf
      %525 = vmax.xlane.f32.xlu0 %v524
      %v526 = vpop.xlane.xlu0 %525
      %v527 = vsel %vm511, %v508, -inf
      %528 = vmax.xlane.f32.xlu0 %v527
      %v529 = vpop.xlane.xlu0 %528
      %v530 = vsub.f32 %v461, %v514
      %v531 = vsub.f32 %v463, %v517
      %v532 = vsub.f32 %v466, %v520
      %v533 = vsub.f32 %v503, %v523
      %v534 = vsub.f32 %v505, %v526
      %v535 = vsub.f32 %v508, %v529
      %v536 = vmul.f32 %v530, 1.442695
      %v537 = vpow.pop %v536
      %v538 = vmul.f32 %v531, 1.442695
      %v539 = vpow.pop %v538
      %v540 = vmul.f32 %v532, 1.442695
      %v541 = vpow.pop %v540
      %v542 = vmul.f32 %v533, 1.442695
      %v543 = vpow.pop %v542
      %v544 = vmul.f32 %v534, 1.442695
      %v545 = vpow.pop %v544
      %v546 = vmul.f32 %v535, 1.442695
      %v547 = vpow.pop %v546
      %v548 = vsel %vm511, %v537, 0.0
      %549 = vadd.xlane.f32.xlu0 %v548
      %v550 = vpop.xlane.xlu0 %549
      %v551 = vsel %vm511, %v539, 0.0
      %552 = vadd.xlane.f32.xlu0 %v551
      %v553 = vpop.xlane.xlu0 %552
      %v554 = vsel %vm511, %v541, 0.0
      %555 = vadd.xlane.f32.xlu0 %v554
      %v556 = vpop.xlane.xlu0 %555
      %v557 = vsel %vm511, %v543, 0.0
      %558 = vadd.xlane.f32.xlu0 %v557
      %v559 = vpop.xlane.xlu0 %558
      %v560 = vsel %vm511, %v545, 0.0
      %561 = vadd.xlane.f32.xlu0 %v560
      %v562 = vpop.xlane.xlu0 %561
      %v563 = vsel %vm511, %v547, 0.0
      %564 = vadd.xlane.f32.xlu0 %v563
      %v565 = vpop.xlane.xlu0 %564
      %v566 = vrcp.pop %v550
      %v567 = vrcp.pop %v553
      %v568 = vrcp.pop %v556
      %v569 = vrcp.pop %v559
      %v570 = vrcp.pop %v562
      %v571 = vrcp.pop %v565
      %v572 = vmul.f32 %v537, %v566
      %v573 = vmul.f32 %v539, %v567
      %v574 = vmul.f32 %v541, %v568
      %v575 = vmul.f32 %v543, %v569
      %v576 = vmul.f32 %v545, %v570
      %v577 = vmul.f32 %v547, %v571
      %v578 = vpack.c.bf16 %v572, %v572
      %v579 = vpack.c.bf16 %v573, %v573
      %v580 = vpack.c.bf16 %v574, %v574
      %v581 = vpack.c.bf16 %v575, %v575
      %v582 = vpack.c.bf16 %v576, %v576
      %v583 = vpack.c.bf16 %v577, %v577
      %v587 = vunpack.c.l.b16 %v578
      %v588 = vunpack.c.l.b16 %v579
      %v589 = vunpack.c.l.b16 %v580
      %v590 = vpack.c.b16 %v588, %v587
      %v591 = vpack.c.b16 %v589, %v589
      %592 = vrot.lane.b32.xlu0 %v432, 64
      %v593 = vpop.permute.xlu0 %592
      %594 = vrot.lane.b32.xlu0 %v433, 64
      %v595 = vpop.permute.xlu0 %594
      %v598 = vsel %vm511, %v590, 0
      %v601 = vsel %vm511, %v591, 0
      %vm603 = vcmask 1043456
      %v605 = vsel %vm603, %v595, 0
      %607 = vmatpush.bf16.msra.mxu0 0
      %608 = vmatpush.bf16.msra.mxu0 0
      %609 = vmatpush.bf16.msra.mxu0 0
      %610 = vmatpush.bf16.msra.mxu0 0
      %611 = vmatpush.bf16.msra.mxu0 0
      %612 = vmatpush.bf16.msra.mxu0 0
      %613 = vmatpush.bf16.msra.mxu0 %v605
      %614 = vmatpush.bf16.msra.mxu0 %v593
      %615 = vmatmul.bf16.gmra.mxu0 %v598
      %v616 = vpop.f32.mrf.mxu0
      %v617 = vadd.f32 0.0, %v616
      %v618 = vpop.f32.mrf.mxu0
      %v619 = vadd.f32 0.0, %v618
      %620 = vmatmul.bf16.gmra.mxu0 %v601
      %v621 = vpop.f32.mrf.mxu0
      %v622 = vadd.f32 0.0, %v621
      %v623 = vpop.f32.mrf.mxu0
      %624 = vdwg.mxu0
      %v628 = vunpack.c.l.b16 %v581
      %v629 = vunpack.c.l.b16 %v582
      %v630 = vunpack.c.l.b16 %v583
      %v631 = vpack.c.b16 %v629, %v628
      %v632 = vpack.c.b16 %v630, %v630
      %633 = vrot.lane.b32.xlu0 %v475, 64
      %v634 = vpop.permute.xlu0 %633
      %635 = vrot.lane.b32.xlu0 %v476, 64
      %v636 = vpop.permute.xlu0 %635
      %v639 = vsel %vm511, %v631, 0
      %v642 = vsel %vm511, %v632, 0
      %v645 = vsel %vm603, %v636, 0
      %647 = vmatpush.bf16.msra.mxu0 0
      %648 = vmatpush.bf16.msra.mxu0 0
      %649 = vmatpush.bf16.msra.mxu0 0
      %650 = vmatpush.bf16.msra.mxu0 0
      %651 = vmatpush.bf16.msra.mxu0 0
      %652 = vmatpush.bf16.msra.mxu0 0
      %653 = vmatpush.bf16.msra.mxu0 %v645
      %654 = vmatpush.bf16.msra.mxu0 %v634
      %655 = vmatmul.bf16.gmra.mxu0 %v639
      %v656 = vpop.f32.mrf.mxu0
      %v657 = vadd.f32 0.0, %v656
      %v658 = vpop.f32.mrf.mxu0
      %v659 = vadd.f32 0.0, %v658
      %660 = vmatmul.bf16.gmra.mxu0 %v642
      %v661 = vpop.f32.mrf.mxu0
      %v662 = vadd.f32 0.0, %v661
      %v663 = vpop.f32.mrf.mxu0
      %664 = vdwg.mxu0
      %665 = vst.msk [vmem:[#allocation2] sm:$0xff] %vm438, %v617
      %666 = vst.msk [vmem:[#allocation2 + $0x8] sm:$0xff] %vm438, %v619
      %667 = vst.msk [vmem:[#allocation2 + $0x10] sm:$0xff] %vm438, %v622
      %668 = vst.msk [vmem:[#allocation2 + $0x18] sm:$0xff] %vm438, %v657
      %669 = vst.msk [vmem:[#allocation2 + $0x20] sm:$0xff] %vm438, %v659
      %670 = vst.msk [vmem:[#allocation2 + $0x28] sm:$0xff] %vm438, %v662
      %671 = vrot.lane.b32.xlu0 %v432, 120
      %v672 = vpop.permute.xlu0 %671
      %673 = vrot.lane.b32.xlu0 %v433, 120
      %v674 = vpop.permute.xlu0 %673
      %675 = vrot.lane.b32.xlu0 %v432, 88
      %v676 = vpop.permute.xlu0 %675
      %677 = vrot.lane.b32.xlu0 %v433, 88
      %v678 = vpop.permute.xlu0 %677
      %v680 = vsel %vm438, %v672, 0
      %v683 = vsel %vm438, %v674, 0
      %v686 = vsel %vm438, %v676, 0
      %v689 = vsel %vm438, %v678, 0
      %691 = vmatpush.bf16.xpose.msra.mxu0 0
      %692 = vmatpush.bf16.xpose.msra.mxu0 0
      %693 = vmatpush.bf16.xpose.msra.mxu0 0
      %694 = vmatpush.bf16.xpose.msra.mxu0 0
      %695 = vmatpush.bf16.xpose.msra.mxu0 0
      %696 = vmatpush.bf16.xpose.msra.mxu0 0
      %697 = vmatpush.bf16.xpose.msra.mxu0 %v689
      %698 = vmatpush.bf16.xpose.msra.mxu0 %v686
      %699 = vmatmul.bf16.gmra.mxu0 %v680
      %v700 = vpop.f32.mrf.mxu0
      %v701 = vadd.f32 %v185, %v700
      %v702 = vpop.f32.mrf.mxu0
      %v703 = vadd.f32 %v185, %v702
      %704 = vmatmul.bf16.gmra.mxu0 %v683
      %v705 = vpop.f32.mrf.mxu0
      %v706 = vadd.f32 %v185, %v705
      %v707 = vpop.f32.mrf.mxu0
      %708 = vdwg.mxu0
      %709 = vrot.lane.b32.xlu0 %v475, 120
      %v710 = vpop.permute.xlu0 %709
      %711 = vrot.lane.b32.xlu0 %v476, 120
      %v712 = vpop.permute.xlu0 %711
      %713 = vrot.lane.b32.xlu0 %v475, 88
      %v714 = vpop.permute.xlu0 %713
      %715 = vrot.lane.b32.xlu0 %v476, 88
      %v716 = vpop.permute.xlu0 %715
      %v718 = vsel %vm438, %v710, 0
      %v721 = vsel %vm438, %v712, 0
      %v724 = vsel %vm438, %v714, 0
      %v727 = vsel %vm438, %v716, 0
      %729 = vmatpush.bf16.xpose.msra.mxu0 0
      %730 = vmatpush.bf16.xpose.msra.mxu0 0
      %731 = vmatpush.bf16.xpose.msra.mxu0 0
      %732 = vmatpush.bf16.xpose.msra.mxu0 0
      %733 = vmatpush.bf16.xpose.msra.mxu0 0
      %734 = vmatpush.bf16.xpose.msra.mxu0 0
      %735 = vmatpush.bf16.xpose.msra.mxu0 %v727
      %736 = vmatpush.bf16.xpose.msra.mxu0 %v724
      %737 = vmatmul.bf16.gmra.mxu0 %v718
      %v738 = vpop.f32.mrf.mxu0
      %v739 = vadd.f32 %v185, %v738
      %v740 = vpop.f32.mrf.mxu0
      %v741 = vadd.f32 %v185, %v740
      %742 = vmatmul.bf16.gmra.mxu0 %v721
      %v743 = vpop.f32.mrf.mxu0
      %v744 = vadd.f32 %v185, %v743
      %v745 = vpop.f32.mrf.mxu0
      %746 = vdwg.mxu0
      %v747 = vsel %vm511, %v701, -inf
      %748 = vmax.xlane.f32.xlu0 %v747
      %v749 = vpop.xlane.xlu0 %748
      %v750 = vsel %vm511, %v703, -inf
      %751 = vmax.xlane.f32.xlu0 %v750
      %v752 = vpop.xlane.xlu0 %751
      %v753 = vsel %vm511, %v706, -inf
      %754 = vmax.xlane.f32.xlu0 %v753
      %v755 = vpop.xlane.xlu0 %754
      %v756 = vsel %vm511, %v739, -inf
      %757 = vmax.xlane.f32.xlu0 %v756
      %v758 = vpop.xlane.xlu0 %757
      %v759 = vsel %vm511, %v741, -inf
      %760 = vmax.xlane.f32.xlu0 %v759
      %v761 = vpop.xlane.xlu0 %760
      %v762 = vsel %vm511, %v744, -inf
      %763 = vmax.xlane.f32.xlu0 %v762
      %v764 = vpop.xlane.xlu0 %763
      %v765 = vsub.f32 %v701, %v749
      %v766 = vsub.f32 %v703, %v752
      %v767 = vsub.f32 %v706, %v755
      %v768 = vsub.f32 %v739, %v758
      %v769 = vsub.f32 %v741, %v761
      %v770 = vsub.f32 %v744, %v764
      %v771 = vmul.f32 %v765, 1.442695
      %v772 = vpow.pop %v771
      %v773 = vmul.f32 %v766, 1.442695
      %v774 = vpow.pop %v773
      %v775 = vmul.f32 %v767, 1.442695
      %v776 = vpow.pop %v775
      %v777 = vmul.f32 %v768, 1.442695
      %v778 = vpow.pop %v777
      %v779 = vmul.f32 %v769, 1.442695
      %v780 = vpow.pop %v779
      %v781 = vmul.f32 %v770, 1.442695
      %v782 = vpow.pop %v781
      %v783 = vsel %vm511, %v772, 0.0
      %784 = vadd.xlane.f32.xlu0 %v783
      %v785 = vpop.xlane.xlu0 %784
      %v786 = vsel %vm511, %v774, 0.0
      %787 = vadd.xlane.f32.xlu0 %v786
      %v788 = vpop.xlane.xlu0 %787
      %v789 = vsel %vm511, %v776, 0.0
      %790 = vadd.xlane.f32.xlu0 %v789
      %v791 = vpop.xlane.xlu0 %790
      %v792 = vsel %vm511, %v778, 0.0
      %793 = vadd.xlane.f32.xlu0 %v792
      %v794 = vpop.xlane.xlu0 %793
      %v795 = vsel %vm511, %v780, 0.0
      %796 = vadd.xlane.f32.xlu0 %v795
      %v797 = vpop.xlane.xlu0 %796
      %v798 = vsel %vm511, %v782, 0.0
      %799 = vadd.xlane.f32.xlu0 %v798
      %v800 = vpop.xlane.xlu0 %799
      %v801 = vrcp.pop %v785
      %v802 = vrcp.pop %v788
      %v803 = vrcp.pop %v791
      %v804 = vrcp.pop %v794
      %v805 = vrcp.pop %v797
      %v806 = vrcp.pop %v800
      %v807 = vmul.f32 %v772, %v801
      %v808 = vmul.f32 %v774, %v802
      %v809 = vmul.f32 %v776, %v803
      %v810 = vmul.f32 %v778, %v804
      %v811 = vmul.f32 %v780, %v805
      %v812 = vmul.f32 %v782, %v806
      %v813 = vpack.c.bf16 %v807, %v807
      %v814 = vpack.c.bf16 %v808, %v808
      %v815 = vpack.c.bf16 %v809, %v809
      %v816 = vpack.c.bf16 %v810, %v810
      %v817 = vpack.c.bf16 %v811, %v811
      %v818 = vpack.c.bf16 %v812, %v812
      %v822 = vunpack.c.l.b16 %v813
      %v823 = vunpack.c.l.b16 %v814
      %v824 = vunpack.c.l.b16 %v815
      %v825 = vpack.c.b16 %v823, %v822
      %v826 = vpack.c.b16 %v824, %v824
      %827 = vrot.lane.b32.xlu0 %v432, 56
      %v828 = vpop.permute.xlu0 %827
      %829 = vrot.lane.b32.xlu0 %v433, 56
      %v830 = vpop.permute.xlu0 %829
      %v833 = vsel %vm511, %v825, 0
      %v836 = vsel %vm511, %v826, 0
      %v839 = vsel %vm603, %v830, 0
      %841 = vmatpush.bf16.msra.mxu0 0
      %842 = vmatpush.bf16.msra.mxu0 0
      %843 = vmatpush.bf16.msra.mxu0 0
      %844 = vmatpush.bf16.msra.mxu0 0
      %845 = vmatpush.bf16.msra.mxu0 0
      %846 = vmatpush.bf16.msra.mxu0 0
      %847 = vmatpush.bf16.msra.mxu0 %v839
      %848 = vmatpush.bf16.msra.mxu0 %v828
      %849 = vmatmul.bf16.gmra.mxu0 %v833
      %v850 = vpop.f32.mrf.mxu0
      %v851 = vadd.f32 0.0, %v850
      %v852 = vpop.f32.mrf.mxu0
      %v853 = vadd.f32 0.0, %v852
      %854 = vmatmul.bf16.gmra.mxu0 %v836
      %v855 = vpop.f32.mrf.mxu0
      %v856 = vadd.f32 0.0, %v855
      %v857 = vpop.f32.mrf.mxu0
      %858 = vdwg.mxu0
      %v862 = vunpack.c.l.b16 %v816
      %v863 = vunpack.c.l.b16 %v817
      %v864 = vunpack.c.l.b16 %v818
      %v865 = vpack.c.b16 %v863, %v862
      %v866 = vpack.c.b16 %v864, %v864
      %867 = vrot.lane.b32.xlu0 %v475, 56
      %v868 = vpop.permute.xlu0 %867
      %869 = vrot.lane.b32.xlu0 %v476, 56
      %v870 = vpop.permute.xlu0 %869
      %v873 = vsel %vm511, %v865, 0
      %v876 = vsel %vm511, %v866, 0
      %v879 = vsel %vm603, %v870, 0
      %881 = vmatpush.bf16.msra.mxu0 0
      %882 = vmatpush.bf16.msra.mxu0 0
      %883 = vmatpush.bf16.msra.mxu0 0
      %884 = vmatpush.bf16.msra.mxu0 0
      %885 = vmatpush.bf16.msra.mxu0 0
      %886 = vmatpush.bf16.msra.mxu0 0
      %887 = vmatpush.bf16.msra.mxu0 %v879
      %888 = vmatpush.bf16.msra.mxu0 %v868
      %889 = vmatmul.bf16.gmra.mxu0 %v873
      %v890 = vpop.f32.mrf.mxu0
      %v891 = vadd.f32 0.0, %v890
      %v892 = vpop.f32.mrf.mxu0
      %v893 = vadd.f32 0.0, %v892
      %894 = vmatmul.bf16.gmra.mxu0 %v876
      %v895 = vpop.f32.mrf.mxu0
      %v896 = vadd.f32 0.0, %v895
      %v897 = vpop.f32.mrf.mxu0
      %898 = vdwg.mxu0
      %905 = vrot.lane.b32.xlu0 %v851, 8
      %v906 = vpop.permute.xlu0 %905
      %907 = vrot.lane.b32.xlu0 %v853, 8
      %v908 = vpop.permute.xlu0 %907
      %909 = vrot.lane.b32.xlu0 %v856, 8
      %v910 = vpop.permute.xlu0 %909
      %911 = vrot.lane.b32.xlu0 %v891, 8
      %v912 = vpop.permute.xlu0 %911
      %913 = vrot.lane.b32.xlu0 %v893, 8
      %v914 = vpop.permute.xlu0 %913
      %915 = vrot.lane.b32.xlu0 %v896, 8
      %v916 = vpop.permute.xlu0 %915
      %vm923 = vcmask 130112
      %924 = vst.msk [vmem:[#allocation2] sm:$0xff] %vm923, %v906
      %925 = vst.msk [vmem:[#allocation2 + $0x8] sm:$0xff] %vm923, %v908
      %926 = vst.msk [vmem:[#allocation2 + $0x10] sm:$0xff] %vm923, %v910
      %927 = vst.msk [vmem:[#allocation2 + $0x18] sm:$0xff] %vm923, %v912
      %928 = vst.msk [vmem:[#allocation2 + $0x20] sm:$0xff] %vm923, %v914
      %929 = vst.msk [vmem:[#allocation2 + $0x28] sm:$0xff] %vm923, %v916
      %930 = vrot.lane.b32.xlu0 %v432, 112
      %v931 = vpop.permute.xlu0 %930
      %932 = vrot.lane.b32.xlu0 %v433, 112
      %v933 = vpop.permute.xlu0 %932
      %934 = vrot.lane.b32.xlu0 %v432, 80
      %v935 = vpop.permute.xlu0 %934
      %936 = vrot.lane.b32.xlu0 %v433, 80
      %v937 = vpop.permute.xlu0 %936
      %v939 = vsel %vm438, %v931, 0
      %v942 = vsel %vm438, %v933, 0
      %v945 = vsel %vm438, %v935, 0
      %v948 = vsel %vm438, %v937, 0
      %950 = vmatpush.bf16.xpose.msra.mxu0 0
      %951 = vmatpush.bf16.xpose.msra.mxu0 0
      %952 = vmatpush.bf16.xpose.msra.mxu0 0
      %953 = vmatpush.bf16.xpose.msra.mxu0 0
      %954 = vmatpush.bf16.xpose.msra.mxu0 0
      %955 = vmatpush.bf16.xpose.msra.mxu0 0
      %956 = vmatpush.bf16.xpose.msra.mxu0 %v948
      %957 = vmatpush.bf16.xpose.msra.mxu0 %v945
      %958 = vmatmul.bf16.gmra.mxu0 %v939
      %v959 = vpop.f32.mrf.mxu0
      %v960 = vadd.f32 %v185, %v959
      %v961 = vpop.f32.mrf.mxu0
      %v962 = vadd.f32 %v185, %v961
      %963 = vmatmul.bf16.gmra.mxu0 %v942
      %v964 = vpop.f32.mrf.mxu0
      %v965 = vadd.f32 %v185, %v964
      %v966 = vpop.f32.mrf.mxu0
      %967 = vdwg.mxu0
      %968 = vrot.lane.b32.xlu0 %v475, 112
      %v969 = vpop.permute.xlu0 %968
      %970 = vrot.lane.b32.xlu0 %v476, 112
      %v971 = vpop.permute.xlu0 %970
      %972 = vrot.lane.b32.xlu0 %v475, 80
      %v973 = vpop.permute.xlu0 %972
      %974 = vrot.lane.b32.xlu0 %v476, 80
      %v975 = vpop.permute.xlu0 %974
      %v977 = vsel %vm438, %v969, 0
      %v980 = vsel %vm438, %v971, 0
      %v983 = vsel %vm438, %v973, 0
      %v986 = vsel %vm438, %v975, 0
      %988 = vmatpush.bf16.xpose.msra.mxu0 0
      %989 = vmatpush.bf16.xpose.msra.mxu0 0
      %990 = vmatpush.bf16.xpose.msra.mxu0 0
      %991 = vmatpush.bf16.xpose.msra.mxu0 0
      %992 = vmatpush.bf16.xpose.msra.mxu0 0
      %993 = vmatpush.bf16.xpose.msra.mxu0 0
      %994 = vmatpush.bf16.xpose.msra.mxu0 %v986
      %995 = vmatpush.bf16.xpose.msra.mxu0 %v983
      %996 = vmatmul.bf16.gmra.mxu0 %v977
      %v997 = vpop.f32.mrf.mxu0
      %v998 = vadd.f32 %v185, %v997
      %v999 = vpop.f32.mrf.mxu0
      %v1000 = vadd.f32 %v185, %v999
      %1001 = vmatmul.bf16.gmra.mxu0 %v980
      %v1002 = vpop.f32.mrf.mxu0
      %v1003 = vadd.f32 %v185, %v1002
      %v1004 = vpop.f32.mrf.mxu0
      %1005 = vdwg.mxu0
      %v1006 = vsel %vm511, %v960, -inf
      %1007 = vmax.xlane.f32.xlu0 %v1006
      %v1008 = vpop.xlane.xlu0 %1007
      %v1009 = vsel %vm511, %v962, -inf
      %1010 = vmax.xlane.f32.xlu0 %v1009
      %v1011 = vpop.xlane.xlu0 %1010
      %v1012 = vsel %vm511, %v965, -inf
      %1013 = vmax.xlane.f32.xlu0 %v1012
      %v1014 = vpop.xlane.xlu0 %1013
      %v1015 = vsel %vm511, %v998, -inf
      %1016 = vmax.xlane.f32.xlu0 %v1015
      %v1017 = vpop.xlane.xlu0 %1016
      %v1018 = vsel %vm511, %v1000, -inf
      %1019 = vmax.xlane.f32.xlu0 %v1018
      %v1020 = vpop.xlane.xlu0 %1019
      %v1021 = vsel %vm511, %v1003, -inf
      %1022 = vmax.xlane.f32.xlu0 %v1021
      %v1023 = vpop.xlane.xlu0 %1022
      %v1024 = vsub.f32 %v960, %v1008
      %v1025 = vsub.f32 %v962, %v1011
      %v1026 = vsub.f32 %v965, %v1014
      %v1027 = vsub.f32 %v998, %v1017
      %v1028 = vsub.f32 %v1000, %v1020
      %v1029 = vsub.f32 %v1003, %v1023
      %v1030 = vmul.f32 %v1024, 1.442695
      %v1031 = vpow.pop %v1030
      %v1032 = vmul.f32 %v1025, 1.442695
      %v1033 = vpow.pop %v1032
      %v1034 = vmul.f32 %v1026, 1.442695
      %v1035 = vpow.pop %v1034
      %v1036 = vmul.f32 %v1027, 1.442695
      %v1037 = vpow.pop %v1036
      %v1038 = vmul.f32 %v1028, 1.442695
      %v1039 = vpow.pop %v1038
      %v1040 = vmul.f32 %v1029, 1.442695
      %v1041 = vpow.pop %v1040
      %v1042 = vsel %vm511, %v1031, 0.0
      %1043 = vadd.xlane.f32.xlu0 %v1042
      %v1044 = vpop.xlane.xlu0 %1043
      %v1045 = vsel %vm511, %v1033, 0.0
      %1046 = vadd.xlane.f32.xlu0 %v1045
      %v1047 = vpop.xlane.xlu0 %1046
      %v1048 = vsel %vm511, %v1035, 0.0
      %1049 = vadd.xlane.f32.xlu0 %v1048
      %v1050 = vpop.xlane.xlu0 %1049
      %v1051 = vsel %vm511, %v1037, 0.0
      %1052 = vadd.xlane.f32.xlu0 %v1051
      %v1053 = vpop.xlane.xlu0 %1052
      %v1054 = vsel %vm511, %v1039, 0.0
      %1055 = vadd.xlane.f32.xlu0 %v1054
      %v1056 = vpop.xlane.xlu0 %1055
      %v1057 = vsel %vm511, %v1041, 0.0
      %1058 = vadd.xlane.f32.xlu0 %v1057
      %v1059 = vpop.xlane.xlu0 %1058
      %v1060 = vrcp.pop %v1044
      %v1061 = vrcp.pop %v1047
      %v1062 = vrcp.pop %v1050
      %v1063 = vrcp.pop %v1053
      %v1064 = vrcp.pop %v1056
      %v1065 = vrcp.pop %v1059
      %v1066 = vmul.f32 %v1031, %v1060
      %v1067 = vmul.f32 %v1033, %v1061
      %v1068 = vmul.f32 %v1035, %v1062
      %v1069 = vmul.f32 %v1037, %v1063
      %v1070 = vmul.f32 %v1039, %v1064
      %v1071 = vmul.f32 %v1041, %v1065
      %v1072 = vpack.c.bf16 %v1066, %v1066
      %v1073 = vpack.c.bf16 %v1067, %v1067
      %v1074 = vpack.c.bf16 %v1068, %v1068
      %v1075 = vpack.c.bf16 %v1069, %v1069
      %v1076 = vpack.c.bf16 %v1070, %v1070
      %v1077 = vpack.c.bf16 %v1071, %v1071
      %v1081 = vunpack.c.l.b16 %v1072
      %v1082 = vunpack.c.l.b16 %v1073
      %v1083 = vunpack.c.l.b16 %v1074
      %v1084 = vpack.c.b16 %v1082, %v1081
      %v1085 = vpack.c.b16 %v1083, %v1083
      %1086 = vrot.lane.b32.xlu0 %v432, 48
      %v1087 = vpop.permute.xlu0 %1086
      %1088 = vrot.lane.b32.xlu0 %v433, 48
      %v1089 = vpop.permute.xlu0 %1088
      %v1092 = vsel %vm511, %v1084, 0
      %v1095 = vsel %vm511, %v1085, 0
      %v1098 = vsel %vm603, %v1089, 0
      %1100 = vmatpush.bf16.msra.mxu0 0
      %1101 = vmatpush.bf16.msra.mxu0 0
      %1102 = vmatpush.bf16.msra.mxu0 0
      %1103 = vmatpush.bf16.msra.mxu0 0
      %1104 = vmatpush.bf16.msra.mxu0 0
      %1105 = vmatpush.bf16.msra.mxu0 0
      %1106 = vmatpush.bf16.msra.mxu0 %v1098
      %1107 = vmatpush.bf16.msra.mxu0 %v1087
      %1108 = vmatmul.bf16.gmra.mxu0 %v1092
      %v1109 = vpop.f32.mrf.mxu0
      %v1110 = vadd.f32 0.0, %v1109
      %v1111 = vpop.f32.mrf.mxu0
      %v1112 = vadd.f32 0.0, %v1111
      %1113 = vmatmul.bf16.gmra.mxu0 %v1095
      %v1114 = vpop.f32.mrf.mxu0
      %v1115 = vadd.f32 0.0, %v1114
      %v1116 = vpop.f32.mrf.mxu0
      %1117 = vdwg.mxu0
      %v1121 = vunpack.c.l.b16 %v1075
      %v1122 = vunpack.c.l.b16 %v1076
      %v1123 = vunpack.c.l.b16 %v1077
      %v1124 = vpack.c.b16 %v1122, %v1121
      %v1125 = vpack.c.b16 %v1123, %v1123
      %1126 = vrot.lane.b32.xlu0 %v475, 48
      %v1127 = vpop.permute.xlu0 %1126
      %1128 = vrot.lane.b32.xlu0 %v476, 48
      %v1129 = vpop.permute.xlu0 %1128
      %v1132 = vsel %vm511, %v1124, 0
      %v1135 = vsel %vm511, %v1125, 0
      %v1138 = vsel %vm603, %v1129, 0
      %1140 = vmatpush.bf16.msra.mxu0 0
      %1141 = vmatpush.bf16.msra.mxu0 0
      %1142 = vmatpush.bf16.msra.mxu0 0
      %1143 = vmatpush.bf16.msra.mxu0 0
      %1144 = vmatpush.bf16.msra.mxu0 0
      %1145 = vmatpush.bf16.msra.mxu0 0
      %1146 = vmatpush.bf16.msra.mxu0 %v1138
      %1147 = vmatpush.bf16.msra.mxu0 %v1127
      %1148 = vmatmul.bf16.gmra.mxu0 %v1132
      %v1149 = vpop.f32.mrf.mxu0
      %v1150 = vadd.f32 0.0, %v1149
      %v1151 = vpop.f32.mrf.mxu0
      %v1152 = vadd.f32 0.0, %v1151
      %1153 = vmatmul.bf16.gmra.mxu0 %v1135
      %v1154 = vpop.f32.mrf.mxu0
      %v1155 = vadd.f32 0.0, %v1154
      %v1156 = vpop.f32.mrf.mxu0
      %1157 = vdwg.mxu0
      %1164 = vrot.lane.b32.xlu0 %v1110, 16
      %v1165 = vpop.permute.xlu0 %1164
      %1166 = vrot.lane.b32.xlu0 %v1112, 16
      %v1167 = vpop.permute.xlu0 %1166
      %1168 = vrot.lane.b32.xlu0 %v1115, 16
      %v1169 = vpop.permute.xlu0 %1168
      %1170 = vrot.lane.b32.xlu0 %v1150, 16
      %v1171 = vpop.permute.xlu0 %1170
      %1172 = vrot.lane.b32.xlu0 %v1152, 16
      %v1173 = vpop.permute.xlu0 %1172
      %1174 = vrot.lane.b32.xlu0 %v1155, 16
      %v1175 = vpop.permute.xlu0 %1174
      %vm1182 = vcmask 195712
      %1183 = vst.msk [vmem:[#allocation2] sm:$0xff] %vm1182, %v1165
      %1184 = vst.msk [vmem:[#allocation2 + $0x8] sm:$0xff] %vm1182, %v1167
      %1185 = vst.msk [vmem:[#allocation2 + $0x10] sm:$0xff] %vm1182, %v1169
      %1186 = vst.msk [vmem:[#allocation2 + $0x18] sm:$0xff] %vm1182, %v1171
      %1187 = vst.msk [vmem:[#allocation2 + $0x20] sm:$0xff] %vm1182, %v1173
      %1188 = vst.msk [vmem:[#allocation2 + $0x28] sm:$0xff] %vm1182, %v1175
      %1189 = vrot.lane.b32.xlu0 %v432, 104
      %v1190 = vpop.permute.xlu0 %1189
      %1191 = vrot.lane.b32.xlu0 %v433, 104
      %v1192 = vpop.permute.xlu0 %1191
      %1193 = vrot.lane.b32.xlu0 %v432, 72
      %v1194 = vpop.permute.xlu0 %1193
      %1195 = vrot.lane.b32.xlu0 %v433, 72
      %v1196 = vpop.permute.xlu0 %1195
      %v1198 = vsel %vm438, %v1190, 0
      %v1201 = vsel %vm438, %v1192, 0
      %v1204 = vsel %vm438, %v1194, 0
      %v1207 = vsel %vm438, %v1196, 0
      %1209 = vmatpush.bf16.xpose.msra.mxu0 0
      %1210 = vmatpush.bf16.xpose.msra.mxu0 0
      %1211 = vmatpush.bf16.xpose.msra.mxu0 0
      %1212 = vmatpush.bf16.xpose.msra.mxu0 0
      %1213 = vmatpush.bf16.xpose.msra.mxu0 0
      %1214 = vmatpush.bf16.xpose.msra.mxu0 0
      %1215 = vmatpush.bf16.xpose.msra.mxu0 %v1207
      %1216 = vmatpush.bf16.xpose.msra.mxu0 %v1204
      %1217 = vmatmul.bf16.gmra.mxu0 %v1198
      %v1218 = vpop.f32.mrf.mxu0
      %v1219 = vadd.f32 %v185, %v1218
      %v1220 = vpop.f32.mrf.mxu0
      %v1221 = vadd.f32 %v185, %v1220
      %1222 = vmatmul.bf16.gmra.mxu0 %v1201
      %v1223 = vpop.f32.mrf.mxu0
      %v1224 = vadd.f32 %v185, %v1223
      %v1225 = vpop.f32.mrf.mxu0
      %1226 = vdwg.mxu0
      %1227 = vrot.lane.b32.xlu0 %v475, 104
      %v1228 = vpop.permute.xlu0 %1227
      %1229 = vrot.lane.b32.xlu0 %v476, 104
      %v1230 = vpop.permute.xlu0 %1229
      %1231 = vrot.lane.b32.xlu0 %v475, 72
      %v1232 = vpop.permute.xlu0 %1231
      %1233 = vrot.lane.b32.xlu0 %v476, 72
      %v1234 = vpop.permute.xlu0 %1233
      %v1236 = vsel %vm438, %v1228, 0
      %v1239 = vsel %vm438, %v1230, 0
      %v1242 = vsel %vm438, %v1232, 0
      %v1245 = vsel %vm438, %v1234, 0
      %1247 = vmatpush.bf16.xpose.msra.mxu0 0
      %1248 = vmatpush.bf16.xpose.msra.mxu0 0
      %1249 = vmatpush.bf16.xpose.msra.mxu0 0
      %1250 = vmatpush.bf16.xpose.msra.mxu0 0
      %1251 = vmatpush.bf16.xpose.msra.mxu0 0
      %1252 = vmatpush.bf16.xpose.msra.mxu0 0
      %1253 = vmatpush.bf16.xpose.msra.mxu0 %v1245
      %1254 = vmatpush.bf16.xpose.msra.mxu0 %v1242
      %1255 = vmatmul.bf16.gmra.mxu0 %v1236
      %v1256 = vpop.f32.mrf.mxu0
      %v1257 = vadd.f32 %v185, %v1256
      %v1258 = vpop.f32.mrf.mxu0
      %v1259 = vadd.f32 %v185, %v1258
      %1260 = vmatmul.bf16.gmra.mxu0 %v1239
      %v1261 = vpop.f32.mrf.mxu0
      %v1262 = vadd.f32 %v185, %v1261
      %v1263 = vpop.f32.mrf.mxu0
      %1264 = vdwg.mxu0
      %v1265 = vsel %vm511, %v1219, -inf
      %1266 = vmax.xlane.f32.xlu0 %v1265
      %v1267 = vpop.xlane.xlu0 %1266
      %v1268 = vsel %vm511, %v1221, -inf
      %1269 = vmax.xlane.f32.xlu0 %v1268
      %v1270 = vpop.xlane.xlu0 %1269
      %v1271 = vsel %vm511, %v1224, -inf
      %1272 = vmax.xlane.f32.xlu0 %v1271
      %v1273 = vpop.xlane.xlu0 %1272
      %v1274 = vsel %vm511, %v1257, -inf
      %1275 = vmax.xlane.f32.xlu0 %v1274
      %v1276 = vpop.xlane.xlu0 %1275
      %v1277 = vsel %vm511, %v1259, -inf
      %1278 = vmax.xlane.f32.xlu0 %v1277
      %v1279 = vpop.xlane.xlu0 %1278
      %v1280 = vsel %vm511, %v1262, -inf
      %1281 = vmax.xlane.f32.xlu0 %v1280
      %v1282 = vpop.xlane.xlu0 %1281
      %v1283 = vsub.f32 %v1219, %v1267
      %v1284 = vsub.f32 %v1221, %v1270
      %v1285 = vsub.f32 %v1224, %v1273
      %v1286 = vsub.f32 %v1257, %v1276
      %v1287 = vsub.f32 %v1259, %v1279
      %v1288 = vsub.f32 %v1262, %v1282
      %v1289 = vmul.f32 %v1283, 1.442695
      %v1290 = vpow.pop %v1289
      %v1291 = vmul.f32 %v1284, 1.442695
      %v1292 = vpow.pop %v1291
      %v1293 = vmul.f32 %v1285, 1.442695
      %v1294 = vpow.pop %v1293
      %v1295 = vmul.f32 %v1286, 1.442695
      %v1296 = vpow.pop %v1295
      %v1297 = vmul.f32 %v1287, 1.442695
      %v1298 = vpow.pop %v1297
      %v1299 = vmul.f32 %v1288, 1.442695
      %v1300 = vpow.pop %v1299
      %v1301 = vsel %vm511, %v1290, 0.0
      %1302 = vadd.xlane.f32.xlu0 %v1301
      %v1303 = vpop.xlane.xlu0 %1302
      %v1304 = vsel %vm511, %v1292, 0.0
      %1305 = vadd.xlane.f32.xlu0 %v1304
      %v1306 = vpop.xlane.xlu0 %1305
      %v1307 = vsel %vm511, %v1294, 0.0
      %1308 = vadd.xlane.f32.xlu0 %v1307
      %v1309 = vpop.xlane.xlu0 %1308
      %v1310 = vsel %vm511, %v1296, 0.0
      %1311 = vadd.xlane.f32.xlu0 %v1310
      %v1312 = vpop.xlane.xlu0 %1311
      %v1313 = vsel %vm511, %v1298, 0.0
      %1314 = vadd.xlane.f32.xlu0 %v1313
      %v1315 = vpop.xlane.xlu0 %1314
      %v1316 = vsel %vm511, %v1300, 0.0
      %1317 = vadd.xlane.f32.xlu0 %v1316
      %v1318 = vpop.xlane.xlu0 %1317
      %v1319 = vrcp.pop %v1303
      %v1320 = vrcp.pop %v1306
      %v1321 = vrcp.pop %v1309
      %v1322 = vrcp.pop %v1312
      %v1323 = vrcp.pop %v1315
      %v1324 = vrcp.pop %v1318
      %v1325 = vmul.f32 %v1290, %v1319
      %v1326 = vmul.f32 %v1292, %v1320
      %v1327 = vmul.f32 %v1294, %v1321
      %v1328 = vmul.f32 %v1296, %v1322
      %v1329 = vmul.f32 %v1298, %v1323
      %v1330 = vmul.f32 %v1300, %v1324
      %v1331 = vpack.c.bf16 %v1325, %v1325
      %v1332 = vpack.c.bf16 %v1326, %v1326
      %v1333 = vpack.c.bf16 %v1327, %v1327
      %v1334 = vpack.c.bf16 %v1328, %v1328
      %v1335 = vpack.c.bf16 %v1329, %v1329
      %v1336 = vpack.c.bf16 %v1330, %v1330
      %v1340 = vunpack.c.l.b16 %v1331
      %v1341 = vunpack.c.l.b16 %v1332
      %v1342 = vunpack.c.l.b16 %v1333
      %v1343 = vpack.c.b16 %v1341, %v1340
      %v1344 = vpack.c.b16 %v1342, %v1342
      %1345 = vrot.lane.b32.xlu0 %v432, 40
      %v1346 = vpop.permute.xlu0 %1345
      %1347 = vrot.lane.b32.xlu0 %v433, 40
      %v1348 = vpop.permute.xlu0 %1347
      %v1351 = vsel %vm511, %v1343, 0
      %v1354 = vsel %vm511, %v1344, 0
      %v1357 = vsel %vm603, %v1348, 0
      %1359 = vmatpush.bf16.msra.mxu0 0
      %1360 = vmatpush.bf16.msra.mxu0 0
      %1361 = vmatpush.bf16.msra.mxu0 0
      %1362 = vmatpush.bf16.msra.mxu0 0
      %1363 = vmatpush.bf16.msra.mxu0 0
      %1364 = vmatpush.bf16.msra.mxu0 0
      %1365 = vmatpush.bf16.msra.mxu0 %v1357
      %1366 = vmatpush.bf16.msra.mxu0 %v1346
      %1367 = vmatmul.bf16.gmra.mxu0 %v1351
      %v1368 = vpop.f32.mrf.mxu0
      %v1369 = vadd.f32 0.0, %v1368
      %v1370 = vpop.f32.mrf.mxu0
      %v1371 = vadd.f32 0.0, %v1370
      %1372 = vmatmul.bf16.gmra.mxu0 %v1354
      %v1373 = vpop.f32.mrf.mxu0
      %v1374 = vadd.f32 0.0, %v1373
      %v1375 = vpop.f32.mrf.mxu0
      %1376 = vdwg.mxu0
      %v1380 = vunpack.c.l.b16 %v1334
      %v1381 = vunpack.c.l.b16 %v1335
      %v1382 = vunpack.c.l.b16 %v1336
      %v1383 = vpack.c.b16 %v1381, %v1380
      %v1384 = vpack.c.b16 %v1382, %v1382
      %1385 = vrot.lane.b32.xlu0 %v475, 40
      %v1386 = vpop.permute.xlu0 %1385
      %1387 = vrot.lane.b32.xlu0 %v476, 40
      %v1388 = vpop.permute.xlu0 %1387
      %v1391 = vsel %vm511, %v1383, 0
      %v1394 = vsel %vm511, %v1384, 0
      %v1397 = vsel %vm603, %v1388, 0
      %1399 = vmatpush.bf16.msra.mxu0 0
      %1400 = vmatpush.bf16.msra.mxu0 0
      %1401 = vmatpush.bf16.msra.mxu0 0
      %1402 = vmatpush.bf16.msra.mxu0 0
      %1403 = vmatpush.bf16.msra.mxu0 0
      %1404 = vmatpush.bf16.msra.mxu0 0
      %1405 = vmatpush.bf16.msra.mxu0 %v1397
      %1406 = vmatpush.bf16.msra.mxu0 %v1386
      %1407 = vmatmul.bf16.gmra.mxu0 %v1391
      %v1408 = vpop.f32.mrf.mxu0
      %v1409 = vadd.f32 0.0, %v1408
      %v1410 = vpop.f32.mrf.mxu0
      %v1411 = vadd.f32 0.0, %v1410
      %1412 = vmatmul.bf16.gmra.mxu0 %v1394
      %v1413 = vpop.f32.mrf.mxu0
      %v1414 = vadd.f32 0.0, %v1413
      %v1415 = vpop.f32.mrf.mxu0
      %1416 = vdwg.mxu0
      %1423 = vrot.lane.b32.xlu0 %v1369, 24
      %v1424 = vpop.permute.xlu0 %1423
      %1425 = vrot.lane.b32.xlu0 %v1371, 24
      %v1426 = vpop.permute.xlu0 %1425
      %1427 = vrot.lane.b32.xlu0 %v1374, 24
      %v1428 = vpop.permute.xlu0 %1427
      %1429 = vrot.lane.b32.xlu0 %v1409, 24
      %v1430 = vpop.permute.xlu0 %1429
      %1431 = vrot.lane.b32.xlu0 %v1411, 24
      %v1432 = vpop.permute.xlu0 %1431
      %1433 = vrot.lane.b32.xlu0 %v1414, 24
      %v1434 = vpop.permute.xlu0 %1433
      %vm1441 = vcmask 261312
      %1442 = vst.msk [vmem:[#allocation2] sm:$0xff] %vm1441, %v1424
      %1443 = vst.msk [vmem:[#allocation2 + $0x8] sm:$0xff] %vm1441, %v1426
      %1444 = vst.msk [vmem:[#allocation2 + $0x10] sm:$0xff] %vm1441, %v1428
      %1445 = vst.msk [vmem:[#allocation2 + $0x18] sm:$0xff] %vm1441, %v1430
      %1446 = vst.msk [vmem:[#allocation2 + $0x20] sm:$0xff] %vm1441, %v1432
      %1447 = vst.msk [vmem:[#allocation2 + $0x28] sm:$0xff] %vm1441, %v1434
      %v1448 = vld [vmem:[#allocation2] sm:$0xff]
      %v1449 = vld [vmem:[#allocation2 + $0x8] sm:$0xff]
      %v1450 = vld [vmem:[#allocation2 + $0x10] sm:$0xff]
      %v1451 = vld [vmem:[#allocation2 + $0x18] sm:$0xff]
      %v1452 = vld [vmem:[#allocation2 + $0x20] sm:$0xff]
      %v1453 = vld [vmem:[#allocation2 + $0x28] sm:$0xff]
      %v1454 = vpack.c.bf16 %v1449, %v1448
      %v1455 = vpack.c.bf16 %v1451, %v1450
      %v1456 = vpack.c.bf16 %v1453, %v1452
      %s1457 = smul.addr %s363, 4
      %s1458 = scalar_lea.vmem %s7, %s1457
      %v1459 = vld [vmem:[%s1458] sm:$0xf]
      %v1460 = vld [vmem:[%s1458 + $0x4] sm:$0xf]
      %v1461 = vld [vmem:[%s1458 + $0x8] sm:$0xf]
      %v1462 = vld [vmem:[%s1458 + $0xc] sm:$0xf]
      %s1463 = scalar_lea.vmem %s8, %s187
      %v1464 = vld [vmem:[%s1463] sm:$0x1]
      %v1466 = vperm.slane %v1464, 0
      %v1472 = vunpack.c.l.b16 %v1459
      %v1473 = vunpack.c.l.b16 %v1460
      %v1474 = vunpack.c.l.b16 %v1461
      %v1475 = vunpack.c.l.b16 %v1462
      %v1476 = vpack.c.b16 %v1473, %v1472
      %v1477 = vpack.c.b16 %v1475, %v1474
      %v1481 = vsel %vm202, %v1454, 0
      %v1484 = vsel %vm202, %v1455, 0
      %v1487 = vsel %vm202, %v1456, 0
      %1489 = vmatpush.bf16.msra.mxu0 0
      %1490 = vmatpush.bf16.msra.mxu0 0
      %1491 = vmatpush.bf16.msra.mxu0 0
      %1492 = vmatpush.bf16.msra.mxu0 0
      %1493 = vmatpush.bf16.msra.mxu0 0
      %1494 = vmatpush.bf16.msra.mxu0 0
      %1495 = vmatpush.bf16.msra.mxu0 %v1477
      %1496 = vmatpush.bf16.msra.mxu0 %v1476
      %1497 = vmatmul.bf16.gmra.mxu0 %v1481
      %v1498 = vpop.f32.mrf.mxu0
      %v1499 = vadd.f32 %v1466, %v1498
      %v1500 = vpop.f32.mrf.mxu0
      %v1501 = vadd.f32 %v1466, %v1500
      %1502 = vmatmul.bf16.gmra.mxu0 %v1484
      %v1503 = vpop.f32.mrf.mxu0
      %v1504 = vadd.f32 %v1466, %v1503
      %v1505 = vpop.f32.mrf.mxu0
      %v1506 = vadd.f32 %v1466, %v1505
      %1507 = vmatmul.bf16.gmra.mxu0 %v1487
      %v1508 = vpop.f32.mrf.mxu0
      %v1509 = vadd.f32 %v1466, %v1508
      %v1510 = vpop.f32.mrf.mxu0
      %v1511 = vadd.f32 %v1466, %v1510
      %1512 = vdwg.mxu0
      %v1513 = vadd.f32 %v192, %v1499
      %v1514 = vadd.f32 %v193, %v1501
      %v1515 = vadd.f32 %v194, %v1504
      %v1516 = vadd.f32 %v195, %v1506
      %v1517 = vadd.f32 %v196, %v1509
      %v1518 = vadd.f32 %v197, %v1511
      %s1519 = scalar_lea.vmem %s9, %s187
      %v1520 = vld [vmem:[%s1519] sm:$0x1]
      %s1521 = scalar_lea.vmem %s10, %s187
      %v1522 = vld [vmem:[%s1521] sm:$0x1]
      %v1523 = vsel %vm202, %v1513, 0.0
      %1524 = vadd.xlane.f32.xlu0 %v1523
      %v1525 = vpop.xlane.xlu0 %1524
      %v1526 = vsel %vm202, %v1514, 0.0
      %1527 = vadd.xlane.f32.xlu0 %v1526
      %v1528 = vpop.xlane.xlu0 %1527
      %v1529 = vsel %vm202, %v1515, 0.0
      %1530 = vadd.xlane.f32.xlu0 %v1529
      %v1531 = vpop.xlane.xlu0 %1530
      %v1532 = vsel %vm202, %v1516, 0.0
      %1533 = vadd.xlane.f32.xlu0 %v1532
      %v1534 = vpop.xlane.xlu0 %1533
      %v1535 = vsel %vm202, %v1517, 0.0
      %1536 = vadd.xlane.f32.xlu0 %v1535
      %v1537 = vpop.xlane.xlu0 %1536
      %v1538 = vsel %vm202, %v1518, 0.0
      %1539 = vadd.xlane.f32.xlu0 %v1538
      %v1540 = vpop.xlane.xlu0 %1539
      %v1541 = vmul.f32 %v1525, %v227
      %v1542 = vmul.f32 %v1528, %v227
      %v1543 = vmul.f32 %v1531, %v227
      %v1544 = vmul.f32 %v1534, %v227
      %v1545 = vmul.f32 %v1537, %v227
      %v1546 = vmul.f32 %v1540, %v227
      %v1547 = vsub.f32 %v1513, %v1541
      %v1548 = vsub.f32 %v1514, %v1542
      %v1549 = vsub.f32 %v1515, %v1543
      %v1550 = vsub.f32 %v1516, %v1544
      %v1551 = vsub.f32 %v1517, %v1545
      %v1552 = vsub.f32 %v1518, %v1546
      %v1553 = vmul.f32 %v1547, %v1547
      %v1554 = vmul.f32 %v1548, %v1548
      %v1555 = vmul.f32 %v1549, %v1549
      %v1556 = vmul.f32 %v1550, %v1550
      %v1557 = vmul.f32 %v1551, %v1551
      %v1558 = vmul.f32 %v1552, %v1552
      %v1559 = vsel %vm202, %v1553, 0.0
      %1560 = vadd.xlane.f32.xlu0 %v1559
      %v1561 = vpop.xlane.xlu0 %1560
      %v1562 = vsel %vm202, %v1554, 0.0
      %1563 = vadd.xlane.f32.xlu0 %v1562
      %v1564 = vpop.xlane.xlu0 %1563
      %v1565 = vsel %vm202, %v1555, 0.0
      %1566 = vadd.xlane.f32.xlu0 %v1565
      %v1567 = vpop.xlane.xlu0 %1566
      %v1568 = vsel %vm202, %v1556, 0.0
      %1569 = vadd.xlane.f32.xlu0 %v1568
      %v1570 = vpop.xlane.xlu0 %1569
      %v1571 = vsel %vm202, %v1557, 0.0
      %1572 = vadd.xlane.f32.xlu0 %v1571
      %v1573 = vpop.xlane.xlu0 %1572
      %v1574 = vsel %vm202, %v1558, 0.0
      %1575 = vadd.xlane.f32.xlu0 %v1574
      %v1576 = vpop.xlane.xlu0 %1575
      %v1577 = vmul.f32 %v1561, %v227
      %v1578 = vmul.f32 %v1564, %v227
      %v1579 = vmul.f32 %v1567, %v227
      %v1580 = vmul.f32 %v1570, %v227
      %v1581 = vmul.f32 %v1573, %v227
      %v1582 = vmul.f32 %v1576, %v227
      %v1583 = vadd.f32 %v1577, 1e-05
      %v1584 = vadd.f32 %v1578, 1e-05
      %v1585 = vadd.f32 %v1579, 1e-05
      %v1586 = vadd.f32 %v1580, 1e-05
      %v1587 = vadd.f32 %v1581, 1e-05
      %v1588 = vadd.f32 %v1582, 1e-05
      %v1589 = vrsqrt.pop %v1583
      %v1590 = vmul.f32 %v1589, %v1583
      %v1591 = vmul.f32 %v1590, %v1589
      %v1592 = vmul.f32 0.5, %v1591
      %v1593 = vsub.f32 1.5, %v1592
      %v1594 = vmul.f32 %v1589, %v1593
      %vm1595 = vweird.f32 %v1583
      %vm1596 = vweird.f32 %v1589
      %vm1597 = vmor %vm1595, %vm1596
      %v1598 = vsel %vm1597, %v1589, %v1594
      %v1599 = vrsqrt.pop %v1584
      %v1600 = vmul.f32 %v1599, %v1584
      %v1601 = vmul.f32 %v1600, %v1599
      %v1602 = vmul.f32 0.5, %v1601
      %v1603 = vsub.f32 1.5, %v1602
      %v1604 = vmul.f32 %v1599, %v1603
      %vm1605 = vweird.f32 %v1584
      %vm1606 = vweird.f32 %v1599
      %vm1607 = vmor %vm1605, %vm1606
      %v1608 = vsel %vm1607, %v1599, %v1604
      %v1609 = vrsqrt.pop %v1585
      %v1610 = vmul.f32 %v1609, %v1585
      %v1611 = vmul.f32 %v1610, %v1609
      %v1612 = vmul.f32 0.5, %v1611
      %v1613 = vsub.f32 1.5, %v1612
      %v1614 = vmul.f32 %v1609, %v1613
      %vm1615 = vweird.f32 %v1585
      %vm1616 = vweird.f32 %v1609
      %vm1617 = vmor %vm1615, %vm1616
      %v1618 = vsel %vm1617, %v1609, %v1614
      %v1619 = vrsqrt.pop %v1586
      %v1620 = vmul.f32 %v1619, %v1586
      %v1621 = vmul.f32 %v1620, %v1619
      %v1622 = vmul.f32 0.5, %v1621
      %v1623 = vsub.f32 1.5, %v1622
      %v1624 = vmul.f32 %v1619, %v1623
      %vm1625 = vweird.f32 %v1586
      %vm1626 = vweird.f32 %v1619
      %vm1627 = vmor %vm1625, %vm1626
      %v1628 = vsel %vm1627, %v1619, %v1624
      %v1629 = vrsqrt.pop %v1587
      %v1630 = vmul.f32 %v1629, %v1587
      %v1631 = vmul.f32 %v1630, %v1629
      %v1632 = vmul.f32 0.5, %v1631
      %v1633 = vsub.f32 1.5, %v1632
      %v1634 = vmul.f32 %v1629, %v1633
      %vm1635 = vweird.f32 %v1587
      %vm1636 = vweird.f32 %v1629
      %vm1637 = vmor %vm1635, %vm1636
      %v1638 = vsel %vm1637, %v1629, %v1634
      %v1639 = vrsqrt.pop %v1588
      %v1640 = vmul.f32 %v1639, %v1588
      %v1641 = vmul.f32 %v1640, %v1639
      %v1642 = vmul.f32 0.5, %v1641
      %v1643 = vsub.f32 1.5, %v1642
      %v1644 = vmul.f32 %v1639, %v1643
      %vm1645 = vweird.f32 %v1588
      %vm1646 = vweird.f32 %v1639
      %vm1647 = vmor %vm1645, %vm1646
      %v1648 = vsel %vm1647, %v1639, %v1644
      %v1649 = vmul.f32 %v1547, %v1598
      %v1650 = vmul.f32 %v1548, %v1608
      %v1651 = vmul.f32 %v1549, %v1618
      %v1652 = vmul.f32 %v1550, %v1628
      %v1653 = vmul.f32 %v1551, %v1638
      %v1654 = vmul.f32 %v1552, %v1648
      %v1656 = vperm.slane %v1520, 0
      %v1658 = vmul.f32 %v1649, %v1656
      %v1659 = vmul.f32 %v1650, %v1656
      %v1660 = vmul.f32 %v1651, %v1656
      %v1661 = vmul.f32 %v1652, %v1656
      %v1662 = vmul.f32 %v1653, %v1656
      %v1663 = vmul.f32 %v1654, %v1656
      %v1665 = vperm.slane %v1522, 0
      %v1667 = vadd.f32 %v1658, %v1665
      %v1668 = vadd.f32 %v1659, %v1665
      %v1669 = vadd.f32 %v1660, %v1665
      %v1670 = vadd.f32 %v1661, %v1665
      %v1671 = vadd.f32 %v1662, %v1665
      %v1672 = vadd.f32 %v1663, %v1665
      %v1673 = vpack.c.bf16 %v1668, %v1667
      %v1674 = vpack.c.bf16 %v1670, %v1669
      %v1675 = vpack.c.bf16 %v1672, %v1671
      %s1676 = smul.addr %s363, 4
      %s1677 = scalar_lea.vmem %s11, %s1676
      %v1678 = vld [vmem:[%s1677] sm:$0xf]
      %v1679 = vld [vmem:[%s1677 + $0x4] sm:$0xf]
      %v1680 = vld [vmem:[%s1677 + $0x8] sm:$0xf]
      %v1681 = vld [vmem:[%s1677 + $0xc] sm:$0xf]
      %s1682 = scalar_lea.vmem %s12, %s187
      %v1683 = vld [vmem:[%s1682] sm:$0x1]
      %v1685 = vperm.slane %v1683, 0
      %v1691 = vunpack.c.l.b16 %v1678
      %v1692 = vunpack.c.l.b16 %v1679
      %v1693 = vunpack.c.l.b16 %v1680
      %v1694 = vunpack.c.l.b16 %v1681
      %v1695 = vpack.c.b16 %v1692, %v1691
      %v1696 = vpack.c.b16 %v1694, %v1693
      %v1700 = vsel %vm202, %v1673, 0
      %v1703 = vsel %vm202, %v1674, 0
      %v1706 = vsel %vm202, %v1675, 0
      %1708 = vmatpush.bf16.msra.mxu0 0
      %1709 = vmatpush.bf16.msra.mxu0 0
      %1710 = vmatpush.bf16.msra.mxu0 0
      %1711 = vmatpush.bf16.msra.mxu0 0
      %1712 = vmatpush.bf16.msra.mxu0 0
      %1713 = vmatpush.bf16.msra.mxu0 0
      %1714 = vmatpush.bf16.msra.mxu0 %v1696
      %1715 = vmatpush.bf16.msra.mxu0 %v1695
      %1716 = vmatmul.bf16.gmra.mxu0 %v1700
      %v1717 = vpop.f32.mrf.mxu0
      %v1718 = vadd.f32 %v1685, %v1717
      %v1719 = vpop.f32.mrf.mxu0
      %v1720 = vadd.f32 %v1685, %v1719
      %1721 = vmatmul.bf16.gmra.mxu0 %v1703
      %v1722 = vpop.f32.mrf.mxu0
      %v1723 = vadd.f32 %v1685, %v1722
      %v1724 = vpop.f32.mrf.mxu0
      %v1725 = vadd.f32 %v1685, %v1724
      %1726 = vmatmul.bf16.gmra.mxu0 %v1706
      %v1727 = vpop.f32.mrf.mxu0
      %v1728 = vadd.f32 %v1685, %v1727
      %v1729 = vpop.f32.mrf.mxu0
      %v1730 = vadd.f32 %v1685, %v1729
      %1731 = vdwg.mxu0
      %v1732 = vmul.f32 %v1718, 0.5
      %v1733 = vmul.f32 %v1720, 0.5
      %v1734 = vmul.f32 %v1723, 0.5
      %v1735 = vmul.f32 %v1725, 0.5
      %v1736 = vmul.f32 %v1728, 0.5
      %v1737 = vmul.f32 %v1730, 0.5
      %v1738 = vmul.f32 %v1718, 0.70710677
      %v1739 = vmul.f32 %v1720, 0.70710677
      %v1740 = vmul.f32 %v1723, 0.70710677
      %v1741 = vmul.f32 %v1725, 0.70710677
      %v1742 = vmul.f32 %v1728, 0.70710677
      %v1743 = vmul.f32 %v1730, 0.70710677
      %v1744 = vand.u32 2147483647, %v1738
      %v1745 = vand.u32 2147483647, %v1739
      %v1746 = vand.u32 2147483647, %v1740
      %v1747 = vand.u32 2147483647, %v1741
      %v1748 = vand.u32 2147483647, %v1742
      %v1749 = vand.u32 2147483647, %v1743
      %v1750 = vmul.f32 %v1744, 0.3275911
      %v1751 = vmul.f32 %v1745, 0.3275911
      %v1752 = vmul.f32 %v1746, 0.3275911
      %v1753 = vmul.f32 %v1747, 0.3275911
      %v1754 = vmul.f32 %v1748, 0.3275911
      %v1755 = vmul.f32 %v1749, 0.3275911
      %v1756 = vadd.f32 %v1750, 1.0
      %v1757 = vadd.f32 %v1751, 1.0
      %v1758 = vadd.f32 %v1752, 1.0
      %v1759 = vadd.f32 %v1753, 1.0
      %v1760 = vadd.f32 %v1754, 1.0
      %v1761 = vadd.f32 %v1755, 1.0
      %v1762 = vrcp.pop %v1756
      %v1763 = vmul.f32 %v1756, %v1762
      %v1764 = vsub.f32 1.0, %v1763
      %v1765 = vmul.f32 %v1762, %v1764
      %v1766 = vadd.f32 %v1762, %v1765
      %vm1767 = vweird.f32 %v1756
      %vm1768 = vweird.f32 %v1762
      %vm1769 = vmor %vm1767, %vm1768
      %v1770 = vsel %vm1769, %v1762, %v1766
      %v1771 = vand.u32 2147483647, %v1756
      %vm1772 = vcmp.eq.f32.partialorder %v1771, 8.507059e+37
      %v1773 = vand.u32 %v1756, 2147483648
      %v1774 = vor.u32 1.1754944e-38, %v1773
      %v1775 = vsel %vm1772, %v1774, %v1770
      %v1776 = vmul.f32 1.0, %v1775
      %v1777 = vrcp.pop %v1757
      %v1778 = vmul.f32 %v1757, %v1777
      %v1779 = vsub.f32 1.0, %v1778
      %v1780 = vmul.f32 %v1777, %v1779
      %v1781 = vadd.f32 %v1777, %v1780
      %vm1782 = vweird.f32 %v1757
      %vm1783 = vweird.f32 %v1777
      %vm1784 = vmor %vm1782, %vm1783
      %v1785 = vsel %vm1784, %v1777, %v1781
      %v1786 = vand.u32 2147483647, %v1757
      %vm1787 = vcmp.eq.f32.partialorder %v1786, 8.507059e+37
      %v1788 = vand.u32 %v1757, 2147483648
      %v1789 = vor.u32 1.1754944e-38, %v1788
      %v1790 = vsel %vm1787, %v1789, %v1785
      %v1791 = vmul.f32 1.0, %v1790
      %v1792 = vrcp.pop %v1758
      %v1793 = vmul.f32 %v1758, %v1792
      %v1794 = vsub.f32 1.0, %v1793
      %v1795 = vmul.f32 %v1792, %v1794
      %v1796 = vadd.f32 %v1792, %v1795
      %vm1797 = vweird.f32 %v1758
      %vm1798 = vweird.f32 %v1792
      %vm1799 = vmor %vm1797, %vm1798
      %v1800 = vsel %vm1799, %v1792, %v1796
      %v1801 = vand.u32 2147483647, %v1758
      %vm1802 = vcmp.eq.f32.partialorder %v1801, 8.507059e+37
      %v1803 = vand.u32 %v1758, 2147483648
      %v1804 = vor.u32 1.1754944e-38, %v1803
      %v1805 = vsel %vm1802, %v1804, %v1800
      %v1806 = vmul.f32 1.0, %v1805
      %v1807 = vrcp.pop %v1759
      %v1808 = vmul.f32 %v1759, %v1807
      %v1809 = vsub.f32 1.0, %v1808
      %v1810 = vmul.f32 %v1807, %v1809
      %v1811 = vadd.f32 %v1807, %v1810
      %vm1812 = vweird.f32 %v1759
      %vm1813 = vweird.f32 %v1807
      %vm1814 = vmor %vm1812, %vm1813
      %v1815 = vsel %vm1814, %v1807, %v1811
      %v1816 = vand.u32 2147483647, %v1759
      %vm1817 = vcmp.eq.f32.partialorder %v1816, 8.507059e+37
      %v1818 = vand.u32 %v1759, 2147483648
      %v1819 = vor.u32 1.1754944e-38, %v1818
      %v1820 = vsel %vm1817, %v1819, %v1815
      %v1821 = vmul.f32 1.0, %v1820
      %v1822 = vrcp.pop %v1760
      %v1823 = vmul.f32 %v1760, %v1822
      %v1824 = vsub.f32 1.0, %v1823
      %v1825 = vmul.f32 %v1822, %v1824
      %v1826 = vadd.f32 %v1822, %v1825
      %vm1827 = vweird.f32 %v1760
      %vm1828 = vweird.f32 %v1822
      %vm1829 = vmor %vm1827, %vm1828
      %v1830 = vsel %vm1829, %v1822, %v1826
      %v1831 = vand.u32 2147483647, %v1760
      %vm1832 = vcmp.eq.f32.partialorder %v1831, 8.507059e+37
      %v1833 = vand.u32 %v1760, 2147483648
      %v1834 = vor.u32 1.1754944e-38, %v1833
      %v1835 = vsel %vm1832, %v1834, %v1830
      %v1836 = vmul.f32 1.0, %v1835
      %v1837 = vrcp.pop %v1761
      %v1838 = vmul.f32 %v1761, %v1837
      %v1839 = vsub.f32 1.0, %v1838
      %v1840 = vmul.f32 %v1837, %v1839
      %v1841 = vadd.f32 %v1837, %v1840
      %vm1842 = vweird.f32 %v1761
      %vm1843 = vweird.f32 %v1837
      %vm1844 = vmor %vm1842, %vm1843
      %v1845 = vsel %vm1844, %v1837, %v1841
      %v1846 = vand.u32 2147483647, %v1761
      %vm1847 = vcmp.eq.f32.partialorder %v1846, 8.507059e+37
      %v1848 = vand.u32 %v1761, 2147483648
      %v1849 = vor.u32 1.1754944e-38, %v1848
      %v1850 = vsel %vm1847, %v1849, %v1845
      %v1851 = vmul.f32 1.0, %v1850
      %v1852 = vmul.f32 %v1776, 1.0614054
      %v1853 = vmul.f32 %v1791, 1.0614054
      %v1854 = vmul.f32 %v1806, 1.0614054
      %v1855 = vmul.f32 %v1821, 1.0614054
      %v1856 = vmul.f32 %v1836, 1.0614054
      %v1857 = vmul.f32 %v1851, 1.0614054
      %v1858 = vsub.f32 %v1852, 1.4531521
      %v1859 = vsub.f32 %v1853, 1.4531521
      %v1860 = vsub.f32 %v1854, 1.4531521
      %v1861 = vsub.f32 %v1855, 1.4531521
      %v1862 = vsub.f32 %v1856, 1.4531521
      %v1863 = vsub.f32 %v1857, 1.4531521
      %v1864 = vmul.f32 %v1858, %v1776
      %v1865 = vmul.f32 %v1859, %v1791
      %v1866 = vmul.f32 %v1860, %v1806
      %v1867 = vmul.f32 %v1861, %v1821
      %v1868 = vmul.f32 %v1862, %v1836
      %v1869 = vmul.f32 %v1863, %v1851
      %v1870 = vadd.f32 %v1864, 1.4214138
      %v1871 = vadd.f32 %v1865, 1.4214138
      %v1872 = vadd.f32 %v1866, 1.4214138
      %v1873 = vadd.f32 %v1867, 1.4214138
      %v1874 = vadd.f32 %v1868, 1.4214138
      %v1875 = vadd.f32 %v1869, 1.4214138
      %v1876 = vmul.f32 %v1870, %v1776
      %v1877 = vmul.f32 %v1871, %v1791
      %v1878 = vmul.f32 %v1872, %v1806
      %v1879 = vmul.f32 %v1873, %v1821
      %v1880 = vmul.f32 %v1874, %v1836
      %v1881 = vmul.f32 %v1875, %v1851
      %v1882 = vsub.f32 %v1876, 0.28449672
      %v1883 = vsub.f32 %v1877, 0.28449672
      %v1884 = vsub.f32 %v1878, 0.28449672
      %v1885 = vsub.f32 %v1879, 0.28449672
      %v1886 = vsub.f32 %v1880, 0.28449672
      %v1887 = vsub.f32 %v1881, 0.28449672
      %v1888 = vmul.f32 %v1882, %v1776
      %v1889 = vmul.f32 %v1883, %v1791
      %v1890 = vmul.f32 %v1884, %v1806
      %v1891 = vmul.f32 %v1885, %v1821
      %v1892 = vmul.f32 %v1886, %v1836
      %v1893 = vmul.f32 %v1887, %v1851
      %v1894 = vadd.f32 %v1888, 0.2548296
      %v1895 = vadd.f32 %v1889, 0.2548296
      %v1896 = vadd.f32 %v1890, 0.2548296
      %v1897 = vadd.f32 %v1891, 0.2548296
      %v1898 = vadd.f32 %v1892, 0.2548296
      %v1899 = vadd.f32 %v1893, 0.2548296
      %v1900 = vmul.f32 %v1894, %v1776
      %v1901 = vmul.f32 %v1895, %v1791
      %v1902 = vmul.f32 %v1896, %v1806
      %v1903 = vmul.f32 %v1897, %v1821
      %v1904 = vmul.f32 %v1898, %v1836
      %v1905 = vmul.f32 %v1899, %v1851
      %v1906 = vmul.f32 %v1744, %v1744
      %v1907 = vmul.f32 %v1745, %v1745
      %v1908 = vmul.f32 %v1746, %v1746
      %v1909 = vmul.f32 %v1747, %v1747
      %v1910 = vmul.f32 %v1748, %v1748
      %v1911 = vmul.f32 %v1749, %v1749
      %v1912 = vsub.f32 0.0, %v1906
      %v1913 = vsub.f32 0.0, %v1907
      %v1914 = vsub.f32 0.0, %v1908
      %v1915 = vsub.f32 0.0, %v1909
      %v1916 = vsub.f32 0.0, %v1910
      %v1917 = vsub.f32 0.0, %v1911
      %v1918 = vmul.f32 %v1912, 1.442695
      %v1919 = vpow.pop %v1918
      %v1920 = vmul.f32 %v1913, 1.442695
      %v1921 = vpow.pop %v1920
      %v1922 = vmul.f32 %v1914, 1.442695
      %v1923 = vpow.pop %v1922
      %v1924 = vmul.f32 %v1915, 1.442695
      %v1925 = vpow.pop %v1924
      %v1926 = vmul.f32 %v1916, 1.442695
      %v1927 = vpow.pop %v1926
      %v1928 = vmul.f32 %v1917, 1.442695
      %v1929 = vpow.pop %v1928
      %v1930 = vmul.f32 %v1900, %v1919
      %v1931 = vmul.f32 %v1901, %v1921
      %v1932 = vmul.f32 %v1902, %v1923
      %v1933 = vmul.f32 %v1903, %v1925
      %v1934 = vmul.f32 %v1904, %v1927
      %v1935 = vmul.f32 %v1905, %v1929
      %v1936 = vsub.f32 1.0, %v1930
      %v1937 = vsub.f32 1.0, %v1931
      %v1938 = vsub.f32 1.0, %v1932
      %v1939 = vsub.f32 1.0, %v1933
      %v1940 = vsub.f32 1.0, %v1934
      %v1941 = vsub.f32 1.0, %v1935
      %vm1942 = vcmp.lt.f32.partialorder %v1738, 0.0
      %vm1943 = vcmp.lt.f32.partialorder %v1739, 0.0
      %vm1944 = vcmp.lt.f32.partialorder %v1740, 0.0
      %vm1945 = vcmp.lt.f32.partialorder %v1741, 0.0
      %vm1946 = vcmp.lt.f32.partialorder %v1742, 0.0
      %vm1947 = vcmp.lt.f32.partialorder %v1743, 0.0
      %v1948 = vsub.f32 0.0, %v1936
      %v1949 = vsub.f32 0.0, %v1937
      %v1950 = vsub.f32 0.0, %v1938
      %v1951 = vsub.f32 0.0, %v1939
      %v1952 = vsub.f32 0.0, %v1940
      %v1953 = vsub.f32 0.0, %v1941
      %v1954 = vsel %vm1942, %v1948, %v1936
      %v1955 = vsel %vm1943, %v1949, %v1937
      %v1956 = vsel %vm1944, %v1950, %v1938
      %v1957 = vsel %vm1945, %v1951, %v1939
      %v1958 = vsel %vm1946, %v1952, %v1940
      %v1959 = vsel %vm1947, %v1953, %v1941
      %v1960 = vadd.f32 %v1954, 1.0
      %v1961 = vadd.f32 %v1955, 1.0
      %v1962 = vadd.f32 %v1956, 1.0
      %v1963 = vadd.f32 %v1957, 1.0
      %v1964 = vadd.f32 %v1958, 1.0
      %v1965 = vadd.f32 %v1959, 1.0
      %v1966 = vmul.f32 %v1732, %v1960
      %v1967 = vmul.f32 %v1733, %v1961
      %v1968 = vmul.f32 %v1734, %v1962
      %v1969 = vmul.f32 %v1735, %v1963
      %v1970 = vmul.f32 %v1736, %v1964
      %v1971 = vmul.f32 %v1737, %v1965
      %v1972 = vpack.c.bf16 %v1967, %v1966
      %v1973 = vpack.c.bf16 %v1969, %v1968
      %v1974 = vpack.c.bf16 %v1971, %v1970
      %s1975 = smul.u32 %s187, 8
      %s1976 = smul.addr %s1975, 4
      %s1977 = scalar_lea.vmem %s13, %s1976
      %v1978 = vld [vmem:[%s1977] sm:$0xf]
      %v1979 = vld [vmem:[%s1977 + $0x4] sm:$0xf]
      %v1980 = vld [vmem:[%s1977 + $0x8] sm:$0xf]
      %v1981 = vld [vmem:[%s1977 + $0xc] sm:$0xf]
      %v1982 = vld [vmem:[%s1977 + $0x10] sm:$0xf]
      %v1983 = vld [vmem:[%s1977 + $0x14] sm:$0xf]
      %v1984 = vld [vmem:[%s1977 + $0x18] sm:$0xf]
      %v1985 = vld [vmem:[%s1977 + $0x1c] sm:$0xf]
      %s1986 = scalar_lea.vmem %s14, %s187
      %v1987 = vld [vmem:[%s1986] sm:$0x1]
      %v1989 = vperm.slane %v1987, 0
      %v1999 = vunpack.c.l.b16 %v1978
      %v2000 = vunpack.c.l.b16 %v1979
      %v2001 = vunpack.c.l.b16 %v1980
      %v2002 = vunpack.c.l.b16 %v1981
      %v2003 = vunpack.c.l.b16 %v1982
      %v2004 = vunpack.c.l.b16 %v1983
      %v2005 = vunpack.c.l.b16 %v1984
      %v2006 = vunpack.c.l.b16 %v1985
      %v2007 = vpack.c.b16 %v2000, %v1999
      %v2008 = vpack.c.b16 %v2002, %v2001
      %v2009 = vpack.c.b16 %v2004, %v2003
      %v2010 = vpack.c.b16 %v2006, %v2005
      %vm2015 = vcmask 523264
      %v2017 = vsel %vm2015, %v1972, 0
      %v2020 = vsel %vm2015, %v1973, 0
      %v2023 = vsel %vm2015, %v1974, 0
      %2025 = vmatpush.bf16.msra.mxu0 0
      %2026 = vmatpush.bf16.msra.mxu0 0
      %2027 = vmatpush.bf16.msra.mxu0 0
      %2028 = vmatpush.bf16.msra.mxu0 0
      %2029 = vmatpush.bf16.msra.mxu0 %v2010
      %2030 = vmatpush.bf16.msra.mxu0 %v2009
      %2031 = vmatpush.bf16.msra.mxu0 %v2008
      %2032 = vmatpush.bf16.msra.mxu0 %v2007
      %2033 = vmatmul.bf16.gmra.mxu0 %v2017
      %v2034 = vpop.f32.mrf.mxu0
      %v2035 = vadd.f32 %v1989, %v2034
      %v2036 = vpop.f32.mrf.mxu0
      %v2037 = vadd.f32 %v1989, %v2036
      %2038 = vmatmul.bf16.gmra.mxu0 %v2020
      %v2039 = vpop.f32.mrf.mxu0
      %v2040 = vadd.f32 %v1989, %v2039
      %v2041 = vpop.f32.mrf.mxu0
      %v2042 = vadd.f32 %v1989, %v2041
      %2043 = vmatmul.bf16.gmra.mxu0 %v2023
      %v2044 = vpop.f32.mrf.mxu0
      %v2045 = vadd.f32 %v1989, %v2044
      %v2046 = vpop.f32.mrf.mxu0
      %v2047 = vadd.f32 %v1989, %v2046
      %2048 = vdwg.mxu0
      %v2049 = vmul.f32 %v2035, 0.5
      %v2050 = vmul.f32 %v2037, 0.5
      %v2051 = vmul.f32 %v2040, 0.5
      %v2052 = vmul.f32 %v2042, 0.5
      %v2053 = vmul.f32 %v2045, 0.5
      %v2054 = vmul.f32 %v2047, 0.5
      %v2055 = vmul.f32 %v2035, 0.70710677
      %v2056 = vmul.f32 %v2037, 0.70710677
      %v2057 = vmul.f32 %v2040, 0.70710677
      %v2058 = vmul.f32 %v2042, 0.70710677
      %v2059 = vmul.f32 %v2045, 0.70710677
      %v2060 = vmul.f32 %v2047, 0.70710677
      %v2061 = vand.u32 2147483647, %v2055
      %v2062 = vand.u32 2147483647, %v2056
      %v2063 = vand.u32 2147483647, %v2057
      %v2064 = vand.u32 2147483647, %v2058
      %v2065 = vand.u32 2147483647, %v2059
      %v2066 = vand.u32 2147483647, %v2060
      %v2067 = vmul.f32 %v2061, 0.3275911
      %v2068 = vmul.f32 %v2062, 0.3275911
      %v2069 = vmul.f32 %v2063, 0.3275911
      %v2070 = vmul.f32 %v2064, 0.3275911
      %v2071 = vmul.f32 %v2065, 0.3275911
      %v2072 = vmul.f32 %v2066, 0.3275911
      %v2073 = vadd.f32 %v2067, 1.0
      %v2074 = vadd.f32 %v2068, 1.0
      %v2075 = vadd.f32 %v2069, 1.0
      %v2076 = vadd.f32 %v2070, 1.0
      %v2077 = vadd.f32 %v2071, 1.0
      %v2078 = vadd.f32 %v2072, 1.0
      %v2079 = vrcp.pop %v2073
      %v2080 = vmul.f32 %v2073, %v2079
      %v2081 = vsub.f32 1.0, %v2080
      %v2082 = vmul.f32 %v2079, %v2081
      %v2083 = vadd.f32 %v2079, %v2082
      %vm2084 = vweird.f32 %v2073
      %vm2085 = vweird.f32 %v2079
      %vm2086 = vmor %vm2084, %vm2085
      %v2087 = vsel %vm2086, %v2079, %v2083
      %v2088 = vand.u32 2147483647, %v2073
      %vm2089 = vcmp.eq.f32.partialorder %v2088, 8.507059e+37
      %v2090 = vand.u32 %v2073, 2147483648
      %v2091 = vor.u32 1.1754944e-38, %v2090
      %v2092 = vsel %vm2089, %v2091, %v2087
      %v2093 = vmul.f32 1.0, %v2092
      %v2094 = vrcp.pop %v2074
      %v2095 = vmul.f32 %v2074, %v2094
      %v2096 = vsub.f32 1.0, %v2095
      %v2097 = vmul.f32 %v2094, %v2096
      %v2098 = vadd.f32 %v2094, %v2097
      %vm2099 = vweird.f32 %v2074
      %vm2100 = vweird.f32 %v2094
      %vm2101 = vmor %vm2099, %vm2100
      %v2102 = vsel %vm2101, %v2094, %v2098
      %v2103 = vand.u32 2147483647, %v2074
      %vm2104 = vcmp.eq.f32.partialorder %v2103, 8.507059e+37
      %v2105 = vand.u32 %v2074, 2147483648
      %v2106 = vor.u32 1.1754944e-38, %v2105
      %v2107 = vsel %vm2104, %v2106, %v2102
      %v2108 = vmul.f32 1.0, %v2107
      %v2109 = vrcp.pop %v2075
      %v2110 = vmul.f32 %v2075, %v2109
      %v2111 = vsub.f32 1.0, %v2110
      %v2112 = vmul.f32 %v2109, %v2111
      %v2113 = vadd.f32 %v2109, %v2112
      %vm2114 = vweird.f32 %v2075
      %vm2115 = vweird.f32 %v2109
      %vm2116 = vmor %vm2114, %vm2115
      %v2117 = vsel %vm2116, %v2109, %v2113
      %v2118 = vand.u32 2147483647, %v2075
      %vm2119 = vcmp.eq.f32.partialorder %v2118, 8.507059e+37
      %v2120 = vand.u32 %v2075, 2147483648
      %v2121 = vor.u32 1.1754944e-38, %v2120
      %v2122 = vsel %vm2119, %v2121, %v2117
      %v2123 = vmul.f32 1.0, %v2122
      %v2124 = vrcp.pop %v2076
      %v2125 = vmul.f32 %v2076, %v2124
      %v2126 = vsub.f32 1.0, %v2125
      %v2127 = vmul.f32 %v2124, %v2126
      %v2128 = vadd.f32 %v2124, %v2127
      %vm2129 = vweird.f32 %v2076
      %vm2130 = vweird.f32 %v2124
      %vm2131 = vmor %vm2129, %vm2130
      %v2132 = vsel %vm2131, %v2124, %v2128
      %v2133 = vand.u32 2147483647, %v2076
      %vm2134 = vcmp.eq.f32.partialorder %v2133, 8.507059e+37
      %v2135 = vand.u32 %v2076, 2147483648
      %v2136 = vor.u32 1.1754944e-38, %v2135
      %v2137 = vsel %vm2134, %v2136, %v2132
      %v2138 = vmul.f32 1.0, %v2137
      %v2139 = vrcp.pop %v2077
      %v2140 = vmul.f32 %v2077, %v2139
      %v2141 = vsub.f32 1.0, %v2140
      %v2142 = vmul.f32 %v2139, %v2141
      %v2143 = vadd.f32 %v2139, %v2142
      %vm2144 = vweird.f32 %v2077
      %vm2145 = vweird.f32 %v2139
      %vm2146 = vmor %vm2144, %vm2145
      %v2147 = vsel %vm2146, %v2139, %v2143
      %v2148 = vand.u32 2147483647, %v2077
      %vm2149 = vcmp.eq.f32.partialorder %v2148, 8.507059e+37
      %v2150 = vand.u32 %v2077, 2147483648
      %v2151 = vor.u32 1.1754944e-38, %v2150
      %v2152 = vsel %vm2149, %v2151, %v2147
      %v2153 = vmul.f32 1.0, %v2152
      %v2154 = vrcp.pop %v2078
      %v2155 = vmul.f32 %v2078, %v2154
      %v2156 = vsub.f32 1.0, %v2155
      %v2157 = vmul.f32 %v2154, %v2156
      %v2158 = vadd.f32 %v2154, %v2157
      %vm2159 = vweird.f32 %v2078
      %vm2160 = vweird.f32 %v2154
      %vm2161 = vmor %vm2159, %vm2160
      %v2162 = vsel %vm2161, %v2154, %v2158
      %v2163 = vand.u32 2147483647, %v2078
      %vm2164 = vcmp.eq.f32.partialorder %v2163, 8.507059e+37
      %v2165 = vand.u32 %v2078, 2147483648
      %v2166 = vor.u32 1.1754944e-38, %v2165
      %v2167 = vsel %vm2164, %v2166, %v2162
      %v2168 = vmul.f32 1.0, %v2167
      %v2169 = vmul.f32 %v2093, 1.0614054
      %v2170 = vmul.f32 %v2108, 1.0614054
      %v2171 = vmul.f32 %v2123, 1.0614054
      %v2172 = vmul.f32 %v2138, 1.0614054
      %v2173 = vmul.f32 %v2153, 1.0614054
      %v2174 = vmul.f32 %v2168, 1.0614054
      %v2175 = vsub.f32 %v2169, 1.4531521
      %v2176 = vsub.f32 %v2170, 1.4531521
      %v2177 = vsub.f32 %v2171, 1.4531521
      %v2178 = vsub.f32 %v2172, 1.4531521
      %v2179 = vsub.f32 %v2173, 1.4531521
      %v2180 = vsub.f32 %v2174, 1.4531521
      %v2181 = vmul.f32 %v2175, %v2093
      %v2182 = vmul.f32 %v2176, %v2108
      %v2183 = vmul.f32 %v2177, %v2123
      %v2184 = vmul.f32 %v2178, %v2138
      %v2185 = vmul.f32 %v2179, %v2153
      %v2186 = vmul.f32 %v2180, %v2168
      %v2187 = vadd.f32 %v2181, 1.4214138
      %v2188 = vadd.f32 %v2182, 1.4214138
      %v2189 = vadd.f32 %v2183, 1.4214138
      %v2190 = vadd.f32 %v2184, 1.4214138
      %v2191 = vadd.f32 %v2185, 1.4214138
      %v2192 = vadd.f32 %v2186, 1.4214138
      %v2193 = vmul.f32 %v2187, %v2093
      %v2194 = vmul.f32 %v2188, %v2108
      %v2195 = vmul.f32 %v2189, %v2123
      %v2196 = vmul.f32 %v2190, %v2138
      %v2197 = vmul.f32 %v2191, %v2153
      %v2198 = vmul.f32 %v2192, %v2168
      %v2199 = vsub.f32 %v2193, 0.28449672
      %v2200 = vsub.f32 %v2194, 0.28449672
      %v2201 = vsub.f32 %v2195, 0.28449672
      %v2202 = vsub.f32 %v2196, 0.28449672
      %v2203 = vsub.f32 %v2197, 0.28449672
      %v2204 = vsub.f32 %v2198, 0.28449672
      %v2205 = vmul.f32 %v2199, %v2093
      %v2206 = vmul.f32 %v2200, %v2108
      %v2207 = vmul.f32 %v2201, %v2123
      %v2208 = vmul.f32 %v2202, %v2138
      %v2209 = vmul.f32 %v2203, %v2153
      %v2210 = vmul.f32 %v2204, %v2168
      %v2211 = vadd.f32 %v2205, 0.2548296
      %v2212 = vadd.f32 %v2206, 0.2548296
      %v2213 = vadd.f32 %v2207, 0.2548296
      %v2214 = vadd.f32 %v2208, 0.2548296
      %v2215 = vadd.f32 %v2209, 0.2548296
      %v2216 = vadd.f32 %v2210, 0.2548296
      %v2217 = vmul.f32 %v2211, %v2093
      %v2218 = vmul.f32 %v2212, %v2108
      %v2219 = vmul.f32 %v2213, %v2123
      %v2220 = vmul.f32 %v2214, %v2138
      %v2221 = vmul.f32 %v2215, %v2153
      %v2222 = vmul.f32 %v2216, %v2168
      %v2223 = vmul.f32 %v2061, %v2061
      %v2224 = vmul.f32 %v2062, %v2062
      %v2225 = vmul.f32 %v2063, %v2063
      %v2226 = vmul.f32 %v2064, %v2064
      %v2227 = vmul.f32 %v2065, %v2065
      %v2228 = vmul.f32 %v2066, %v2066
      %v2229 = vsub.f32 0.0, %v2223
      %v2230 = vsub.f32 0.0, %v2224
      %v2231 = vsub.f32 0.0, %v2225
      %v2232 = vsub.f32 0.0, %v2226
      %v2233 = vsub.f32 0.0, %v2227
      %v2234 = vsub.f32 0.0, %v2228
      %v2235 = vmul.f32 %v2229, 1.442695
      %v2236 = vpow.pop %v2235
      %v2237 = vmul.f32 %v2230, 1.442695
      %v2238 = vpow.pop %v2237
      %v2239 = vmul.f32 %v2231, 1.442695
      %v2240 = vpow.pop %v2239
      %v2241 = vmul.f32 %v2232, 1.442695
      %v2242 = vpow.pop %v2241
      %v2243 = vmul.f32 %v2233, 1.442695
      %v2244 = vpow.pop %v2243
      %v2245 = vmul.f32 %v2234, 1.442695
      %v2246 = vpow.pop %v2245
      %v2247 = vmul.f32 %v2217, %v2236
      %v2248 = vmul.f32 %v2218, %v2238
      %v2249 = vmul.f32 %v2219, %v2240
      %v2250 = vmul.f32 %v2220, %v2242
      %v2251 = vmul.f32 %v2221, %v2244
      %v2252 = vmul.f32 %v2222, %v2246
      %v2253 = vsub.f32 1.0, %v2247
      %v2254 = vsub.f32 1.0, %v2248
      %v2255 = vsub.f32 1.0, %v2249
      %v2256 = vsub.f32 1.0, %v2250
      %v2257 = vsub.f32 1.0, %v2251
      %v2258 = vsub.f32 1.0, %v2252
      %vm2259 = vcmp.lt.f32.partialorder %v2055, 0.0
      %vm2260 = vcmp.lt.f32.partialorder %v2056, 0.0
      %vm2261 = vcmp.lt.f32.partialorder %v2057, 0.0
      %vm2262 = vcmp.lt.f32.partialorder %v2058, 0.0
      %vm2263 = vcmp.lt.f32.partialorder %v2059, 0.0
      %vm2264 = vcmp.lt.f32.partialorder %v2060, 0.0
      %v2265 = vsub.f32 0.0, %v2253
      %v2266 = vsub.f32 0.0, %v2254
      %v2267 = vsub.f32 0.0, %v2255
      %v2268 = vsub.f32 0.0, %v2256
      %v2269 = vsub.f32 0.0, %v2257
      %v2270 = vsub.f32 0.0, %v2258
      %v2271 = vsel %vm2259, %v2265, %v2253
      %v2272 = vsel %vm2260, %v2266, %v2254
      %v2273 = vsel %vm2261, %v2267, %v2255
      %v2274 = vsel %vm2262, %v2268, %v2256
      %v2275 = vsel %vm2263, %v2269, %v2257
      %v2276 = vsel %vm2264, %v2270, %v2258
      %v2277 = vadd.f32 %v2271, 1.0
      %v2278 = vadd.f32 %v2272, 1.0
      %v2279 = vadd.f32 %v2273, 1.0
      %v2280 = vadd.f32 %v2274, 1.0
      %v2281 = vadd.f32 %v2275, 1.0
      %v2282 = vadd.f32 %v2276, 1.0
      %v2283 = vmul.f32 %v2049, %v2277
      %v2284 = vmul.f32 %v2050, %v2278
      %v2285 = vmul.f32 %v2051, %v2279
      %v2286 = vmul.f32 %v2052, %v2280
      %v2287 = vmul.f32 %v2053, %v2281
      %v2288 = vmul.f32 %v2054, %v2282
      %v2289 = vadd.f32 %v1513, %v2283
      %v2290 = vadd.f32 %v1514, %v2284
      %v2291 = vadd.f32 %v1515, %v2285
      %v2292 = vadd.f32 %v1516, %v2286
      %v2293 = vadd.f32 %v1517, %v2287
      %v2294 = vadd.f32 %v1518, %v2288
    $region82: #{tpu_custom_call.1} parent=1 // loop_footer
      %s191 = sadd.s32 1, %s187
    $region83: #{tpu_custom_call.1} parent=1 // loop_footer_branch
      %186 = sbr.rel target = $region79
    $region84: #{tpu_custom_call.1} parent=1 // loop_exit
      _
    %v2295 = vld [vmem:[%s15] sm:$0x1]
    %v2296 = vld [vmem:[%s16] sm:$0x1]
    %vm2297 = vcmask 253952
    %v2298 = vsel %vm2297, %v192, 0.0
    %2299 = vadd.xlane.f32.xlu0 %v2298
    %v2300 = vpop.xlane.xlu0 %2299
    %v2301 = vsel %vm2297, %v195, 0.0
    %2302 = vadd.xlane.f32.xlu0 %v2301
    %v2303 = vpop.xlane.xlu0 %2302
    %v2304 = vrcp.pop 32.0
    %v2305 = vmul.f32 32.0, %v2304
    %v2306 = vsub.f32 1.0, %v2305
    %v2307 = vmul.f32 %v2304, %v2306
    %v2308 = vadd.f32 %v2304, %v2307
    %vm2309 = vweird.f32 %v2304
    %v2310 = vsel %vm2309, %v2304, %v2308
    %v2311 = vmul.f32 %v2300, %v2310
    %v2312 = vmul.f32 %v2303, %v2310
    %v2313 = vsub.f32 %v192, %v2311
    %v2314 = vsub.f32 %v195, %v2312
    %v2315 = vmul.f32 %v2313, %v2313
    %v2316 = vmul.f32 %v2314, %v2314
    %v2317 = vsel %vm2297, %v2315, 0.0
    %2318 = vadd.xlane.f32.xlu0 %v2317
    %v2319 = vpop.xlane.xlu0 %2318
    %v2320 = vsel %vm2297, %v2316, 0.0
    %2321 = vadd.xlane.f32.xlu0 %v2320
    %v2322 = vpop.xlane.xlu0 %2321
    %v2323 = vmul.f32 %v2319, %v2310
    %v2324 = vmul.f32 %v2322, %v2310
    %v2325 = vadd.f32 %v2323, 1e-05
    %v2326 = vadd.f32 %v2324, 1e-05
    %v2327 = vrsqrt.pop %v2325
    %v2328 = vmul.f32 %v2327, %v2325
    %v2329 = vmul.f32 %v2328, %v2327
    %v2330 = vmul.f32 0.5, %v2329
    %v2331 = vsub.f32 1.5, %v2330
    %v2332 = vmul.f32 %v2327, %v2331
    %vm2333 = vweird.f32 %v2325
    %vm2334 = vweird.f32 %v2327
    %vm2335 = vmor %vm2333, %vm2334
    %v2336 = vsel %vm2335, %v2327, %v2332
    %v2337 = vrsqrt.pop %v2326
    %v2338 = vmul.f32 %v2337, %v2326
    %v2339 = vmul.f32 %v2338, %v2337
    %v2340 = vmul.f32 0.5, %v2339
    %v2341 = vsub.f32 1.5, %v2340
    %v2342 = vmul.f32 %v2337, %v2341
    %vm2343 = vweird.f32 %v2326
    %vm2344 = vweird.f32 %v2337
    %vm2345 = vmor %vm2343, %vm2344
    %v2346 = vsel %vm2345, %v2337, %v2342
    %v2347 = vmul.f32 %v2313, %v2336
    %v2348 = vmul.f32 %v2314, %v2346
    %v2349 = vmul.f32 %v2347, %v2295
    %v2350 = vmul.f32 %v2348, %v2295
    %v2351 = vadd.f32 %v2349, %v2296
    %v2352 = vadd.f32 %v2350, %v2296
    %v2353 = vld [vmem:[%s17] sm:$0xf]
    %v2354 = vld [vmem:[%s17 + $0x4] sm:$0xf]
    %v2355 = vld [vmem:[%s17 + $0x8] sm:$0xf]
    %v2356 = vld [vmem:[%s17 + $0xc] sm:$0xf]
    %v2357 = vpack.c.bf16 %v2351, %v2351
    %v2358 = vpack.c.bf16 %v2352, %v2352
    %v2359 = vld [vmem:[%s18] sm:$0x1]
    %v2364 = vunpack.c.l.b16 %v2353
    %v2365 = vunpack.c.l.b16 %v2354
    %v2366 = vunpack.c.l.b16 %v2355
    %v2367 = vunpack.c.l.b16 %v2356
    %v2368 = vpack.c.b16 %v2365, %v2364
    %v2369 = vpack.c.b16 %v2367, %v2366
    %vm2372 = vcmask 261120
    %v2374 = vsel %vm2372, %v2357, 0
    %2376 = vmatpush.bf16.msra.mxu0 0
    %2377 = vmatpush.bf16.msra.mxu0 0
    %2378 = vmatpush.bf16.msra.mxu0 0
    %2379 = vmatpush.bf16.msra.mxu0 0
    %2380 = vmatpush.bf16.msra.mxu0 0
    %2381 = vmatpush.bf16.msra.mxu0 0
    %2382 = vmatpush.bf16.msra.mxu0 %v2369
    %2383 = vmatpush.bf16.msra.mxu0 %v2368
    %2384 = vmatmul.bf16.gmra.mxu0 %v2374
    %v2385 = vpop.f32.mrf.mxu0
    %v2386 = vadd.f32 %v2359, %v2385
    %v2387 = vpop.f32.mrf.mxu0
    %2388 = vdwg.mxu0
    %v2390 = vsel %vm2372, %v2358, 0
    %2392 = vmatpush.bf16.msra.mxu0 0
    %2393 = vmatpush.bf16.msra.mxu0 0
    %2394 = vmatpush.bf16.msra.mxu0 0
    %2395 = vmatpush.bf16.msra.mxu0 0
    %2396 = vmatpush.bf16.msra.mxu0 0
    %2397 = vmatpush.bf16.msra.mxu0 0
    %2398 = vmatpush.bf16.msra.mxu0 %v2369
    %2399 = vmatpush.bf16.msra.mxu0 %v2368
    %2400 = vmatmul.bf16.gmra.mxu0 %v2390
    %v2401 = vpop.f32.mrf.mxu0
    %v2402 = vadd.f32 %v2359, %v2401
    %v2403 = vpop.f32.mrf.mxu0
    %2404 = vdwg.mxu0
    %2405 = vst [vmem:[#allocation3] sm:$0x1] %v2386
    %2406 = vst [vmem:[#allocation3 + $0x1] sm:$0x1] %v2402
    // Predicated region
    $region85: #{tpu_custom_call.1} parent=1 // pred_check
      _
    $region86: #{tpu_custom_call.1} parent=1 // pred_check_branch
      %2408 = sbr.rel (0) target = $region88
    $region87: #{tpu_custom_call.1} parent=1 // pred_region
      %2410 = vsyncadd [#allocation4], 0
      %s2411 = sshll.u32 [#allocation3], 4
      %s2412 = int_to_ptr.vmem [resolvable:$true] %s2411
      %s2413 = sshll.u32 %s19, 4
      %s2414 = int_to_ptr.hbm [resolvable:$true] %s2413
      %2419 = dma.vmem_to_hbm [thread:$0]  %s2412, 32, %s2414, [#allocation4], 16, 16, 1
    $region88: #{tpu_custom_call.1} parent=1 // pred_fallthru
      _
    // Predicated region
    $region89: #{tpu_custom_call.1} parent=1 // pred_check
      _
    $region90: #{tpu_custom_call.1} parent=1 // pred_check_branch
      %2421 = sbr.rel (0) target = $region92
    $region91: #{tpu_custom_call.1} parent=1 // pred_region
      %2423 = dma.done [#allocation4], 32
    $region92: #{tpu_custom_call.1} parent=1 // pred_fallthru
      _
    %2424 = vsyncpa [#allocation4], 1

</llo_original>
